<compile_context>
chip_gen: v6e
topology: v6e:2x2x1
jax: 0.10.0
libtpu: 0.0.40
codegen_flags: <defaults>
</compile_context>

<pallas_src>
import functools

import jax
import jax.numpy as jnp
from jax import lax
from jax.experimental import pallas as pl
from jax.experimental.pallas import tpu as pltpu

EPS = 1e-12  # LayerNorm eps used by the reference "transformer from scratch" repo


def _encoder_layer_kernel(
    x_ref,
    wq_ref, bq_ref, wk_ref, bk_ref, wv_ref, bv_ref, wo_ref, bo_ref,
    g1_ref, be1_ref,
    w1_ref, b1_ref, w2_ref, b2_ref,
    g2_ref, be2_ref,
    o_ref,
    k_scr, v_scr,
    *, n_head, n_ffn_chunks, tq,
):
    """One grid step = one (batch, query-tile) pair.

    x_ref : (S, D) bf16 full sequence of this batch element (K/V source; the query
            tile is sliced from it).
    k_scr/v_scr : (n_head, S, dh) bf16 VMEM scratch holding the per-batch K/V
            projections, filled once at query-tile 0 and reused for all tiles.
    Weights are head-major / FFN-chunk-major 3-D arrays so per-head / per-chunk
    access is a leading-axis index, never a lane slice.
    """
    S, D = x_ref.shape
    dh = wq_ref.shape[2]

    # ---- per-batch K/V projections, hoisted out of the per-query-tile work ----
    @pl.when(pl.program_id(1) == 0)
    def _():
        xkv = x_ref[...]                                                           # (S, D) bf16
        for h in range(n_head):
            kh = jnp.dot(xkv, wk_ref[h], preferred_element_type=jnp.float32) + bk_ref[h]
            vh = jnp.dot(xkv, wv_ref[h], preferred_element_type=jnp.float32) + bv_ref[h]
            k_scr[h] = kh.astype(k_scr.dtype)
            v_scr[h] = vh.astype(v_scr.dtype)

    # ---- query tile for this step, sliced from the already-resident sequence ----
    q0 = pl.multiple_of(pl.program_id(1) * tq, tq)
    xq_bf = x_ref[pl.ds(q0, tq), :]                                                # (tq, D) bf16
    xq = xq_bf.astype(jnp.float32)                                                 # residual / LN path

    # ---- multi-head self-attention, accumulated directly into the W_O projection ----
    # TODO(synk): attention mask path not implemented (module called with mask=None).
    attn = jnp.broadcast_to(bo_ref[...].astype(jnp.float32), (tq, D))
    for h in range(n_head):
        # 1/sqrt(dh) is folded into wq/bq at repack time -> no '* scale' here.
        qh = jnp.dot(xq_bf, wq_ref[h], preferred_element_type=jnp.float32) + bq_ref[h]   # (tq, dh)
        s = jnp.dot(qh.astype(jnp.bfloat16), k_scr[h].T,
                    preferred_element_type=jnp.float32)                                   # (tq, S)
        s = s - jnp.max(s, axis=-1, keepdims=True)
        p = jnp.exp(s)
        p = p * pl.reciprocal(jnp.sum(p, axis=-1, keepdims=True), approx=True)
        hout = jnp.dot(p.astype(jnp.bfloat16), v_scr[h],
                       preferred_element_type=jnp.float32)                                # (tq, dh)
        # head h's rows of W_O: replaces concat + full (tq, D)@(D, D) projection.
        attn = attn + jnp.dot(hout.astype(jnp.bfloat16), wo_ref[h],
                              preferred_element_type=jnp.float32)                         # (tq, D)

    # ---- residual + LayerNorm 1 (dropout = identity), fp32 statistics ----
    y = attn + xq
    mu = jnp.mean(y, axis=-1, keepdims=True)
    var = jnp.mean((y - mu) ** 2, axis=-1, keepdims=True)
    y = (y - mu) * lax.rsqrt(var + EPS) * g1_ref[...] + be1_ref[...]

    # ---- position-wise FFN; hidden dim chunked so the (tq, H) slab never lives whole ----
    y_bf = y.astype(jnp.bfloat16)
    ffn = jnp.broadcast_to(b2_ref[...].astype(jnp.float32), (tq, D))
    for c in range(n_ffn_chunks):
        h1 = jnp.dot(y_bf, w1_ref[c], preferred_element_type=jnp.float32) + b1_ref[c]     # (tq, chunk)
        h1 = jnp.maximum(h1, 0.0)
        ffn = ffn + jnp.dot(h1.astype(jnp.bfloat16), w2_ref[c],
                            preferred_element_type=jnp.float32)                           # (tq, D)

    # ---- residual + LayerNorm 2 (dropout = identity) ----
    z = ffn + y
    mu2 = jnp.mean(z, axis=-1, keepdims=True)
    var2 = jnp.mean((z - mu2) ** 2, axis=-1, keepdims=True)
    z = (z - mu2) * lax.rsqrt(var2 + EPS) * g2_ref[...] + be2_ref[...]

    o_ref[...] = z.astype(o_ref.dtype)


def encoder_layer_forward(x, params, n_head, *, tq=None, ffn_chunk=512):
    """x: (B, S, D) float32.  params: dict of fp32 weights (see init_params)."""
    B, S, D = x.shape
    H = params["w1"].shape[1]
    assert D % n_head == 0, "d_model must be divisible by n_head"
    dh = D // n_head

    if H % ffn_chunk != 0:
        ffn_chunk = H
    n_ffn_chunks = H // ffn_chunk

    # ---- generation-aware VMEM budget (tight 64 MiB on v7x, roomy 128 MiB on v5e/v6e) ----
    try:
        phys_vmem = int(pltpu.get_tpu_info().vmem_capacity_bytes)
    except Exception:  # conservative default = v7x per-core VMEM
        phys_vmem = 64 << 20
    vmem_cap = int(phys_vmem * 0.85)  # headroom for compiler-internal scratch / semaphores

    def _pad(v, m):
        return ((v + m - 1) // m) * m

    def _vmem_estimate(tq_):
        # Weights counted x2 so the estimate also covers the double-buffered fallback.
        wbytes = (4 * D * D + 2 * D * H) * 2 + (8 * D + 2 * H + 4 * n_head * dh) * 4
        x_block = 2 * S * D * 2                                       # bf16, double-buffered
        out_block = 2 * tq_ * D * 4                                   # fp32, double-buffered
        kv_scratch = 2 * n_head * _pad(S, 16) * _pad(dh, 128) * 2     # bf16, lane/sublane padded
        live = 4 * (2 * tq_ * S + tq_ * ffn_chunk + 8 * tq_ * D)      # fp32 intermediates
        return 2 * wbytes + x_block + out_block + kv_scratch + live + (2 << 20)

    # Query-tile size: largest MXU/lane-friendly tile that fits the VMEM budget.
    if tq is None:
        cands = [c for c in (512, 256, 128) if S % c == 0]
        if cands:
            tq = next((c for c in cands if _vmem_estimate(c) <= vmem_cap), cands[-1])
        else:
            tq = S
    assert S % tq == 0 and (tq == S or tq % 8 == 0)
    nq = S // tq

    vmem_limit = int(min(max(_vmem_estimate(tq), 8 << 20), vmem_cap))

    wdt = jnp.bfloat16  # MXU operands; accumulation stays fp32 inside the kernel
    f32 = jnp.float32
    scale = 1.0 / (dh ** 0.5)

    # Head-major / chunk-major repacking (once, outside the kernel); softmax scale folded into Wq/bq.
    wq3 = (params["wq"] * scale).reshape(D, n_head, dh).transpose(1, 0, 2).astype(wdt)  # (nh, D, dh)
    wk3 = params["wk"].reshape(D, n_head, dh).transpose(1, 0, 2).astype(wdt)
    wv3 = params["wv"].reshape(D, n_head, dh).transpose(1, 0, 2).astype(wdt)
    bq3 = (params["bq"] * scale).reshape(1, n_head, dh).transpose(1, 0, 2).astype(f32)  # (nh, 1, dh)
    bk3 = params["bk"].reshape(1, n_head, dh).transpose(1, 0, 2).astype(f32)
    bv3 = params["bv"].reshape(1, n_head, dh).transpose(1, 0, 2).astype(f32)
    wo3 = params["wo"].reshape(n_head, dh, D).astype(wdt)                               # (nh, dh, D)
    bo = params["bo"].astype(f32)
    w1c = params["w1"].reshape(D, n_ffn_chunks, ffn_chunk).transpose(1, 0, 2).astype(wdt)
    b1c = params["b1"].reshape(1, n_ffn_chunks, ffn_chunk).transpose(1, 0, 2).astype(f32)
    w2c = params["w2"].reshape(n_ffn_chunks, ffn_chunk, D).astype(wdt)
    b2 = params["b2"].astype(f32)
    g1, be1 = params["g1"].astype(f32), params["be1"].astype(f32)
    g2, be2 = params["g2"].astype(f32), params["be2"].astype(f32)

    x_bf = x.astype(jnp.bfloat16)  # bf16 activation stream (residual precision: see notes)
    weights = (wq3, bq3, wk3, bk3, wv3, bv3, wo3, bo,
               g1, be1, w1c, b1c, w2c, b2, g2, be2)
    weight_bytes = sum(int(a.size) * a.dtype.itemsize for a in weights)

    # --- advisory cost estimate (K/V projected once per batch; bf16 activations) ---
    cost = pl.CostEstimate(
        flops=int(B * (8 * S * D * D + 4 * S * S * D + 4 * S * D * H)),
        transcendentals=int(B * n_head * S * S),
        bytes_accessed=int(weight_bytes + B * S * D * 2 + B * S * D * 4),
    )

    kernel = functools.partial(
        _encoder_layer_kernel, n_head=n_head, n_ffn_chunks=n_ffn_chunks, tq=tq)

    seq_map = lambda b, i: (b, 0, 0)     # full sequence: block only changes with b
    out_map = lambda b, i: (b, i, 0)

    def _const_spec(arr, single_buffered):
        idx = (lambda b, i: (0, 0, 0)) if arr.ndim == 3 else (lambda b, i: (0, 0))
        if single_buffered:
            # Constant block index -> single buffer halves weight VMEM, no exposed DMA.
            return pl.BlockSpec(arr.shape, idx, pipeline_mode=pl.Buffered(1))
        return pl.BlockSpec(arr.shape, idx)

    def _call(single_buffered_weights):
        in_specs = [pl.BlockSpec((None, S, D), seq_map)]
        in_specs += [_const_spec(a, single_buffered_weights) for a in weights]
        return pl.pallas_call(
            kernel,
            out_shape=jax.ShapeDtypeStruct((B, S, D), x.dtype),
            grid_spec=pltpu.PrefetchScalarGridSpec(
                num_scalar_prefetch=0,
                grid=(B, nq),
                in_specs=in_specs,
                out_specs=pl.BlockSpec((None, tq, D), out_map),
                scratch_shapes=[pltpu.VMEM((n_head, S, dh), jnp.bfloat16),
                                pltpu.VMEM((n_head, S, dh), jnp.bfloat16)],
            ),
            compiler_params=pltpu.CompilerParams(
                # K/V scratch is reused across query tiles -> inner axis must be arbitrary;
                # batch axis stays parallel for megacore / v7x's two TensorCores.
                dimension_semantics=("parallel", "arbitrary"),
                vmem_limit_bytes=vmem_limit,
            ),
            cost_estimate=cost,
        )(x_bf, *weights)

    try:
        return _call(True)
    except Exception:
        # TODO(synk): fallback for jax builds that reject pipeline_mode=pl.Buffered(1);
        # identical kernel with default (double) buffering of the constant weights.
        return _call(False)


def init_params(key, d_model, ffn_hidden):
    ks = jax.random.split(key, 6)
    sd = 0.02

    def w(k, shape):
        return jax.random.normal(k, shape, jnp.float32) * sd

    return {
        "wq": w(ks[0], (d_model, d_model)), "bq": jnp.zeros((1, d_model), jnp.float32),
        "wk": w(ks[1], (d_model, d_model)), "bk": jnp.zeros((1, d_model), jnp.float32),
        "wv": w(ks[2], (d_model, d_model)), "bv": jnp.zeros((1, d_model), jnp.float32),
        "wo": w(ks[3], (d_model, d_model)), "bo": jnp.zeros((1, d_model), jnp.float32),
        "g1": jnp.ones((1, d_model), jnp.float32), "be1": jnp.zeros((1, d_model), jnp.float32),
        "w1": w(ks[4], (d_model, ffn_hidden)), "b1": jnp.zeros((1, ffn_hidden), jnp.float32),
        "w2": w(ks[5], (ffn_hidden, d_model)), "b2": jnp.zeros((1, d_model), jnp.float32),
        "g2": jnp.ones((1, d_model), jnp.float32), "be2": jnp.zeros((1, d_model), jnp.float32),
    }


def _reference_forward(x, p, n_head):
    """Pure-JAX fp32 reference replicating the PyTorch module (eval mode)."""
    B, S, D = x.shape
    dh = D // n_head

    def lin(a, w, b):
        return a @ w + b

    q = lin(x, p["wq"], p["bq"]).reshape(B, S, n_head, dh).transpose(0, 2, 1, 3)
    k = lin(x, p["wk"], p["bk"]).reshape(B, S, n_head, dh).transpose(0, 2, 1, 3)
    v = lin(x, p["wv"], p["bv"]).reshape(B, S, n_head, dh).transpose(0, 2, 1, 3)
    s = jnp.einsum("bhqd,bhkd->bhqk", q, k) / jnp.sqrt(jnp.float32(dh))
    pr = jax.nn.softmax(s, axis=-1)
    o = jnp.einsum("bhqk,bhkd->bhqd", pr, v).transpose(0, 2, 1, 3).reshape(B, S, D)
    o = lin(o, p["wo"], p["bo"])

    def ln(a, g, b):
        mu = jnp.mean(a, axis=-1, keepdims=True)
        var = jnp.mean((a - mu) ** 2, axis=-1, keepdims=True)
        return (a - mu) / jnp.sqrt(var + EPS) * g + b

    y = ln(o + x, p["g1"], p["be1"])
    ffn = lin(jnp.maximum(lin(y, p["w1"], p["b1"]), 0.0), p["w2"], p["b2"])
    return ln(ffn + y, p["g2"], p["be2"])


if __name__ == "__main__":
    def _run_case(B, S, D, H, NH, **kw):
        key = jax.random.PRNGKey(0)
        kx, kp = jax.random.split(key)
        x = jax.random.normal(kx, (B, S, D), jnp.float32)
        params = init_params(kp, D, H)
        out = jax.block_until_ready(encoder_layer_forward(x, params, NH, **kw))
        ref = _reference_forward(x, params, NH)
        assert out.shape == (B, S, D) and out.dtype == x.dtype
        err = float(jnp.max(jnp.abs(out - ref)))
        # bf16 activations/MXU operands + approx reciprocal vs fp32 reference.
        assert err < 3e-2, f"mismatch vs JAX reference: max abs err {err}"

    # Small shape consistent with the module: batch=2, seq=8, d_model=32, ffn_hidden=64, heads=4.
    _run_case(2, 8, 32, 64, 4)
    # Lane-friendly shape exercising multiple query tiles (K/V hoist reuse) and FFN chunking.
    _run_case(2, 256, 128, 512, 4, tq=128, ffn_chunk=256)

    print("KERNEL_OK")
</pallas_src>

<mosaic_0001>
module attributes {stable_mosaic.version = 11 : i64} {
  func.func @_encoder_layer_kernel(%arg0: i32, %arg1: i32, %arg2: memref<1x8x32xbf16, #tpu.memory_space<vmem>>, %arg3: memref<4x32x8xbf16, #tpu.memory_space<vmem>>, %arg4: memref<4x1x8xf32, #tpu.memory_space<vmem>>, %arg5: memref<4x32x8xbf16, #tpu.memory_space<vmem>>, %arg6: memref<4x1x8xf32, #tpu.memory_space<vmem>>, %arg7: memref<4x32x8xbf16, #tpu.memory_space<vmem>>, %arg8: memref<4x1x8xf32, #tpu.memory_space<vmem>>, %arg9: memref<4x8x32xbf16, #tpu.memory_space<vmem>>, %arg10: memref<1x32xf32, #tpu.memory_space<vmem>>, %arg11: memref<1x32xf32, #tpu.memory_space<vmem>>, %arg12: memref<1x32xf32, #tpu.memory_space<vmem>>, %arg13: memref<1x32x64xbf16, #tpu.memory_space<vmem>>, %arg14: memref<1x1x64xf32, #tpu.memory_space<vmem>>, %arg15: memref<1x64x32xbf16, #tpu.memory_space<vmem>>, %arg16: memref<1x32xf32, #tpu.memory_space<vmem>>, %arg17: memref<1x32xf32, #tpu.memory_space<vmem>>, %arg18: memref<1x32xf32, #tpu.memory_space<vmem>>, %arg19: memref<1x8x32xf32, #tpu.memory_space<vmem>>, %arg20: memref<4x8x8xbf16, #tpu.memory_space<vmem>>, %arg21: memref<4x8x8xbf16, #tpu.memory_space<vmem>>) attributes {dimension_semantics = [#tpu.dimension_semantics<parallel>, #tpu.dimension_semantics<arbitrary>], iteration_bounds = array<i64: 2, 1>, scalar_prefetch = 0 : i64, scratch_operands = 2 : i64, tpu.core_type = #tpu.core_type<tc>, window_params = [{transform_indices = @transform_0, window_bounds = array<i64: 1, 8, 32>}, {pipeline_mode = #tpu.pipeline_mode<synchronous>, transform_indices = @transform_1, window_bounds = array<i64: 4, 32, 8>}, {pipeline_mode = #tpu.pipeline_mode<synchronous>, transform_indices = @transform_2, window_bounds = array<i64: 4, 1, 8>}, {pipeline_mode = #tpu.pipeline_mode<synchronous>, transform_indices = @transform_3, window_bounds = array<i64: 4, 32, 8>}, {pipeline_mode = #tpu.pipeline_mode<synchronous>, transform_indices = @transform_4, window_bounds = array<i64: 4, 1, 8>}, {pipeline_mode = #tpu.pipeline_mode<synchronous>, transform_indices = @transform_5, window_bounds = array<i64: 4, 32, 8>}, {pipeline_mode = #tpu.pipeline_mode<synchronous>, transform_indices = @transform_6, window_bounds = array<i64: 4, 1, 8>}, {pipeline_mode = #tpu.pipeline_mode<synchronous>, transform_indices = @transform_7, window_bounds = array<i64: 4, 8, 32>}, {pipeline_mode = #tpu.pipeline_mode<synchronous>, transform_indices = @transform_8, window_bounds = array<i64: 1, 32>}, {pipeline_mode = #tpu.pipeline_mode<synchronous>, transform_indices = @transform_9, window_bounds = array<i64: 1, 32>}, {pipeline_mode = #tpu.pipeline_mode<synchronous>, transform_indices = @transform_10, window_bounds = array<i64: 1, 32>}, {pipeline_mode = #tpu.pipeline_mode<synchronous>, transform_indices = @transform_11, window_bounds = array<i64: 1, 32, 64>}, {pipeline_mode = #tpu.pipeline_mode<synchronous>, transform_indices = @transform_12, window_bounds = array<i64: 1, 1, 64>}, {pipeline_mode = #tpu.pipeline_mode<synchronous>, transform_indices = @transform_13, window_bounds = array<i64: 1, 64, 32>}, {pipeline_mode = #tpu.pipeline_mode<synchronous>, transform_indices = @transform_14, window_bounds = array<i64: 1, 32>}, {pipeline_mode = #tpu.pipeline_mode<synchronous>, transform_indices = @transform_15, window_bounds = array<i64: 1, 32>}, {pipeline_mode = #tpu.pipeline_mode<synchronous>, transform_indices = @transform_16, window_bounds = array<i64: 1, 32>}, {transform_indices = @transform_17, window_bounds = array<i64: 1, 8, 32>}]} {
    %c0_i32 = arith.constant 0 : i32
    %0 = arith.cmpi eq, %arg1, %c0_i32 : i32
    %1 = arith.extui %0 : i1 to i32
    %c0_i32_0 = arith.constant 0 : i32
    %2 = arith.cmpi ne, %1, %c0_i32_0 : i32
    scf.if %2 {
      %c0_119 = arith.constant 0 : index
      %c0_120 = arith.constant 0 : index
      %c0_121 = arith.constant 0 : index
      %207 = vector.load %arg2[%c0_119, %c0_120, %c0_121] : memref<1x8x32xbf16, #tpu.memory_space<vmem>>, vector<1x8x32xbf16>
      %208 = vector.shape_cast %207 : vector<1x8x32xbf16> to vector<8x32xbf16>
      %c0_122 = arith.constant 0 : index
      %c0_123 = arith.constant 0 : index
      %c0_124 = arith.constant 0 : index
      %209 = vector.load %arg5[%c0_122, %c0_123, %c0_124] : memref<4x32x8xbf16, #tpu.memory_space<vmem>>, vector<1x32x8xbf16>
      %210 = vector.shape_cast %209 : vector<1x32x8xbf16> to vector<32x8xbf16>
      %cst_125 = arith.constant dense<0.000000e+00> : vector<8x8xf32>
      %211 = tpu.matmul %208, %210, %cst_125 {dimension_numbers = #tpu.dot_dimension_numbers<[1], [0], [0], [1], [0, 0, 1, 1], [], []>} : vector<8x32xbf16>, vector<32x8xbf16>, vector<8x8xf32> -> vector<8x8xf32>
      %c0_126 = arith.constant 0 : index
      %c0_127 = arith.constant 0 : index
      %c0_128 = arith.constant 0 : index
      %212 = vector.load %arg6[%c0_126, %c0_127, %c0_128] : memref<4x1x8xf32, #tpu.memory_space<vmem>>, vector<1x1x8xf32>
      %213 = vector.shape_cast %212 : vector<1x1x8xf32> to vector<1x8xf32>
      %214 = vector.broadcast %213 : vector<1x8xf32> to vector<8x8xf32>
      %215 = arith.addf %211, %214 : vector<8x8xf32>
      %c0_129 = arith.constant 0 : index
      %c0_130 = arith.constant 0 : index
      %c0_131 = arith.constant 0 : index
      %216 = vector.load %arg7[%c0_129, %c0_130, %c0_131] : memref<4x32x8xbf16, #tpu.memory_space<vmem>>, vector<1x32x8xbf16>
      %217 = vector.shape_cast %216 : vector<1x32x8xbf16> to vector<32x8xbf16>
      %cst_132 = arith.constant dense<0.000000e+00> : vector<8x8xf32>
      %218 = tpu.matmul %208, %217, %cst_132 {dimension_numbers = #tpu.dot_dimension_numbers<[1], [0], [0], [1], [0, 0, 1, 1], [], []>} : vector<8x32xbf16>, vector<32x8xbf16>, vector<8x8xf32> -> vector<8x8xf32>
      %c0_133 = arith.constant 0 : index
      %c0_134 = arith.constant 0 : index
      %c0_135 = arith.constant 0 : index
      %219 = vector.load %arg8[%c0_133, %c0_134, %c0_135] : memref<4x1x8xf32, #tpu.memory_space<vmem>>, vector<1x1x8xf32>
      %220 = vector.shape_cast %219 : vector<1x1x8xf32> to vector<1x8xf32>
      %221 = vector.broadcast %220 : vector<1x8xf32> to vector<8x8xf32>
      %222 = arith.addf %218, %221 : vector<8x8xf32>
      %223 = arith.truncf %215 : vector<8x8xf32> to vector<8x8xbf16>
      %c0_136 = arith.constant 0 : index
      %c0_137 = arith.constant 0 : index
      %c0_138 = arith.constant 0 : index
      %224 = vector.load %arg20[%c0_136, %c0_137, %c0_138] : memref<4x8x8xbf16, #tpu.memory_space<vmem>>, vector<1x8x8xbf16>
      %225 = vector.shape_cast %224 : vector<1x8x8xbf16> to vector<8x8xbf16>
      %226 = vector.shape_cast %223 : vector<8x8xbf16> to vector<1x8x8xbf16>
      tpu.vector_store %arg20[%c0_136, %c0_137, %c0_138], %226 {strides = array<i32>} : memref<4x8x8xbf16, #tpu.memory_space<vmem>>, vector<1x8x8xbf16>,
      %227 = arith.truncf %222 : vector<8x8xf32> to vector<8x8xbf16>
      %c0_139 = arith.constant 0 : index
      %c0_140 = arith.constant 0 : index
      %c0_141 = arith.constant 0 : index
      %228 = vector.load %arg21[%c0_139, %c0_140, %c0_141] : memref<4x8x8xbf16, #tpu.memory_space<vmem>>, vector<1x8x8xbf16>
      %229 = vector.shape_cast %228 : vector<1x8x8xbf16> to vector<8x8xbf16>
      %230 = vector.shape_cast %227 : vector<8x8xbf16> to vector<1x8x8xbf16>
      tpu.vector_store %arg21[%c0_139, %c0_140, %c0_141], %230 {strides = array<i32>} : memref<4x8x8xbf16, #tpu.memory_space<vmem>>, vector<1x8x8xbf16>,
      %c1_142 = arith.constant 1 : index
      %c0_143 = arith.constant 0 : index
      %c0_144 = arith.constant 0 : index
      %231 = vector.load %arg5[%c1_142, %c0_143, %c0_144] : memref<4x32x8xbf16, #tpu.memory_space<vmem>>, vector<1x32x8xbf16>
      %232 = vector.shape_cast %231 : vector<1x32x8xbf16> to vector<32x8xbf16>
      %cst_145 = arith.constant dense<0.000000e+00> : vector<8x8xf32>
      %233 = tpu.matmul %208, %232, %cst_145 {dimension_numbers = #tpu.dot_dimension_numbers<[1], [0], [0], [1], [0, 0, 1, 1], [], []>} : vector<8x32xbf16>, vector<32x8xbf16>, vector<8x8xf32> -> vector<8x8xf32>
      %c1_146 = arith.constant 1 : index
      %c0_147 = arith.constant 0 : index
      %c0_148 = arith.constant 0 : index
      %234 = vector.load %arg6[%c1_146, %c0_147, %c0_148] : memref<4x1x8xf32, #tpu.memory_space<vmem>>, vector<1x1x8xf32>
      %235 = vector.shape_cast %234 : vector<1x1x8xf32> to vector<1x8xf32>
      %236 = vector.broadcast %235 : vector<1x8xf32> to vector<8x8xf32>
      %237 = arith.addf %233, %236 : vector<8x8xf32>
      %c1_149 = arith.constant 1 : index
      %c0_150 = arith.constant 0 : index
      %c0_151 = arith.constant 0 : index
      %238 = vector.load %arg7[%c1_149, %c0_150, %c0_151] : memref<4x32x8xbf16, #tpu.memory_space<vmem>>, vector<1x32x8xbf16>
      %239 = vector.shape_cast %238 : vector<1x32x8xbf16> to vector<32x8xbf16>
      %cst_152 = arith.constant dense<0.000000e+00> : vector<8x8xf32>
      %240 = tpu.matmul %208, %239, %cst_152 {dimension_numbers = #tpu.dot_dimension_numbers<[1], [0], [0], [1], [0, 0, 1, 1], [], []>} : vector<8x32xbf16>, vector<32x8xbf16>, vector<8x8xf32> -> vector<8x8xf32>
      %c1_153 = arith.constant 1 : index
      %c0_154 = arith.constant 0 : index
      %c0_155 = arith.constant 0 : index
      %241 = vector.load %arg8[%c1_153, %c0_154, %c0_155] : memref<4x1x8xf32, #tpu.memory_space<vmem>>, vector<1x1x8xf32>
      %242 = vector.shape_cast %241 : vector<1x1x8xf32> to vector<1x8xf32>
      %243 = vector.broadcast %242 : vector<1x8xf32> to vector<8x8xf32>
      %244 = arith.addf %240, %243 : vector<8x8xf32>
      %245 = arith.truncf %237 : vector<8x8xf32> to vector<8x8xbf16>
      %c1_156 = arith.constant 1 : index
      %c0_157 = arith.constant 0 : index
      %c0_158 = arith.constant 0 : index
      %246 = vector.load %arg20[%c1_156, %c0_157, %c0_158] : memref<4x8x8xbf16, #tpu.memory_space<vmem>>, vector<1x8x8xbf16>
      %247 = vector.shape_cast %246 : vector<1x8x8xbf16> to vector<8x8xbf16>
      %248 = vector.shape_cast %245 : vector<8x8xbf16> to vector<1x8x8xbf16>
      tpu.vector_store %arg20[%c1_156, %c0_157, %c0_158], %248 {strides = array<i32>} : memref<4x8x8xbf16, #tpu.memory_space<vmem>>, vector<1x8x8xbf16>,
      %249 = arith.truncf %244 : vector<8x8xf32> to vector<8x8xbf16>
      %c1_159 = arith.constant 1 : index
      %c0_160 = arith.constant 0 : index
      %c0_161 = arith.constant 0 : index
      %250 = vector.load %arg21[%c1_159, %c0_160, %c0_161] : memref<4x8x8xbf16, #tpu.memory_space<vmem>>, vector<1x8x8xbf16>
      %251 = vector.shape_cast %250 : vector<1x8x8xbf16> to vector<8x8xbf16>
      %252 = vector.shape_cast %249 : vector<8x8xbf16> to vector<1x8x8xbf16>
      tpu.vector_store %arg21[%c1_159, %c0_160, %c0_161], %252 {strides = array<i32>} : memref<4x8x8xbf16, #tpu.memory_space<vmem>>, vector<1x8x8xbf16>,
      %c2_162 = arith.constant 2 : index
      %c0_163 = arith.constant 0 : index
      %c0_164 = arith.constant 0 : index
      %253 = vector.load %arg5[%c2_162, %c0_163, %c0_164] : memref<4x32x8xbf16, #tpu.memory_space<vmem>>, vector<1x32x8xbf16>
      %254 = vector.shape_cast %253 : vector<1x32x8xbf16> to vector<32x8xbf16>
      %cst_165 = arith.constant dense<0.000000e+00> : vector<8x8xf32>
      %255 = tpu.matmul %208, %254, %cst_165 {dimension_numbers = #tpu.dot_dimension_numbers<[1], [0], [0], [1], [0, 0, 1, 1], [], []>} : vector<8x32xbf16>, vector<32x8xbf16>, vector<8x8xf32> -> vector<8x8xf32>
      %c2_166 = arith.constant 2 : index
      %c0_167 = arith.constant 0 : index
      %c0_168 = arith.constant 0 : index
      %256 = vector.load %arg6[%c2_166, %c0_167, %c0_168] : memref<4x1x8xf32, #tpu.memory_space<vmem>>, vector<1x1x8xf32>
      %257 = vector.shape_cast %256 : vector<1x1x8xf32> to vector<1x8xf32>
      %258 = vector.broadcast %257 : vector<1x8xf32> to vector<8x8xf32>
      %259 = arith.addf %255, %258 : vector<8x8xf32>
      %c2_169 = arith.constant 2 : index
      %c0_170 = arith.constant 0 : index
      %c0_171 = arith.constant 0 : index
      %260 = vector.load %arg7[%c2_169, %c0_170, %c0_171] : memref<4x32x8xbf16, #tpu.memory_space<vmem>>, vector<1x32x8xbf16>
      %261 = vector.shape_cast %260 : vector<1x32x8xbf16> to vector<32x8xbf16>
      %cst_172 = arith.constant dense<0.000000e+00> : vector<8x8xf32>
      %262 = tpu.matmul %208, %261, %cst_172 {dimension_numbers = #tpu.dot_dimension_numbers<[1], [0], [0], [1], [0, 0, 1, 1], [], []>} : vector<8x32xbf16>, vector<32x8xbf16>, vector<8x8xf32> -> vector<8x8xf32>
      %c2_173 = arith.constant 2 : index
      %c0_174 = arith.constant 0 : index
      %c0_175 = arith.constant 0 : index
      %263 = vector.load %arg8[%c2_173, %c0_174, %c0_175] : memref<4x1x8xf32, #tpu.memory_space<vmem>>, vector<1x1x8xf32>
      %264 = vector.shape_cast %263 : vector<1x1x8xf32> to vector<1x8xf32>
      %265 = vector.broadcast %264 : vector<1x8xf32> to vector<8x8xf32>
      %266 = arith.addf %262, %265 : vector<8x8xf32>
      %267 = arith.truncf %259 : vector<8x8xf32> to vector<8x8xbf16>
      %c2_176 = arith.constant 2 : index
      %c0_177 = arith.constant 0 : index
      %c0_178 = arith.constant 0 : index
      %268 = vector.load %arg20[%c2_176, %c0_177, %c0_178] : memref<4x8x8xbf16, #tpu.memory_space<vmem>>, vector<1x8x8xbf16>
      %269 = vector.shape_cast %268 : vector<1x8x8xbf16> to vector<8x8xbf16>
      %270 = vector.shape_cast %267 : vector<8x8xbf16> to vector<1x8x8xbf16>
      tpu.vector_store %arg20[%c2_176, %c0_177, %c0_178], %270 {strides = array<i32>} : memref<4x8x8xbf16, #tpu.memory_space<vmem>>, vector<1x8x8xbf16>,
      %271 = arith.truncf %266 : vector<8x8xf32> to vector<8x8xbf16>
      %c2_179 = arith.constant 2 : index
      %c0_180 = arith.constant 0 : index
      %c0_181 = arith.constant 0 : index
      %272 = vector.load %arg21[%c2_179, %c0_180, %c0_181] : memref<4x8x8xbf16, #tpu.memory_space<vmem>>, vector<1x8x8xbf16>
      %273 = vector.shape_cast %272 : vector<1x8x8xbf16> to vector<8x8xbf16>
      %274 = vector.shape_cast %271 : vector<8x8xbf16> to vector<1x8x8xbf16>
      tpu.vector_store %arg21[%c2_179, %c0_180, %c0_181], %274 {strides = array<i32>} : memref<4x8x8xbf16, #tpu.memory_space<vmem>>, vector<1x8x8xbf16>,
      %c3_182 = arith.constant 3 : index
      %c0_183 = arith.constant 0 : index
      %c0_184 = arith.constant 0 : index
      %275 = vector.load %arg5[%c3_182, %c0_183, %c0_184] : memref<4x32x8xbf16, #tpu.memory_space<vmem>>, vector<1x32x8xbf16>
      %276 = vector.shape_cast %275 : vector<1x32x8xbf16> to vector<32x8xbf16>
      %cst_185 = arith.constant dense<0.000000e+00> : vector<8x8xf32>
      %277 = tpu.matmul %208, %276, %cst_185 {dimension_numbers = #tpu.dot_dimension_numbers<[1], [0], [0], [1], [0, 0, 1, 1], [], []>} : vector<8x32xbf16>, vector<32x8xbf16>, vector<8x8xf32> -> vector<8x8xf32>
      %c3_186 = arith.constant 3 : index
      %c0_187 = arith.constant 0 : index
      %c0_188 = arith.constant 0 : index
      %278 = vector.load %arg6[%c3_186, %c0_187, %c0_188] : memref<4x1x8xf32, #tpu.memory_space<vmem>>, vector<1x1x8xf32>
      %279 = vector.shape_cast %278 : vector<1x1x8xf32> to vector<1x8xf32>
      %280 = vector.broadcast %279 : vector<1x8xf32> to vector<8x8xf32>
      %281 = arith.addf %277, %280 : vector<8x8xf32>
      %c3_189 = arith.constant 3 : index
      %c0_190 = arith.constant 0 : index
      %c0_191 = arith.constant 0 : index
      %282 = vector.load %arg7[%c3_189, %c0_190, %c0_191] : memref<4x32x8xbf16, #tpu.memory_space<vmem>>, vector<1x32x8xbf16>
      %283 = vector.shape_cast %282 : vector<1x32x8xbf16> to vector<32x8xbf16>
      %cst_192 = arith.constant dense<0.000000e+00> : vector<8x8xf32>
      %284 = tpu.matmul %208, %283, %cst_192 {dimension_numbers = #tpu.dot_dimension_numbers<[1], [0], [0], [1], [0, 0, 1, 1], [], []>} : vector<8x32xbf16>, vector<32x8xbf16>, vector<8x8xf32> -> vector<8x8xf32>
      %c3_193 = arith.constant 3 : index
      %c0_194 = arith.constant 0 : index
      %c0_195 = arith.constant 0 : index
      %285 = vector.load %arg8[%c3_193, %c0_194, %c0_195] : memref<4x1x8xf32, #tpu.memory_space<vmem>>, vector<1x1x8xf32>
      %286 = vector.shape_cast %285 : vector<1x1x8xf32> to vector<1x8xf32>
      %287 = vector.broadcast %286 : vector<1x8xf32> to vector<8x8xf32>
      %288 = arith.addf %284, %287 : vector<8x8xf32>
      %289 = arith.truncf %281 : vector<8x8xf32> to vector<8x8xbf16>
      %c3_196 = arith.constant 3 : index
      %c0_197 = arith.constant 0 : index
      %c0_198 = arith.constant 0 : index
      %290 = vector.load %arg20[%c3_196, %c0_197, %c0_198] : memref<4x8x8xbf16, #tpu.memory_space<vmem>>, vector<1x8x8xbf16>
      %291 = vector.shape_cast %290 : vector<1x8x8xbf16> to vector<8x8xbf16>
      %292 = vector.shape_cast %289 : vector<8x8xbf16> to vector<1x8x8xbf16>
      tpu.vector_store %arg20[%c3_196, %c0_197, %c0_198], %292 {strides = array<i32>} : memref<4x8x8xbf16, #tpu.memory_space<vmem>>, vector<1x8x8xbf16>,
      %293 = arith.truncf %288 : vector<8x8xf32> to vector<8x8xbf16>
      %c3_199 = arith.constant 3 : index
      %c0_200 = arith.constant 0 : index
      %c0_201 = arith.constant 0 : index
      %294 = vector.load %arg21[%c3_199, %c0_200, %c0_201] : memref<4x8x8xbf16, #tpu.memory_space<vmem>>, vector<1x8x8xbf16>
      %295 = vector.shape_cast %294 : vector<1x8x8xbf16> to vector<8x8xbf16>
      %296 = vector.shape_cast %293 : vector<8x8xbf16> to vector<1x8x8xbf16>
      tpu.vector_store %arg21[%c3_199, %c0_200, %c0_201], %296 {strides = array<i32>} : memref<4x8x8xbf16, #tpu.memory_space<vmem>>, vector<1x8x8xbf16>,
    } else {
    }
    %c8_i32 = arith.constant 8 : i32
    %3 = arith.muli %arg1, %c8_i32 : i32
    %4 = tpu.assume_multiple %3, 8 : i32
    %c0 = arith.constant 0 : index
    %5 = arith.index_cast %4 : i32 to index
    %c0_1 = arith.constant 0 : index
    %6 = vector.load %arg2[%c0, %5, %c0_1] : memref<1x8x32xbf16, #tpu.memory_space<vmem>>, vector<1x8x32xbf16>
    %7 = vector.shape_cast %6 : vector<1x8x32xbf16> to vector<8x32xbf16>
    %8 = arith.extf %7 : vector<8x32xbf16> to vector<8x32xf32>
    %c0_2 = arith.constant 0 : index
    %c0_3 = arith.constant 0 : index
    %9 = vector.load %arg10[%c0_2, %c0_3] : memref<1x32xf32, #tpu.memory_space<vmem>>, vector<1x32xf32>
    %10 = vector.shape_cast %9 : vector<1x32xf32> to vector<1x32xf32>
    %11 = vector.broadcast %10 : vector<1x32xf32> to vector<8x32xf32>
    %c0_4 = arith.constant 0 : index
    %c0_5 = arith.constant 0 : index
    %c0_6 = arith.constant 0 : index
    %12 = vector.load %arg3[%c0_4, %c0_5, %c0_6] : memref<4x32x8xbf16, #tpu.memory_space<vmem>>, vector<1x32x8xbf16>
    %13 = vector.shape_cast %12 : vector<1x32x8xbf16> to vector<32x8xbf16>
    %cst = arith.constant dense<0.000000e+00> : vector<8x8xf32>
    %14 = tpu.matmul %7, %13, %cst {dimension_numbers = #tpu.dot_dimension_numbers<[1], [0], [0], [1], [0, 0, 1, 1], [], []>} : vector<8x32xbf16>, vector<32x8xbf16>, vector<8x8xf32> -> vector<8x8xf32>
    %c0_7 = arith.constant 0 : index
    %c0_8 = arith.constant 0 : index
    %c0_9 = arith.constant 0 : index
    %15 = vector.load %arg4[%c0_7, %c0_8, %c0_9] : memref<4x1x8xf32, #tpu.memory_space<vmem>>, vector<1x1x8xf32>
    %16 = vector.shape_cast %15 : vector<1x1x8xf32> to vector<1x8xf32>
    %17 = vector.broadcast %16 : vector<1x8xf32> to vector<8x8xf32>
    %18 = arith.addf %14, %17 : vector<8x8xf32>
    %19 = arith.truncf %18 : vector<8x8xf32> to vector<8x8xbf16>
    %c0_10 = arith.constant 0 : index
    %c0_11 = arith.constant 0 : index
    %c0_12 = arith.constant 0 : index
    %20 = vector.load %arg20[%c0_10, %c0_11, %c0_12] : memref<4x8x8xbf16, #tpu.memory_space<vmem>>, vector<1x8x8xbf16>
    %21 = vector.shape_cast %20 : vector<1x8x8xbf16> to vector<8x8xbf16>
    %22 = tpu.transpose %21, [1, 0] : vector<8x8xbf16> -> vector<8x8xbf16>
    %cst_13 = arith.constant dense<0.000000e+00> : vector<8x8xf32>
    %23 = tpu.matmul %19, %22, %cst_13 {dimension_numbers = #tpu.dot_dimension_numbers<[1], [0], [0], [1], [0, 0, 1, 1], [], []>} : vector<8x8xbf16>, vector<8x8xbf16>, vector<8x8xf32> -> vector<8x8xf32>
    %cst_14 = arith.constant dense<0xFF800000> : vector<8xf32>
    %24 = vector.multi_reduction <maximumf>, %23, %cst_14 [1] : vector<8x8xf32> to vector<8xf32>
    %25 = vector.shape_cast %24 : vector<8xf32> to vector<8x1xf32>
    %26 = vector.broadcast %25 : vector<8x1xf32> to vector<8x8xf32>
    %27 = arith.subf %23, %26 : vector<8x8xf32>
    %28 = math.exp %27 : vector<8x8xf32>
    %cst_15 = arith.constant dense<0.000000e+00> : vector<8xf32>
    %29 = vector.multi_reduction <add>, %28, %cst_15 [1] : vector<8x8xf32> to vector<8xf32>
    %30 = vector.shape_cast %29 : vector<8xf32> to vector<8x1xf32>
    %31 = tpu.reciprocal %30 {approx = true} : vector<8x1xf32> -> vector<8x1xf32>
    %32 = vector.broadcast %31 : vector<8x1xf32> to vector<8x8xf32>
    %33 = arith.mulf %28, %32 : vector<8x8xf32>
    %34 = arith.truncf %33 : vector<8x8xf32> to vector<8x8xbf16>
    %c0_16 = arith.constant 0 : index
    %c0_17 = arith.constant 0 : index
    %c0_18 = arith.constant 0 : index
    %35 = vector.load %arg21[%c0_16, %c0_17, %c0_18] : memref<4x8x8xbf16, #tpu.memory_space<vmem>>, vector<1x8x8xbf16>
    %36 = vector.shape_cast %35 : vector<1x8x8xbf16> to vector<8x8xbf16>
    %cst_19 = arith.constant dense<0.000000e+00> : vector<8x8xf32>
    %37 = tpu.matmul %34, %36, %cst_19 {dimension_numbers = #tpu.dot_dimension_numbers<[1], [0], [0], [1], [0, 0, 1, 1], [], []>} : vector<8x8xbf16>, vector<8x8xbf16>, vector<8x8xf32> -> vector<8x8xf32>
    %38 = arith.truncf %37 : vector<8x8xf32> to vector<8x8xbf16>
    %c0_20 = arith.constant 0 : index
    %c0_21 = arith.constant 0 : index
    %c0_22 = arith.constant 0 : index
    %39 = vector.load %arg9[%c0_20, %c0_21, %c0_22] : memref<4x8x32xbf16, #tpu.memory_space<vmem>>, vector<1x8x32xbf16>
    %40 = vector.shape_cast %39 : vector<1x8x32xbf16> to vector<8x32xbf16>
    %cst_23 = arith.constant dense<0.000000e+00> : vector<8x32xf32>
    %41 = tpu.matmul %38, %40, %cst_23 {dimension_numbers = #tpu.dot_dimension_numbers<[1], [0], [0], [1], [0, 0, 1, 1], [], []>} : vector<8x8xbf16>, vector<8x32xbf16>, vector<8x32xf32> -> vector<8x32xf32>
    %42 = arith.addf %11, %41 : vector<8x32xf32>
    %c1 = arith.constant 1 : index
    %c0_24 = arith.constant 0 : index
    %c0_25 = arith.constant 0 : index
    %43 = vector.load %arg3[%c1, %c0_24, %c0_25] : memref<4x32x8xbf16, #tpu.memory_space<vmem>>, vector<1x32x8xbf16>
    %44 = vector.shape_cast %43 : vector<1x32x8xbf16> to vector<32x8xbf16>
    %cst_26 = arith.constant dense<0.000000e+00> : vector<8x8xf32>
    %45 = tpu.matmul %7, %44, %cst_26 {dimension_numbers = #tpu.dot_dimension_numbers<[1], [0], [0], [1], [0, 0, 1, 1], [], []>} : vector<8x32xbf16>, vector<32x8xbf16>, vector<8x8xf32> -> vector<8x8xf32>
    %c1_27 = arith.constant 1 : index
    %c0_28 = arith.constant 0 : index
    %c0_29 = arith.constant 0 : index
    %46 = vector.load %arg4[%c1_27, %c0_28, %c0_29] : memref<4x1x8xf32, #tpu.memory_space<vmem>>, vector<1x1x8xf32>
    %47 = vector.shape_cast %46 : vector<1x1x8xf32> to vector<1x8xf32>
    %48 = vector.broadcast %47 : vector<1x8xf32> to vector<8x8xf32>
    %49 = arith.addf %45, %48 : vector<8x8xf32>
    %50 = arith.truncf %49 : vector<8x8xf32> to vector<8x8xbf16>
    %c1_30 = arith.constant 1 : index
    %c0_31 = arith.constant 0 : index
    %c0_32 = arith.constant 0 : index
    %51 = vector.load %arg20[%c1_30, %c0_31, %c0_32] : memref<4x8x8xbf16, #tpu.memory_space<vmem>>, vector<1x8x8xbf16>
    %52 = vector.shape_cast %51 : vector<1x8x8xbf16> to vector<8x8xbf16>
    %53 = tpu.transpose %52, [1, 0] : vector<8x8xbf16> -> vector<8x8xbf16>
    %cst_33 = arith.constant dense<0.000000e+00> : vector<8x8xf32>
    %54 = tpu.matmul %50, %53, %cst_33 {dimension_numbers = #tpu.dot_dimension_numbers<[1], [0], [0], [1], [0, 0, 1, 1], [], []>} : vector<8x8xbf16>, vector<8x8xbf16>, vector<8x8xf32> -> vector<8x8xf32>
    %cst_34 = arith.constant dense<0xFF800000> : vector<8xf32>
    %55 = vector.multi_reduction <maximumf>, %54, %cst_34 [1] : vector<8x8xf32> to vector<8xf32>
    %56 = vector.shape_cast %55 : vector<8xf32> to vector<8x1xf32>
    %57 = vector.broadcast %56 : vector<8x1xf32> to vector<8x8xf32>
    %58 = arith.subf %54, %57 : vector<8x8xf32>
    %59 = math.exp %58 : vector<8x8xf32>
    %cst_35 = arith.constant dense<0.000000e+00> : vector<8xf32>
    %60 = vector.multi_reduction <add>, %59, %cst_35 [1] : vector<8x8xf32> to vector<8xf32>
    %61 = vector.shape_cast %60 : vector<8xf32> to vector<8x1xf32>
    %62 = tpu.reciprocal %61 {approx = true} : vector<8x1xf32> -> vector<8x1xf32>
    %63 = vector.broadcast %62 : vector<8x1xf32> to vector<8x8xf32>
    %64 = arith.mulf %59, %63 : vector<8x8xf32>
    %65 = arith.truncf %64 : vector<8x8xf32> to vector<8x8xbf16>
    %c1_36 = arith.constant 1 : index
    %c0_37 = arith.constant 0 : index
    %c0_38 = arith.constant 0 : index
    %66 = vector.load %arg21[%c1_36, %c0_37, %c0_38] : memref<4x8x8xbf16, #tpu.memory_space<vmem>>, vector<1x8x8xbf16>
    %67 = vector.shape_cast %66 : vector<1x8x8xbf16> to vector<8x8xbf16>
    %cst_39 = arith.constant dense<0.000000e+00> : vector<8x8xf32>
    %68 = tpu.matmul %65, %67, %cst_39 {dimension_numbers = #tpu.dot_dimension_numbers<[1], [0], [0], [1], [0, 0, 1, 1], [], []>} : vector<8x8xbf16>, vector<8x8xbf16>, vector<8x8xf32> -> vector<8x8xf32>
    %69 = arith.truncf %68 : vector<8x8xf32> to vector<8x8xbf16>
    %c1_40 = arith.constant 1 : index
    %c0_41 = arith.constant 0 : index
    %c0_42 = arith.constant 0 : index
    %70 = vector.load %arg9[%c1_40, %c0_41, %c0_42] : memref<4x8x32xbf16, #tpu.memory_space<vmem>>, vector<1x8x32xbf16>
    %71 = vector.shape_cast %70 : vector<1x8x32xbf16> to vector<8x32xbf16>
    %cst_43 = arith.constant dense<0.000000e+00> : vector<8x32xf32>
    %72 = tpu.matmul %69, %71, %cst_43 {dimension_numbers = #tpu.dot_dimension_numbers<[1], [0], [0], [1], [0, 0, 1, 1], [], []>} : vector<8x8xbf16>, vector<8x32xbf16>, vector<8x32xf32> -> vector<8x32xf32>
    %73 = arith.addf %42, %72 : vector<8x32xf32>
    %c2 = arith.constant 2 : index
    %c0_44 = arith.constant 0 : index
    %c0_45 = arith.constant 0 : index
    %74 = vector.load %arg3[%c2, %c0_44, %c0_45] : memref<4x32x8xbf16, #tpu.memory_space<vmem>>, vector<1x32x8xbf16>
    %75 = vector.shape_cast %74 : vector<1x32x8xbf16> to vector<32x8xbf16>
    %cst_46 = arith.constant dense<0.000000e+00> : vector<8x8xf32>
    %76 = tpu.matmul %7, %75, %cst_46 {dimension_numbers = #tpu.dot_dimension_numbers<[1], [0], [0], [1], [0, 0, 1, 1], [], []>} : vector<8x32xbf16>, vector<32x8xbf16>, vector<8x8xf32> -> vector<8x8xf32>
    %c2_47 = arith.constant 2 : index
    %c0_48 = arith.constant 0 : index
    %c0_49 = arith.constant 0 : index
    %77 = vector.load %arg4[%c2_47, %c0_48, %c0_49] : memref<4x1x8xf32, #tpu.memory_space<vmem>>, vector<1x1x8xf32>
    %78 = vector.shape_cast %77 : vector<1x1x8xf32> to vector<1x8xf32>
    %79 = vector.broadcast %78 : vector<1x8xf32> to vector<8x8xf32>
    %80 = arith.addf %76, %79 : vector<8x8xf32>
    %81 = arith.truncf %80 : vector<8x8xf32> to vector<8x8xbf16>
    %c2_50 = arith.constant 2 : index
    %c0_51 = arith.constant 0 : index
    %c0_52 = arith.constant 0 : index
    %82 = vector.load %arg20[%c2_50, %c0_51, %c0_52] : memref<4x8x8xbf16, #tpu.memory_space<vmem>>, vector<1x8x8xbf16>
    %83 = vector.shape_cast %82 : vector<1x8x8xbf16> to vector<8x8xbf16>
    %84 = tpu.transpose %83, [1, 0] : vector<8x8xbf16> -> vector<8x8xbf16>
    %cst_53 = arith.constant dense<0.000000e+00> : vector<8x8xf32>
    %85 = tpu.matmul %81, %84, %cst_53 {dimension_numbers = #tpu.dot_dimension_numbers<[1], [0], [0], [1], [0, 0, 1, 1], [], []>} : vector<8x8xbf16>, vector<8x8xbf16>, vector<8x8xf32> -> vector<8x8xf32>
    %cst_54 = arith.constant dense<0xFF800000> : vector<8xf32>
    %86 = vector.multi_reduction <maximumf>, %85, %cst_54 [1] : vector<8x8xf32> to vector<8xf32>
    %87 = vector.shape_cast %86 : vector<8xf32> to vector<8x1xf32>
    %88 = vector.broadcast %87 : vector<8x1xf32> to vector<8x8xf32>
    %89 = arith.subf %85, %88 : vector<8x8xf32>
    %90 = math.exp %89 : vector<8x8xf32>
    %cst_55 = arith.constant dense<0.000000e+00> : vector<8xf32>
    %91 = vector.multi_reduction <add>, %90, %cst_55 [1] : vector<8x8xf32> to vector<8xf32>
    %92 = vector.shape_cast %91 : vector<8xf32> to vector<8x1xf32>
    %93 = tpu.reciprocal %92 {approx = true} : vector<8x1xf32> -> vector<8x1xf32>
    %94 = vector.broadcast %93 : vector<8x1xf32> to vector<8x8xf32>
    %95 = arith.mulf %90, %94 : vector<8x8xf32>
    %96 = arith.truncf %95 : vector<8x8xf32> to vector<8x8xbf16>
    %c2_56 = arith.constant 2 : index
    %c0_57 = arith.constant 0 : index
    %c0_58 = arith.constant 0 : index
    %97 = vector.load %arg21[%c2_56, %c0_57, %c0_58] : memref<4x8x8xbf16, #tpu.memory_space<vmem>>, vector<1x8x8xbf16>
    %98 = vector.shape_cast %97 : vector<1x8x8xbf16> to vector<8x8xbf16>
    %cst_59 = arith.constant dense<0.000000e+00> : vector<8x8xf32>
    %99 = tpu.matmul %96, %98, %cst_59 {dimension_numbers = #tpu.dot_dimension_numbers<[1], [0], [0], [1], [0, 0, 1, 1], [], []>} : vector<8x8xbf16>, vector<8x8xbf16>, vector<8x8xf32> -> vector<8x8xf32>
    %100 = arith.truncf %99 : vector<8x8xf32> to vector<8x8xbf16>
    %c2_60 = arith.constant 2 : index
    %c0_61 = arith.constant 0 : index
    %c0_62 = arith.constant 0 : index
    %101 = vector.load %arg9[%c2_60, %c0_61, %c0_62] : memref<4x8x32xbf16, #tpu.memory_space<vmem>>, vector<1x8x32xbf16>
    %102 = vector.shape_cast %101 : vector<1x8x32xbf16> to vector<8x32xbf16>
    %cst_63 = arith.constant dense<0.000000e+00> : vector<8x32xf32>
    %103 = tpu.matmul %100, %102, %cst_63 {dimension_numbers = #tpu.dot_dimension_numbers<[1], [0], [0], [1], [0, 0, 1, 1], [], []>} : vector<8x8xbf16>, vector<8x32xbf16>, vector<8x32xf32> -> vector<8x32xf32>
    %104 = arith.addf %73, %103 : vector<8x32xf32>
    %c3 = arith.constant 3 : index
    %c0_64 = arith.constant 0 : index
    %c0_65 = arith.constant 0 : index
    %105 = vector.load %arg3[%c3, %c0_64, %c0_65] : memref<4x32x8xbf16, #tpu.memory_space<vmem>>, vector<1x32x8xbf16>
    %106 = vector.shape_cast %105 : vector<1x32x8xbf16> to vector<32x8xbf16>
    %cst_66 = arith.constant dense<0.000000e+00> : vector<8x8xf32>
    %107 = tpu.matmul %7, %106, %cst_66 {dimension_numbers = #tpu.dot_dimension_numbers<[1], [0], [0], [1], [0, 0, 1, 1], [], []>} : vector<8x32xbf16>, vector<32x8xbf16>, vector<8x8xf32> -> vector<8x8xf32>
    %c3_67 = arith.constant 3 : index
    %c0_68 = arith.constant 0 : index
    %c0_69 = arith.constant 0 : index
    %108 = vector.load %arg4[%c3_67, %c0_68, %c0_69] : memref<4x1x8xf32, #tpu.memory_space<vmem>>, vector<1x1x8xf32>
    %109 = vector.shape_cast %108 : vector<1x1x8xf32> to vector<1x8xf32>
    %110 = vector.broadcast %109 : vector<1x8xf32> to vector<8x8xf32>
    %111 = arith.addf %107, %110 : vector<8x8xf32>
    %112 = arith.truncf %111 : vector<8x8xf32> to vector<8x8xbf16>
    %c3_70 = arith.constant 3 : index
    %c0_71 = arith.constant 0 : index
    %c0_72 = arith.constant 0 : index
    %113 = vector.load %arg20[%c3_70, %c0_71, %c0_72] : memref<4x8x8xbf16, #tpu.memory_space<vmem>>, vector<1x8x8xbf16>
    %114 = vector.shape_cast %113 : vector<1x8x8xbf16> to vector<8x8xbf16>
    %115 = tpu.transpose %114, [1, 0] : vector<8x8xbf16> -> vector<8x8xbf16>
    %cst_73 = arith.constant dense<0.000000e+00> : vector<8x8xf32>
    %116 = tpu.matmul %112, %115, %cst_73 {dimension_numbers = #tpu.dot_dimension_numbers<[1], [0], [0], [1], [0, 0, 1, 1], [], []>} : vector<8x8xbf16>, vector<8x8xbf16>, vector<8x8xf32> -> vector<8x8xf32>
    %cst_74 = arith.constant dense<0xFF800000> : vector<8xf32>
    %117 = vector.multi_reduction <maximumf>, %116, %cst_74 [1] : vector<8x8xf32> to vector<8xf32>
    %118 = vector.shape_cast %117 : vector<8xf32> to vector<8x1xf32>
    %119 = vector.broadcast %118 : vector<8x1xf32> to vector<8x8xf32>
    %120 = arith.subf %116, %119 : vector<8x8xf32>
    %121 = math.exp %120 : vector<8x8xf32>
    %cst_75 = arith.constant dense<0.000000e+00> : vector<8xf32>
    %122 = vector.multi_reduction <add>, %121, %cst_75 [1] : vector<8x8xf32> to vector<8xf32>
    %123 = vector.shape_cast %122 : vector<8xf32> to vector<8x1xf32>
    %124 = tpu.reciprocal %123 {approx = true} : vector<8x1xf32> -> vector<8x1xf32>
    %125 = vector.broadcast %124 : vector<8x1xf32> to vector<8x8xf32>
    %126 = arith.mulf %121, %125 : vector<8x8xf32>
    %127 = arith.truncf %126 : vector<8x8xf32> to vector<8x8xbf16>
    %c3_76 = arith.constant 3 : index
    %c0_77 = arith.constant 0 : index
    %c0_78 = arith.constant 0 : index
    %128 = vector.load %arg21[%c3_76, %c0_77, %c0_78] : memref<4x8x8xbf16, #tpu.memory_space<vmem>>, vector<1x8x8xbf16>
    %129 = vector.shape_cast %128 : vector<1x8x8xbf16> to vector<8x8xbf16>
    %cst_79 = arith.constant dense<0.000000e+00> : vector<8x8xf32>
    %130 = tpu.matmul %127, %129, %cst_79 {dimension_numbers = #tpu.dot_dimension_numbers<[1], [0], [0], [1], [0, 0, 1, 1], [], []>} : vector<8x8xbf16>, vector<8x8xbf16>, vector<8x8xf32> -> vector<8x8xf32>
    %131 = arith.truncf %130 : vector<8x8xf32> to vector<8x8xbf16>
    %c3_80 = arith.constant 3 : index
    %c0_81 = arith.constant 0 : index
    %c0_82 = arith.constant 0 : index
    %132 = vector.load %arg9[%c3_80, %c0_81, %c0_82] : memref<4x8x32xbf16, #tpu.memory_space<vmem>>, vector<1x8x32xbf16>
    %133 = vector.shape_cast %132 : vector<1x8x32xbf16> to vector<8x32xbf16>
    %cst_83 = arith.constant dense<0.000000e+00> : vector<8x32xf32>
    %134 = tpu.matmul %131, %133, %cst_83 {dimension_numbers = #tpu.dot_dimension_numbers<[1], [0], [0], [1], [0, 0, 1, 1], [], []>} : vector<8x8xbf16>, vector<8x32xbf16>, vector<8x32xf32> -> vector<8x32xf32>
    %135 = arith.addf %104, %134 : vector<8x32xf32>
    %136 = arith.addf %135, %8 : vector<8x32xf32>
    %cst_84 = arith.constant dense<0.000000e+00> : vector<8xf32>
    %137 = vector.multi_reduction <add>, %136, %cst_84 [1] : vector<8x32xf32> to vector<8xf32>
    %138 = vector.shape_cast %137 : vector<8xf32> to vector<8x1xf32>
    %cst_85 = arith.constant 3.200000e+01 : f32
    %139 = vector.broadcast %cst_85 : f32 to vector<8x1xf32>
    %140 = arith.divf %138, %139 : vector<8x1xf32>
    %141 = vector.broadcast %140 : vector<8x1xf32> to vector<8x32xf32>
    %142 = arith.subf %136, %141 : vector<8x32xf32>
    %143 = arith.mulf %142, %142 : vector<8x32xf32>
    %cst_86 = arith.constant dense<0.000000e+00> : vector<8xf32>
    %144 = vector.multi_reduction <add>, %143, %cst_86 [1] : vector<8x32xf32> to vector<8xf32>
    %145 = vector.shape_cast %144 : vector<8xf32> to vector<8x1xf32>
    %cst_87 = arith.constant 3.200000e+01 : f32
    %146 = vector.broadcast %cst_87 : f32 to vector<8x1xf32>
    %147 = arith.divf %145, %146 : vector<8x1xf32>
    %148 = vector.broadcast %140 : vector<8x1xf32> to vector<8x32xf32>
    %149 = arith.subf %136, %148 : vector<8x32xf32>
    %cst_88 = arith.constant 9.99999996E-13 : f32
    %150 = vector.broadcast %cst_88 : f32 to vector<8x1xf32>
    %151 = arith.addf %147, %150 : vector<8x1xf32>
    %152 = math.rsqrt %151 : vector<8x1xf32>
    %153 = vector.broadcast %152 : vector<8x1xf32> to vector<8x32xf32>
    %154 = arith.mulf %149, %153 : vector<8x32xf32>
    %c0_89 = arith.constant 0 : index
    %c0_90 = arith.constant 0 : index
    %155 = vector.load %arg11[%c0_89, %c0_90] : memref<1x32xf32, #tpu.memory_space<vmem>>, vector<1x32xf32>
    %156 = vector.broadcast %155 : vector<1x32xf32> to vector<8x32xf32>
    %157 = arith.mulf %154, %156 : vector<8x32xf32>
    %c0_91 = arith.constant 0 : index
    %c0_92 = arith.constant 0 : index
    %158 = vector.load %arg12[%c0_91, %c0_92] : memref<1x32xf32, #tpu.memory_space<vmem>>, vector<1x32xf32>
    %159 = vector.broadcast %158 : vector<1x32xf32> to vector<8x32xf32>
    %160 = arith.addf %157, %159 : vector<8x32xf32>
    %161 = arith.truncf %160 : vector<8x32xf32> to vector<8x32xbf16>
    %c0_93 = arith.constant 0 : index
    %c0_94 = arith.constant 0 : index
    %162 = vector.load %arg16[%c0_93, %c0_94] : memref<1x32xf32, #tpu.memory_space<vmem>>, vector<1x32xf32>
    %163 = vector.shape_cast %162 : vector<1x32xf32> to vector<1x32xf32>
    %164 = vector.broadcast %163 : vector<1x32xf32> to vector<8x32xf32>
    %c0_95 = arith.constant 0 : index
    %c0_96 = arith.constant 0 : index
    %c0_97 = arith.constant 0 : index
    %165 = vector.load %arg13[%c0_95, %c0_96, %c0_97] : memref<1x32x64xbf16, #tpu.memory_space<vmem>>, vector<1x32x64xbf16>
    %166 = vector.shape_cast %165 : vector<1x32x64xbf16> to vector<32x64xbf16>
    %cst_98 = arith.constant dense<0.000000e+00> : vector<8x64xf32>
    %167 = tpu.matmul %161, %166, %cst_98 {dimension_numbers = #tpu.dot_dimension_numbers<[1], [0], [0], [1], [0, 0, 1, 1], [], []>} : vector<8x32xbf16>, vector<32x64xbf16>, vector<8x64xf32> -> vector<8x64xf32>
    %c0_99 = arith.constant 0 : index
    %c0_100 = arith.constant 0 : index
    %c0_101 = arith.constant 0 : index
    %168 = vector.load %arg14[%c0_99, %c0_100, %c0_101] : memref<1x1x64xf32, #tpu.memory_space<vmem>>, vector<1x1x64xf32>
    %169 = vector.shape_cast %168 : vector<1x1x64xf32> to vector<1x64xf32>
    %170 = vector.broadcast %169 : vector<1x64xf32> to vector<8x64xf32>
    %171 = arith.addf %167, %170 : vector<8x64xf32>
    %cst_102 = arith.constant 0.000000e+00 : f32
    %172 = vector.broadcast %cst_102 : f32 to vector<8x64xf32>
    %173 = arith.maximumf %171, %172 : vector<8x64xf32>
    %174 = arith.truncf %173 : vector<8x64xf32> to vector<8x64xbf16>
    %c0_103 = arith.constant 0 : index
    %c0_104 = arith.constant 0 : index
    %c0_105 = arith.constant 0 : index
    %175 = vector.load %arg15[%c0_103, %c0_104, %c0_105] : memref<1x64x32xbf16, #tpu.memory_space<vmem>>, vector<1x64x32xbf16>
    %176 = vector.shape_cast %175 : vector<1x64x32xbf16> to vector<64x32xbf16>
    %cst_106 = arith.constant dense<0.000000e+00> : vector<8x32xf32>
    %177 = tpu.matmul %174, %176, %cst_106 {dimension_numbers = #tpu.dot_dimension_numbers<[1], [0], [0], [1], [0, 0, 1, 1], [], []>} : vector<8x64xbf16>, vector<64x32xbf16>, vector<8x32xf32> -> vector<8x32xf32>
    %178 = arith.addf %164, %177 : vector<8x32xf32>
    %179 = arith.addf %178, %160 : vector<8x32xf32>
    %cst_107 = arith.constant dense<0.000000e+00> : vector<8xf32>
    %180 = vector.multi_reduction <add>, %179, %cst_107 [1] : vector<8x32xf32> to vector<8xf32>
    %181 = vector.shape_cast %180 : vector<8xf32> to vector<8x1xf32>
    %cst_108 = arith.constant 3.200000e+01 : f32
    %182 = vector.broadcast %cst_108 : f32 to vector<8x1xf32>
    %183 = arith.divf %181, %182 : vector<8x1xf32>
    %184 = vector.broadcast %183 : vector<8x1xf32> to vector<8x32xf32>
    %185 = arith.subf %179, %184 : vector<8x32xf32>
    %186 = arith.mulf %185, %185 : vector<8x32xf32>
    %cst_109 = arith.constant dense<0.000000e+00> : vector<8xf32>
    %187 = vector.multi_reduction <add>, %186, %cst_109 [1] : vector<8x32xf32> to vector<8xf32>
    %188 = vector.shape_cast %187 : vector<8xf32> to vector<8x1xf32>
    %cst_110 = arith.constant 3.200000e+01 : f32
    %189 = vector.broadcast %cst_110 : f32 to vector<8x1xf32>
    %190 = arith.divf %188, %189 : vector<8x1xf32>
    %191 = vector.broadcast %183 : vector<8x1xf32> to vector<8x32xf32>
    %192 = arith.subf %179, %191 : vector<8x32xf32>
    %cst_111 = arith.constant 9.99999996E-13 : f32
    %193 = vector.broadcast %cst_111 : f32 to vector<8x1xf32>
    %194 = arith.addf %190, %193 : vector<8x1xf32>
    %195 = math.rsqrt %194 : vector<8x1xf32>
    %196 = vector.broadcast %195 : vector<8x1xf32> to vector<8x32xf32>
    %197 = arith.mulf %192, %196 : vector<8x32xf32>
    %c0_112 = arith.constant 0 : index
    %c0_113 = arith.constant 0 : index
    %198 = vector.load %arg17[%c0_112, %c0_113] : memref<1x32xf32, #tpu.memory_space<vmem>>, vector<1x32xf32>
    %199 = vector.broadcast %198 : vector<1x32xf32> to vector<8x32xf32>
    %200 = arith.mulf %197, %199 : vector<8x32xf32>
    %c0_114 = arith.constant 0 : index
    %c0_115 = arith.constant 0 : index
    %201 = vector.load %arg18[%c0_114, %c0_115] : memref<1x32xf32, #tpu.memory_space<vmem>>, vector<1x32xf32>
    %202 = vector.broadcast %201 : vector<1x32xf32> to vector<8x32xf32>
    %203 = arith.addf %200, %202 : vector<8x32xf32>
    %c0_116 = arith.constant 0 : index
    %c0_117 = arith.constant 0 : index
    %c0_118 = arith.constant 0 : index
    %204 = vector.load %arg19[%c0_116, %c0_117, %c0_118] : memref<1x8x32xf32, #tpu.memory_space<vmem>>, vector<1x8x32xf32>
    %205 = vector.shape_cast %204 : vector<1x8x32xf32> to vector<8x32xf32>
    %206 = vector.shape_cast %203 : vector<8x32xf32> to vector<1x8x32xf32>
    tpu.vector_store %arg19[%c0_116, %c0_117, %c0_118], %206 {strides = array<i32>} : memref<1x8x32xf32, #tpu.memory_space<vmem>>, vector<1x8x32xf32>,
    return
  }
  func.func @transform_0(%arg0: i32, %arg1: i32) -> (i32, i32, i32) {
    %c0_i32 = arith.constant 0 : i32
    %c0_i32_0 = arith.constant 0 : i32
    %c0_i32_1 = arith.constant 0 : i32
    return %arg0, %c0_i32, %c0_i32_0 : i32, i32, i32
  }
  func.func @transform_1(%arg0: i32, %arg1: i32) -> (i32, i32, i32) {
    %c0_i32 = arith.constant 0 : i32
    %c0_i32_0 = arith.constant 0 : i32
    %c0_i32_1 = arith.constant 0 : i32
    %c0_i32_2 = arith.constant 0 : i32
    return %c0_i32, %c0_i32_0, %c0_i32_1 : i32, i32, i32
  }
  func.func @transform_2(%arg0: i32, %arg1: i32) -> (i32, i32, i32) {
    %c0_i32 = arith.constant 0 : i32
    %c0_i32_0 = arith.constant 0 : i32
    %c0_i32_1 = arith.constant 0 : i32
    %c0_i32_2 = arith.constant 0 : i32
    return %c0_i32, %c0_i32_0, %c0_i32_1 : i32, i32, i32
  }
  func.func @transform_3(%arg0: i32, %arg1: i32) -> (i32, i32, i32) {
    %c0_i32 = arith.constant 0 : i32
    %c0_i32_0 = arith.constant 0 : i32
    %c0_i32_1 = arith.constant 0 : i32
    %c0_i32_2 = arith.constant 0 : i32
    return %c0_i32, %c0_i32_0, %c0_i32_1 : i32, i32, i32
  }
  func.func @transform_4(%arg0: i32, %arg1: i32) -> (i32, i32, i32) {
    %c0_i32 = arith.constant 0 : i32
    %c0_i32_0 = arith.constant 0 : i32
    %c0_i32_1 = arith.constant 0 : i32
    %c0_i32_2 = arith.constant 0 : i32
    return %c0_i32, %c0_i32_0, %c0_i32_1 : i32, i32, i32
  }
  func.func @transform_5(%arg0: i32, %arg1: i32) -> (i32, i32, i32) {
    %c0_i32 = arith.constant 0 : i32
    %c0_i32_0 = arith.constant 0 : i32
    %c0_i32_1 = arith.constant 0 : i32
    %c0_i32_2 = arith.constant 0 : i32
    return %c0_i32, %c0_i32_0, %c0_i32_1 : i32, i32, i32
  }
  func.func @transform_6(%arg0: i32, %arg1: i32) -> (i32, i32, i32) {
    %c0_i32 = arith.constant 0 : i32
    %c0_i32_0 = arith.constant 0 : i32
    %c0_i32_1 = arith.constant 0 : i32
    %c0_i32_2 = arith.constant 0 : i32
    return %c0_i32, %c0_i32_0, %c0_i32_1 : i32, i32, i32
  }
  func.func @transform_7(%arg0: i32, %arg1: i32) -> (i32, i32, i32) {
    %c0_i32 = arith.constant 0 : i32
    %c0_i32_0 = arith.constant 0 : i32
    %c0_i32_1 = arith.constant 0 : i32
    %c0_i32_2 = arith.constant 0 : i32
    return %c0_i32, %c0_i32_0, %c0_i32_1 : i32, i32, i32
  }
  func.func @transform_8(%arg0: i32, %arg1: i32) -> (i32, i32) {
    %c0_i32 = arith.constant 0 : i32
    %c0_i32_0 = arith.constant 0 : i32
    %c0_i32_1 = arith.constant 0 : i32
    return %c0_i32, %c0_i32_0 : i32, i32
  }
  func.func @transform_9(%arg0: i32, %arg1: i32) -> (i32, i32) {
    %c0_i32 = arith.constant 0 : i32
    %c0_i32_0 = arith.constant 0 : i32
    %c0_i32_1 = arith.constant 0 : i32
    return %c0_i32, %c0_i32_0 : i32, i32
  }
  func.func @transform_10(%arg0: i32, %arg1: i32) -> (i32, i32) {
    %c0_i32 = arith.constant 0 : i32
    %c0_i32_0 = arith.constant 0 : i32
    %c0_i32_1 = arith.constant 0 : i32
    return %c0_i32, %c0_i32_0 : i32, i32
  }
  func.func @transform_11(%arg0: i32, %arg1: i32) -> (i32, i32, i32) {
    %c0_i32 = arith.constant 0 : i32
    %c0_i32_0 = arith.constant 0 : i32
    %c0_i32_1 = arith.constant 0 : i32
    %c0_i32_2 = arith.constant 0 : i32
    return %c0_i32, %c0_i32_0, %c0_i32_1 : i32, i32, i32
  }
  func.func @transform_12(%arg0: i32, %arg1: i32) -> (i32, i32, i32) {
    %c0_i32 = arith.constant 0 : i32
    %c0_i32_0 = arith.constant 0 : i32
    %c0_i32_1 = arith.constant 0 : i32
    %c0_i32_2 = arith.constant 0 : i32
    return %c0_i32, %c0_i32_0, %c0_i32_1 : i32, i32, i32
  }
  func.func @transform_13(%arg0: i32, %arg1: i32) -> (i32, i32, i32) {
    %c0_i32 = arith.constant 0 : i32
    %c0_i32_0 = arith.constant 0 : i32
    %c0_i32_1 = arith.constant 0 : i32
    %c0_i32_2 = arith.constant 0 : i32
    return %c0_i32, %c0_i32_0, %c0_i32_1 : i32, i32, i32
  }
  func.func @transform_14(%arg0: i32, %arg1: i32) -> (i32, i32) {
    %c0_i32 = arith.constant 0 : i32
    %c0_i32_0 = arith.constant 0 : i32
    %c0_i32_1 = arith.constant 0 : i32
    return %c0_i32, %c0_i32_0 : i32, i32
  }
  func.func @transform_15(%arg0: i32, %arg1: i32) -> (i32, i32) {
    %c0_i32 = arith.constant 0 : i32
    %c0_i32_0 = arith.constant 0 : i32
    %c0_i32_1 = arith.constant 0 : i32
    return %c0_i32, %c0_i32_0 : i32, i32
  }
  func.func @transform_16(%arg0: i32, %arg1: i32) -> (i32, i32) {
    %c0_i32 = arith.constant 0 : i32
    %c0_i32_0 = arith.constant 0 : i32
    %c0_i32_1 = arith.constant 0 : i32
    return %c0_i32, %c0_i32_0 : i32, i32
  }
  func.func @transform_17(%arg0: i32, %arg1: i32) -> (i32, i32, i32) {
    %c0_i32 = arith.constant 0 : i32
    %c0_i32_0 = arith.constant 0 : i32
    return %arg0, %arg1, %c0_i32 : i32, i32, i32
  }
}

module attributes {stable_mosaic.version = 11 : i64} {
  func.func @_encoder_layer_kernel(%arg0: i32, %arg1: i32, %arg2: memref<1x8x32xbf16, #tpu.memory_space<vmem>>, %arg3: memref<4x32x8xbf16, #tpu.memory_space<vmem>>, %arg4: memref<4x1x8xf32, #tpu.memory_space<vmem>>, %arg5: memref<4x32x8xbf16, #tpu.memory_space<vmem>>, %arg6: memref<4x1x8xf32, #tpu.memory_space<vmem>>, %arg7: memref<4x32x8xbf16, #tpu.memory_space<vmem>>, %arg8: memref<4x1x8xf32, #tpu.memory_space<vmem>>, %arg9: memref<4x8x32xbf16, #tpu.memory_space<vmem>>, %arg10: memref<1x32xf32, #tpu.memory_space<vmem>>, %arg11: memref<1x32xf32, #tpu.memory_space<vmem>>, %arg12: memref<1x32xf32, #tpu.memory_space<vmem>>, %arg13: memref<1x32x64xbf16, #tpu.memory_space<vmem>>, %arg14: memref<1x1x64xf32, #tpu.memory_space<vmem>>, %arg15: memref<1x64x32xbf16, #tpu.memory_space<vmem>>, %arg16: memref<1x32xf32, #tpu.memory_space<vmem>>, %arg17: memref<1x32xf32, #tpu.memory_space<vmem>>, %arg18: memref<1x32xf32, #tpu.memory_space<vmem>>, %arg19: memref<1x8x32xf32, #tpu.memory_space<vmem>>, %arg20: memref<4x8x8xbf16, #tpu.memory_space<vmem>>, %arg21: memref<4x8x8xbf16, #tpu.memory_space<vmem>>) attributes {dimension_semantics = [#tpu.dimension_semantics<parallel>, #tpu.dimension_semantics<arbitrary>], iteration_bounds = array<i64: 2, 1>, scalar_prefetch = 0 : i64, scratch_operands = 2 : i64, tpu.core_type = #tpu.core_type<tc>, window_params = [{transform_indices = @transform_0, window_bounds = array<i64: 1, 8, 32>}, {pipeline_mode = #tpu.pipeline_mode<synchronous>, transform_indices = @transform_1, window_bounds = array<i64: 4, 32, 8>}, {pipeline_mode = #tpu.pipeline_mode<synchronous>, transform_indices = @transform_2, window_bounds = array<i64: 4, 1, 8>}, {pipeline_mode = #tpu.pipeline_mode<synchronous>, transform_indices = @transform_3, window_bounds = array<i64: 4, 32, 8>}, {pipeline_mode = #tpu.pipeline_mode<synchronous>, transform_indices = @transform_4, window_bounds = array<i64: 4, 1, 8>}, {pipeline_mode = #tpu.pipeline_mode<synchronous>, transform_indices = @transform_5, window_bounds = array<i64: 4, 32, 8>}, {pipeline_mode = #tpu.pipeline_mode<synchronous>, transform_indices = @transform_6, window_bounds = array<i64: 4, 1, 8>}, {pipeline_mode = #tpu.pipeline_mode<synchronous>, transform_indices = @transform_7, window_bounds = array<i64: 4, 8, 32>}, {pipeline_mode = #tpu.pipeline_mode<synchronous>, transform_indices = @transform_8, window_bounds = array<i64: 1, 32>}, {pipeline_mode = #tpu.pipeline_mode<synchronous>, transform_indices = @transform_9, window_bounds = array<i64: 1, 32>}, {pipeline_mode = #tpu.pipeline_mode<synchronous>, transform_indices = @transform_10, window_bounds = array<i64: 1, 32>}, {pipeline_mode = #tpu.pipeline_mode<synchronous>, transform_indices = @transform_11, window_bounds = array<i64: 1, 32, 64>}, {pipeline_mode = #tpu.pipeline_mode<synchronous>, transform_indices = @transform_12, window_bounds = array<i64: 1, 1, 64>}, {pipeline_mode = #tpu.pipeline_mode<synchronous>, transform_indices = @transform_13, window_bounds = array<i64: 1, 64, 32>}, {pipeline_mode = #tpu.pipeline_mode<synchronous>, transform_indices = @transform_14, window_bounds = array<i64: 1, 32>}, {pipeline_mode = #tpu.pipeline_mode<synchronous>, transform_indices = @transform_15, window_bounds = array<i64: 1, 32>}, {pipeline_mode = #tpu.pipeline_mode<synchronous>, transform_indices = @transform_16, window_bounds = array<i64: 1, 32>}, {transform_indices = @transform_17, window_bounds = array<i64: 1, 8, 32>}]} {
    %c0_i32 = arith.constant 0 : i32
    %0 = arith.cmpi eq, %arg1, %c0_i32 : i32
    %1 = arith.extui %0 : i1 to i32
    %c0_i32_0 = arith.constant 0 : i32
    %2 = arith.cmpi ne, %1, %c0_i32_0 : i32
    scf.if %2 {
      %c0_119 = arith.constant 0 : index
      %c0_120 = arith.constant 0 : index
      %c0_121 = arith.constant 0 : index
      %207 = vector.load %arg2[%c0_119, %c0_120, %c0_121] : memref<1x8x32xbf16, #tpu.memory_space<vmem>>, vector<1x8x32xbf16>
      %208 = vector.shape_cast %207 : vector<1x8x32xbf16> to vector<8x32xbf16>
      %c0_122 = arith.constant 0 : index
      %c0_123 = arith.constant 0 : index
      %c0_124 = arith.constant 0 : index
      %209 = vector.load %arg5[%c0_122, %c0_123, %c0_124] : memref<4x32x8xbf16, #tpu.memory_space<vmem>>, vector<1x32x8xbf16>
      %210 = vector.shape_cast %209 : vector<1x32x8xbf16> to vector<32x8xbf16>
      %cst_125 = arith.constant dense<0.000000e+00> : vector<8x8xf32>
      %211 = tpu.matmul %208, %210, %cst_125 {dimension_numbers = #tpu.dot_dimension_numbers<[1], [0], [0], [1], [0, 0, 1, 1], [], []>} : vector<8x32xbf16>, vector<32x8xbf16>, vector<8x8xf32> -> vector<8x8xf32>
      %c0_126 = arith.constant 0 : index
      %c0_127 = arith.constant 0 : index
      %c0_128 = arith.constant 0 : index
      %212 = vector.load %arg6[%c0_126, %c0_127, %c0_128] : memref<4x1x8xf32, #tpu.memory_space<vmem>>, vector<1x1x8xf32>
      %213 = vector.shape_cast %212 : vector<1x1x8xf32> to vector<1x8xf32>
      %214 = vector.broadcast %213 : vector<1x8xf32> to vector<8x8xf32>
      %215 = arith.addf %211, %214 : vector<8x8xf32>
      %c0_129 = arith.constant 0 : index
      %c0_130 = arith.constant 0 : index
      %c0_131 = arith.constant 0 : index
      %216 = vector.load %arg7[%c0_129, %c0_130, %c0_131] : memref<4x32x8xbf16, #tpu.memory_space<vmem>>, vector<1x32x8xbf16>
      %217 = vector.shape_cast %216 : vector<1x32x8xbf16> to vector<32x8xbf16>
      %cst_132 = arith.constant dense<0.000000e+00> : vector<8x8xf32>
      %218 = tpu.matmul %208, %217, %cst_132 {dimension_numbers = #tpu.dot_dimension_numbers<[1], [0], [0], [1], [0, 0, 1, 1], [], []>} : vector<8x32xbf16>, vector<32x8xbf16>, vector<8x8xf32> -> vector<8x8xf32>
      %c0_133 = arith.constant 0 : index
      %c0_134 = arith.constant 0 : index
      %c0_135 = arith.constant 0 : index
      %219 = vector.load %arg8[%c0_133, %c0_134, %c0_135] : memref<4x1x8xf32, #tpu.memory_space<vmem>>, vector<1x1x8xf32>
      %220 = vector.shape_cast %219 : vector<1x1x8xf32> to vector<1x8xf32>
      %221 = vector.broadcast %220 : vector<1x8xf32> to vector<8x8xf32>
      %222 = arith.addf %218, %221 : vector<8x8xf32>
      %223 = arith.truncf %215 : vector<8x8xf32> to vector<8x8xbf16>
      %c0_136 = arith.constant 0 : index
      %c0_137 = arith.constant 0 : index
      %c0_138 = arith.constant 0 : index
      %224 = vector.load %arg20[%c0_136, %c0_137, %c0_138] : memref<4x8x8xbf16, #tpu.memory_space<vmem>>, vector<1x8x8xbf16>
      %225 = vector.shape_cast %224 : vector<1x8x8xbf16> to vector<8x8xbf16>
      %226 = vector.shape_cast %223 : vector<8x8xbf16> to vector<1x8x8xbf16>
      tpu.vector_store %arg20[%c0_136, %c0_137, %c0_138], %226 {strides = array<i32>} : memref<4x8x8xbf16, #tpu.memory_space<vmem>>, vector<1x8x8xbf16>,
      %227 = arith.truncf %222 : vector<8x8xf32> to vector<8x8xbf16>
      %c0_139 = arith.constant 0 : index
      %c0_140 = arith.constant 0 : index
      %c0_141 = arith.constant 0 : index
      %228 = vector.load %arg21[%c0_139, %c0_140, %c0_141] : memref<4x8x8xbf16, #tpu.memory_space<vmem>>, vector<1x8x8xbf16>
      %229 = vector.shape_cast %228 : vector<1x8x8xbf16> to vector<8x8xbf16>
      %230 = vector.shape_cast %227 : vector<8x8xbf16> to vector<1x8x8xbf16>
      tpu.vector_store %arg21[%c0_139, %c0_140, %c0_141], %230 {strides = array<i32>} : memref<4x8x8xbf16, #tpu.memory_space<vmem>>, vector<1x8x8xbf16>,
      %c1_142 = arith.constant 1 : index
      %c0_143 = arith.constant 0 : index
      %c0_144 = arith.constant 0 : index
      %231 = vector.load %arg5[%c1_142, %c0_143, %c0_144] : memref<4x32x8xbf16, #tpu.memory_space<vmem>>, vector<1x32x8xbf16>
      %232 = vector.shape_cast %231 : vector<1x32x8xbf16> to vector<32x8xbf16>
      %cst_145 = arith.constant dense<0.000000e+00> : vector<8x8xf32>
      %233 = tpu.matmul %208, %232, %cst_145 {dimension_numbers = #tpu.dot_dimension_numbers<[1], [0], [0], [1], [0, 0, 1, 1], [], []>} : vector<8x32xbf16>, vector<32x8xbf16>, vector<8x8xf32> -> vector<8x8xf32>
      %c1_146 = arith.constant 1 : index
      %c0_147 = arith.constant 0 : index
      %c0_148 = arith.constant 0 : index
      %234 = vector.load %arg6[%c1_146, %c0_147, %c0_148] : memref<4x1x8xf32, #tpu.memory_space<vmem>>, vector<1x1x8xf32>
      %235 = vector.shape_cast %234 : vector<1x1x8xf32> to vector<1x8xf32>
      %236 = vector.broadcast %235 : vector<1x8xf32> to vector<8x8xf32>
      %237 = arith.addf %233, %236 : vector<8x8xf32>
      %c1_149 = arith.constant 1 : index
      %c0_150 = arith.constant 0 : index
      %c0_151 = arith.constant 0 : index
      %238 = vector.load %arg7[%c1_149, %c0_150, %c0_151] : memref<4x32x8xbf16, #tpu.memory_space<vmem>>, vector<1x32x8xbf16>
      %239 = vector.shape_cast %238 : vector<1x32x8xbf16> to vector<32x8xbf16>
      %cst_152 = arith.constant dense<0.000000e+00> : vector<8x8xf32>
      %240 = tpu.matmul %208, %239, %cst_152 {dimension_numbers = #tpu.dot_dimension_numbers<[1], [0], [0], [1], [0, 0, 1, 1], [], []>} : vector<8x32xbf16>, vector<32x8xbf16>, vector<8x8xf32> -> vector<8x8xf32>
      %c1_153 = arith.constant 1 : index
      %c0_154 = arith.constant 0 : index
      %c0_155 = arith.constant 0 : index
      %241 = vector.load %arg8[%c1_153, %c0_154, %c0_155] : memref<4x1x8xf32, #tpu.memory_space<vmem>>, vector<1x1x8xf32>
      %242 = vector.shape_cast %241 : vector<1x1x8xf32> to vector<1x8xf32>
      %243 = vector.broadcast %242 : vector<1x8xf32> to vector<8x8xf32>
      %244 = arith.addf %240, %243 : vector<8x8xf32>
      %245 = arith.truncf %237 : vector<8x8xf32> to vector<8x8xbf16>
      %c1_156 = arith.constant 1 : index
      %c0_157 = arith.constant 0 : index
      %c0_158 = arith.constant 0 : index
      %246 = vector.load %arg20[%c1_156, %c0_157, %c0_158] : memref<4x8x8xbf16, #tpu.memory_space<vmem>>, vector<1x8x8xbf16>
      %247 = vector.shape_cast %246 : vector<1x8x8xbf16> to vector<8x8xbf16>
      %248 = vector.shape_cast %245 : vector<8x8xbf16> to vector<1x8x8xbf16>
      tpu.vector_store %arg20[%c1_156, %c0_157, %c0_158], %248 {strides = array<i32>} : memref<4x8x8xbf16, #tpu.memory_space<vmem>>, vector<1x8x8xbf16>,
      %249 = arith.truncf %244 : vector<8x8xf32> to vector<8x8xbf16>
      %c1_159 = arith.constant 1 : index
      %c0_160 = arith.constant 0 : index
      %c0_161 = arith.constant 0 : index
      %250 = vector.load %arg21[%c1_159, %c0_160, %c0_161] : memref<4x8x8xbf16, #tpu.memory_space<vmem>>, vector<1x8x8xbf16>
      %251 = vector.shape_cast %250 : vector<1x8x8xbf16> to vector<8x8xbf16>
      %252 = vector.shape_cast %249 : vector<8x8xbf16> to vector<1x8x8xbf16>
      tpu.vector_store %arg21[%c1_159, %c0_160, %c0_161], %252 {strides = array<i32>} : memref<4x8x8xbf16, #tpu.memory_space<vmem>>, vector<1x8x8xbf16>,
      %c2_162 = arith.constant 2 : index
      %c0_163 = arith.constant 0 : index
      %c0_164 = arith.constant 0 : index
      %253 = vector.load %arg5[%c2_162, %c0_163, %c0_164] : memref<4x32x8xbf16, #tpu.memory_space<vmem>>, vector<1x32x8xbf16>
      %254 = vector.shape_cast %253 : vector<1x32x8xbf16> to vector<32x8xbf16>
      %cst_165 = arith.constant dense<0.000000e+00> : vector<8x8xf32>
      %255 = tpu.matmul %208, %254, %cst_165 {dimension_numbers = #tpu.dot_dimension_numbers<[1], [0], [0], [1], [0, 0, 1, 1], [], []>} : vector<8x32xbf16>, vector<32x8xbf16>, vector<8x8xf32> -> vector<8x8xf32>
      %c2_166 = arith.constant 2 : index
      %c0_167 = arith.constant 0 : index
      %c0_168 = arith.constant 0 : index
      %256 = vector.load %arg6[%c2_166, %c0_167, %c0_168] : memref<4x1x8xf32, #tpu.memory_space<vmem>>, vector<1x1x8xf32>
      %257 = vector.shape_cast %256 : vector<1x1x8xf32> to vector<1x8xf32>
      %258 = vector.broadcast %257 : vector<1x8xf32> to vector<8x8xf32>
      %259 = arith.addf %255, %258 : vector<8x8xf32>
      %c2_169 = arith.constant 2 : index
      %c0_170 = arith.constant 0 : index
      %c0_171 = arith.constant 0 : index
      %260 = vector.load %arg7[%c2_169, %c0_170, %c0_171] : memref<4x32x8xbf16, #tpu.memory_space<vmem>>, vector<1x32x8xbf16>
      %261 = vector.shape_cast %260 : vector<1x32x8xbf16> to vector<32x8xbf16>
      %cst_172 = arith.constant dense<0.000000e+00> : vector<8x8xf32>
      %262 = tpu.matmul %208, %261, %cst_172 {dimension_numbers = #tpu.dot_dimension_numbers<[1], [0], [0], [1], [0, 0, 1, 1], [], []>} : vector<8x32xbf16>, vector<32x8xbf16>, vector<8x8xf32> -> vector<8x8xf32>
      %c2_173 = arith.constant 2 : index
      %c0_174 = arith.constant 0 : index
      %c0_175 = arith.constant 0 : index
      %263 = vector.load %arg8[%c2_173, %c0_174, %c0_175] : memref<4x1x8xf32, #tpu.memory_space<vmem>>, vector<1x1x8xf32>
      %264 = vector.shape_cast %263 : vector<1x1x8xf32> to vector<1x8xf32>
      %265 = vector.broadcast %264 : vector<1x8xf32> to vector<8x8xf32>
      %266 = arith.addf %262, %265 : vector<8x8xf32>
      %267 = arith.truncf %259 : vector<8x8xf32> to vector<8x8xbf16>
      %c2_176 = arith.constant 2 : index
      %c0_177 = arith.constant 0 : index
      %c0_178 = arith.constant 0 : index
      %268 = vector.load %arg20[%c2_176, %c0_177, %c0_178] : memref<4x8x8xbf16, #tpu.memory_space<vmem>>, vector<1x8x8xbf16>
      %269 = vector.shape_cast %268 : vector<1x8x8xbf16> to vector<8x8xbf16>
      %270 = vector.shape_cast %267 : vector<8x8xbf16> to vector<1x8x8xbf16>
      tpu.vector_store %arg20[%c2_176, %c0_177, %c0_178], %270 {strides = array<i32>} : memref<4x8x8xbf16, #tpu.memory_space<vmem>>, vector<1x8x8xbf16>,
      %271 = arith.truncf %266 : vector<8x8xf32> to vector<8x8xbf16>
      %c2_179 = arith.constant 2 : index
      %c0_180 = arith.constant 0 : index
      %c0_181 = arith.constant 0 : index
      %272 = vector.load %arg21[%c2_179, %c0_180, %c0_181] : memref<4x8x8xbf16, #tpu.memory_space<vmem>>, vector<1x8x8xbf16>
      %273 = vector.shape_cast %272 : vector<1x8x8xbf16> to vector<8x8xbf16>
      %274 = vector.shape_cast %271 : vector<8x8xbf16> to vector<1x8x8xbf16>
      tpu.vector_store %arg21[%c2_179, %c0_180, %c0_181], %274 {strides = array<i32>} : memref<4x8x8xbf16, #tpu.memory_space<vmem>>, vector<1x8x8xbf16>,
      %c3_182 = arith.constant 3 : index
      %c0_183 = arith.constant 0 : index
      %c0_184 = arith.constant 0 : index
      %275 = vector.load %arg5[%c3_182, %c0_183, %c0_184] : memref<4x32x8xbf16, #tpu.memory_space<vmem>>, vector<1x32x8xbf16>
      %276 = vector.shape_cast %275 : vector<1x32x8xbf16> to vector<32x8xbf16>
      %cst_185 = arith.constant dense<0.000000e+00> : vector<8x8xf32>
      %277 = tpu.matmul %208, %276, %cst_185 {dimension_numbers = #tpu.dot_dimension_numbers<[1], [0], [0], [1], [0, 0, 1, 1], [], []>} : vector<8x32xbf16>, vector<32x8xbf16>, vector<8x8xf32> -> vector<8x8xf32>
      %c3_186 = arith.constant 3 : index
      %c0_187 = arith.constant 0 : index
      %c0_188 = arith.constant 0 : index
      %278 = vector.load %arg6[%c3_186, %c0_187, %c0_188] : memref<4x1x8xf32, #tpu.memory_space<vmem>>, vector<1x1x8xf32>
      %279 = vector.shape_cast %278 : vector<1x1x8xf32> to vector<1x8xf32>
      %280 = vector.broadcast %279 : vector<1x8xf32> to vector<8x8xf32>
      %281 = arith.addf %277, %280 : vector<8x8xf32>
      %c3_189 = arith.constant 3 : index
      %c0_190 = arith.constant 0 : index
      %c0_191 = arith.constant 0 : index
      %282 = vector.load %arg7[%c3_189, %c0_190, %c0_191] : memref<4x32x8xbf16, #tpu.memory_space<vmem>>, vector<1x32x8xbf16>
      %283 = vector.shape_cast %282 : vector<1x32x8xbf16> to vector<32x8xbf16>
      %cst_192 = arith.constant dense<0.000000e+00> : vector<8x8xf32>
      %284 = tpu.matmul %208, %283, %cst_192 {dimension_numbers = #tpu.dot_dimension_numbers<[1], [0], [0], [1], [0, 0, 1, 1], [], []>} : vector<8x32xbf16>, vector<32x8xbf16>, vector<8x8xf32> -> vector<8x8xf32>
      %c3_193 = arith.constant 3 : index
      %c0_194 = arith.constant 0 : index
      %c0_195 = arith.constant 0 : index
      %285 = vector.load %arg8[%c3_193, %c0_194, %c0_195] : memref<4x1x8xf32, #tpu.memory_space<vmem>>, vector<1x1x8xf32>
      %286 = vector.shape_cast %285 : vector<1x1x8xf32> to vector<1x8xf32>
      %287 = vector.broadcast %286 : vector<1x8xf32> to vector<8x8xf32>
      %288 = arith.addf %284, %287 : vector<8x8xf32>
      %289 = arith.truncf %281 : vector<8x8xf32> to vector<8x8xbf16>
      %c3_196 = arith.constant 3 : index
      %c0_197 = arith.constant 0 : index
      %c0_198 = arith.constant 0 : index
      %290 = vector.load %arg20[%c3_196, %c0_197, %c0_198] : memref<4x8x8xbf16, #tpu.memory_space<vmem>>, vector<1x8x8xbf16>
      %291 = vector.shape_cast %290 : vector<1x8x8xbf16> to vector<8x8xbf16>
      %292 = vector.shape_cast %289 : vector<8x8xbf16> to vector<1x8x8xbf16>
      tpu.vector_store %arg20[%c3_196, %c0_197, %c0_198], %292 {strides = array<i32>} : memref<4x8x8xbf16, #tpu.memory_space<vmem>>, vector<1x8x8xbf16>,
      %293 = arith.truncf %288 : vector<8x8xf32> to vector<8x8xbf16>
      %c3_199 = arith.constant 3 : index
      %c0_200 = arith.constant 0 : index
      %c0_201 = arith.constant 0 : index
      %294 = vector.load %arg21[%c3_199, %c0_200, %c0_201] : memref<4x8x8xbf16, #tpu.memory_space<vmem>>, vector<1x8x8xbf16>
      %295 = vector.shape_cast %294 : vector<1x8x8xbf16> to vector<8x8xbf16>
      %296 = vector.shape_cast %293 : vector<8x8xbf16> to vector<1x8x8xbf16>
      tpu.vector_store %arg21[%c3_199, %c0_200, %c0_201], %296 {strides = array<i32>} : memref<4x8x8xbf16, #tpu.memory_space<vmem>>, vector<1x8x8xbf16>,
    } else {
    }
    %c8_i32 = arith.constant 8 : i32
    %3 = arith.muli %arg1, %c8_i32 : i32
    %4 = tpu.assume_multiple %3, 8 : i32
    %c0 = arith.constant 0 : index
    %5 = arith.index_cast %4 : i32 to index
    %c0_1 = arith.constant 0 : index
    %6 = vector.load %arg2[%c0, %5, %c0_1] : memref<1x8x32xbf16, #tpu.memory_space<vmem>>, vector<1x8x32xbf16>
    %7 = vector.shape_cast %6 : vector<1x8x32xbf16> to vector<8x32xbf16>
    %8 = arith.extf %7 : vector<8x32xbf16> to vector<8x32xf32>
    %c0_2 = arith.constant 0 : index
    %c0_3 = arith.constant 0 : index
    %9 = vector.load %arg10[%c0_2, %c0_3] : memref<1x32xf32, #tpu.memory_space<vmem>>, vector<1x32xf32>
    %10 = vector.shape_cast %9 : vector<1x32xf32> to vector<1x32xf32>
    %11 = vector.broadcast %10 : vector<1x32xf32> to vector<8x32xf32>
    %c0_4 = arith.constant 0 : index
    %c0_5 = arith.constant 0 : index
    %c0_6 = arith.constant 0 : index
    %12 = vector.load %arg3[%c0_4, %c0_5, %c0_6] : memref<4x32x8xbf16, #tpu.memory_space<vmem>>, vector<1x32x8xbf16>
    %13 = vector.shape_cast %12 : vector<1x32x8xbf16> to vector<32x8xbf16>
    %cst = arith.constant dense<0.000000e+00> : vector<8x8xf32>
    %14 = tpu.matmul %7, %13, %cst {dimension_numbers = #tpu.dot_dimension_numbers<[1], [0], [0], [1], [0, 0, 1, 1], [], []>} : vector<8x32xbf16>, vector<32x8xbf16>, vector<8x8xf32> -> vector<8x8xf32>
    %c0_7 = arith.constant 0 : index
    %c0_8 = arith.constant 0 : index
    %c0_9 = arith.constant 0 : index
    %15 = vector.load %arg4[%c0_7, %c0_8, %c0_9] : memref<4x1x8xf32, #tpu.memory_space<vmem>>, vector<1x1x8xf32>
    %16 = vector.shape_cast %15 : vector<1x1x8xf32> to vector<1x8xf32>
    %17 = vector.broadcast %16 : vector<1x8xf32> to vector<8x8xf32>
    %18 = arith.addf %14, %17 : vector<8x8xf32>
    %19 = arith.truncf %18 : vector<8x8xf32> to vector<8x8xbf16>
    %c0_10 = arith.constant 0 : index
    %c0_11 = arith.constant 0 : index
    %c0_12 = arith.constant 0 : index
    %20 = vector.load %arg20[%c0_10, %c0_11, %c0_12] : memref<4x8x8xbf16, #tpu.memory_space<vmem>>, vector<1x8x8xbf16>
    %21 = vector.shape_cast %20 : vector<1x8x8xbf16> to vector<8x8xbf16>
    %22 = tpu.transpose %21, [1, 0] : vector<8x8xbf16> -> vector<8x8xbf16>
    %cst_13 = arith.constant dense<0.000000e+00> : vector<8x8xf32>
    %23 = tpu.matmul %19, %22, %cst_13 {dimension_numbers = #tpu.dot_dimension_numbers<[1], [0], [0], [1], [0, 0, 1, 1], [], []>} : vector<8x8xbf16>, vector<8x8xbf16>, vector<8x8xf32> -> vector<8x8xf32>
    %cst_14 = arith.constant dense<0xFF800000> : vector<8xf32>
    %24 = vector.multi_reduction <maximumf>, %23, %cst_14 [1] : vector<8x8xf32> to vector<8xf32>
    %25 = vector.shape_cast %24 : vector<8xf32> to vector<8x1xf32>
    %26 = vector.broadcast %25 : vector<8x1xf32> to vector<8x8xf32>
    %27 = arith.subf %23, %26 : vector<8x8xf32>
    %28 = math.exp %27 : vector<8x8xf32>
    %cst_15 = arith.constant dense<0.000000e+00> : vector<8xf32>
    %29 = vector.multi_reduction <add>, %28, %cst_15 [1] : vector<8x8xf32> to vector<8xf32>
    %30 = vector.shape_cast %29 : vector<8xf32> to vector<8x1xf32>
    %31 = tpu.reciprocal %30 {approx = true} : vector<8x1xf32> -> vector<8x1xf32>
    %32 = vector.broadcast %31 : vector<8x1xf32> to vector<8x8xf32>
    %33 = arith.mulf %28, %32 : vector<8x8xf32>
    %34 = arith.truncf %33 : vector<8x8xf32> to vector<8x8xbf16>
    %c0_16 = arith.constant 0 : index
    %c0_17 = arith.constant 0 : index
    %c0_18 = arith.constant 0 : index
    %35 = vector.load %arg21[%c0_16, %c0_17, %c0_18] : memref<4x8x8xbf16, #tpu.memory_space<vmem>>, vector<1x8x8xbf16>
    %36 = vector.shape_cast %35 : vector<1x8x8xbf16> to vector<8x8xbf16>
    %cst_19 = arith.constant dense<0.000000e+00> : vector<8x8xf32>
    %37 = tpu.matmul %34, %36, %cst_19 {dimension_numbers = #tpu.dot_dimension_numbers<[1], [0], [0], [1], [0, 0, 1, 1], [], []>} : vector<8x8xbf16>, vector<8x8xbf16>, vector<8x8xf32> -> vector<8x8xf32>
    %38 = arith.truncf %37 : vector<8x8xf32> to vector<8x8xbf16>
    %c0_20 = arith.constant 0 : index
    %c0_21 = arith.constant 0 : index
    %c0_22 = arith.constant 0 : index
    %39 = vector.load %arg9[%c0_20, %c0_21, %c0_22] : memref<4x8x32xbf16, #tpu.memory_space<vmem>>, vector<1x8x32xbf16>
    %40 = vector.shape_cast %39 : vector<1x8x32xbf16> to vector<8x32xbf16>
    %cst_23 = arith.constant dense<0.000000e+00> : vector<8x32xf32>
    %41 = tpu.matmul %38, %40, %cst_23 {dimension_numbers = #tpu.dot_dimension_numbers<[1], [0], [0], [1], [0, 0, 1, 1], [], []>} : vector<8x8xbf16>, vector<8x32xbf16>, vector<8x32xf32> -> vector<8x32xf32>
    %42 = arith.addf %11, %41 : vector<8x32xf32>
    %c1 = arith.constant 1 : index
    %c0_24 = arith.constant 0 : index
    %c0_25 = arith.constant 0 : index
    %43 = vector.load %arg3[%c1, %c0_24, %c0_25] : memref<4x32x8xbf16, #tpu.memory_space<vmem>>, vector<1x32x8xbf16>
    %44 = vector.shape_cast %43 : vector<1x32x8xbf16> to vector<32x8xbf16>
    %cst_26 = arith.constant dense<0.000000e+00> : vector<8x8xf32>
    %45 = tpu.matmul %7, %44, %cst_26 {dimension_numbers = #tpu.dot_dimension_numbers<[1], [0], [0], [1], [0, 0, 1, 1], [], []>} : vector<8x32xbf16>, vector<32x8xbf16>, vector<8x8xf32> -> vector<8x8xf32>
    %c1_27 = arith.constant 1 : index
    %c0_28 = arith.constant 0 : index
    %c0_29 = arith.constant 0 : index
    %46 = vector.load %arg4[%c1_27, %c0_28, %c0_29] : memref<4x1x8xf32, #tpu.memory_space<vmem>>, vector<1x1x8xf32>
    %47 = vector.shape_cast %46 : vector<1x1x8xf32> to vector<1x8xf32>
    %48 = vector.broadcast %47 : vector<1x8xf32> to vector<8x8xf32>
    %49 = arith.addf %45, %48 : vector<8x8xf32>
    %50 = arith.truncf %49 : vector<8x8xf32> to vector<8x8xbf16>
    %c1_30 = arith.constant 1 : index
    %c0_31 = arith.constant 0 : index
    %c0_32 = arith.constant 0 : index
    %51 = vector.load %arg20[%c1_30, %c0_31, %c0_32] : memref<4x8x8xbf16, #tpu.memory_space<vmem>>, vector<1x8x8xbf16>
    %52 = vector.shape_cast %51 : vector<1x8x8xbf16> to vector<8x8xbf16>
    %53 = tpu.transpose %52, [1, 0] : vector<8x8xbf16> -> vector<8x8xbf16>
    %cst_33 = arith.constant dense<0.000000e+00> : vector<8x8xf32>
    %54 = tpu.matmul %50, %53, %cst_33 {dimension_numbers = #tpu.dot_dimension_numbers<[1], [0], [0], [1], [0, 0, 1, 1], [], []>} : vector<8x8xbf16>, vector<8x8xbf16>, vector<8x8xf32> -> vector<8x8xf32>
    %cst_34 = arith.constant dense<0xFF800000> : vector<8xf32>
    %55 = vector.multi_reduction <maximumf>, %54, %cst_34 [1] : vector<8x8xf32> to vector<8xf32>
    %56 = vector.shape_cast %55 : vector<8xf32> to vector<8x1xf32>
    %57 = vector.broadcast %56 : vector<8x1xf32> to vector<8x8xf32>
    %58 = arith.subf %54, %57 : vector<8x8xf32>
    %59 = math.exp %58 : vector<8x8xf32>
    %cst_35 = arith.constant dense<0.000000e+00> : vector<8xf32>
    %60 = vector.multi_reduction <add>, %59, %cst_35 [1] : vector<8x8xf32> to vector<8xf32>
    %61 = vector.shape_cast %60 : vector<8xf32> to vector<8x1xf32>
    %62 = tpu.reciprocal %61 {approx = true} : vector<8x1xf32> -> vector<8x1xf32>
    %63 = vector.broadcast %62 : vector<8x1xf32> to vector<8x8xf32>
    %64 = arith.mulf %59, %63 : vector<8x8xf32>
    %65 = arith.truncf %64 : vector<8x8xf32> to vector<8x8xbf16>
    %c1_36 = arith.constant 1 : index
    %c0_37 = arith.constant 0 : index
    %c0_38 = arith.constant 0 : index
    %66 = vector.load %arg21[%c1_36, %c0_37, %c0_38] : memref<4x8x8xbf16, #tpu.memory_space<vmem>>, vector<1x8x8xbf16>
    %67 = vector.shape_cast %66 : vector<1x8x8xbf16> to vector<8x8xbf16>
    %cst_39 = arith.constant dense<0.000000e+00> : vector<8x8xf32>
    %68 = tpu.matmul %65, %67, %cst_39 {dimension_numbers = #tpu.dot_dimension_numbers<[1], [0], [0], [1], [0, 0, 1, 1], [], []>} : vector<8x8xbf16>, vector<8x8xbf16>, vector<8x8xf32> -> vector<8x8xf32>
    %69 = arith.truncf %68 : vector<8x8xf32> to vector<8x8xbf16>
    %c1_40 = arith.constant 1 : index
    %c0_41 = arith.constant 0 : index
    %c0_42 = arith.constant 0 : index
    %70 = vector.load %arg9[%c1_40, %c0_41, %c0_42] : memref<4x8x32xbf16, #tpu.memory_space<vmem>>, vector<1x8x32xbf16>
    %71 = vector.shape_cast %70 : vector<1x8x32xbf16> to vector<8x32xbf16>
    %cst_43 = arith.constant dense<0.000000e+00> : vector<8x32xf32>
    %72 = tpu.matmul %69, %71, %cst_43 {dimension_numbers = #tpu.dot_dimension_numbers<[1], [0], [0], [1], [0, 0, 1, 1], [], []>} : vector<8x8xbf16>, vector<8x32xbf16>, vector<8x32xf32> -> vector<8x32xf32>
    %73 = arith.addf %42, %72 : vector<8x32xf32>
    %c2 = arith.constant 2 : index
    %c0_44 = arith.constant 0 : index
    %c0_45 = arith.constant 0 : index
    %74 = vector.load %arg3[%c2, %c0_44, %c0_45] : memref<4x32x8xbf16, #tpu.memory_space<vmem>>, vector<1x32x8xbf16>
    %75 = vector.shape_cast %74 : vector<1x32x8xbf16> to vector<32x8xbf16>
    %cst_46 = arith.constant dense<0.000000e+00> : vector<8x8xf32>
    %76 = tpu.matmul %7, %75, %cst_46 {dimension_numbers = #tpu.dot_dimension_numbers<[1], [0], [0], [1], [0, 0, 1, 1], [], []>} : vector<8x32xbf16>, vector<32x8xbf16>, vector<8x8xf32> -> vector<8x8xf32>
    %c2_47 = arith.constant 2 : index
    %c0_48 = arith.constant 0 : index
    %c0_49 = arith.constant 0 : index
    %77 = vector.load %arg4[%c2_47, %c0_48, %c0_49] : memref<4x1x8xf32, #tpu.memory_space<vmem>>, vector<1x1x8xf32>
    %78 = vector.shape_cast %77 : vector<1x1x8xf32> to vector<1x8xf32>
    %79 = vector.broadcast %78 : vector<1x8xf32> to vector<8x8xf32>
    %80 = arith.addf %76, %79 : vector<8x8xf32>
    %81 = arith.truncf %80 : vector<8x8xf32> to vector<8x8xbf16>
    %c2_50 = arith.constant 2 : index
    %c0_51 = arith.constant 0 : index
    %c0_52 = arith.constant 0 : index
    %82 = vector.load %arg20[%c2_50, %c0_51, %c0_52] : memref<4x8x8xbf16, #tpu.memory_space<vmem>>, vector<1x8x8xbf16>
    %83 = vector.shape_cast %82 : vector<1x8x8xbf16> to vector<8x8xbf16>
    %84 = tpu.transpose %83, [1, 0] : vector<8x8xbf16> -> vector<8x8xbf16>
    %cst_53 = arith.constant dense<0.000000e+00> : vector<8x8xf32>
    %85 = tpu.matmul %81, %84, %cst_53 {dimension_numbers = #tpu.dot_dimension_numbers<[1], [0], [0], [1], [0, 0, 1, 1], [], []>} : vector<8x8xbf16>, vector<8x8xbf16>, vector<8x8xf32> -> vector<8x8xf32>
    %cst_54 = arith.constant dense<0xFF800000> : vector<8xf32>
    %86 = vector.multi_reduction <maximumf>, %85, %cst_54 [1] : vector<8x8xf32> to vector<8xf32>
    %87 = vector.shape_cast %86 : vector<8xf32> to vector<8x1xf32>
    %88 = vector.broadcast %87 : vector<8x1xf32> to vector<8x8xf32>
    %89 = arith.subf %85, %88 : vector<8x8xf32>
    %90 = math.exp %89 : vector<8x8xf32>
    %cst_55 = arith.constant dense<0.000000e+00> : vector<8xf32>
    %91 = vector.multi_reduction <add>, %90, %cst_55 [1] : vector<8x8xf32> to vector<8xf32>
    %92 = vector.shape_cast %91 : vector<8xf32> to vector<8x1xf32>
    %93 = tpu.reciprocal %92 {approx = true} : vector<8x1xf32> -> vector<8x1xf32>
    %94 = vector.broadcast %93 : vector<8x1xf32> to vector<8x8xf32>
    %95 = arith.mulf %90, %94 : vector<8x8xf32>
    %96 = arith.truncf %95 : vector<8x8xf32> to vector<8x8xbf16>
    %c2_56 = arith.constant 2 : index
    %c0_57 = arith.constant 0 : index
    %c0_58 = arith.constant 0 : index
    %97 = vector.load %arg21[%c2_56, %c0_57, %c0_58] : memref<4x8x8xbf16, #tpu.memory_space<vmem>>, vector<1x8x8xbf16>
    %98 = vector.shape_cast %97 : vector<1x8x8xbf16> to vector<8x8xbf16>
    %cst_59 = arith.constant dense<0.000000e+00> : vector<8x8xf32>
    %99 = tpu.matmul %96, %98, %cst_59 {dimension_numbers = #tpu.dot_dimension_numbers<[1], [0], [0], [1], [0, 0, 1, 1], [], []>} : vector<8x8xbf16>, vector<8x8xbf16>, vector<8x8xf32> -> vector<8x8xf32>
    %100 = arith.truncf %99 : vector<8x8xf32> to vector<8x8xbf16>
    %c2_60 = arith.constant 2 : index
    %c0_61 = arith.constant 0 : index
    %c0_62 = arith.constant 0 : index
    %101 = vector.load %arg9[%c2_60, %c0_61, %c0_62] : memref<4x8x32xbf16, #tpu.memory_space<vmem>>, vector<1x8x32xbf16>
    %102 = vector.shape_cast %101 : vector<1x8x32xbf16> to vector<8x32xbf16>
    %cst_63 = arith.constant dense<0.000000e+00> : vector<8x32xf32>
    %103 = tpu.matmul %100, %102, %cst_63 {dimension_numbers = #tpu.dot_dimension_numbers<[1], [0], [0], [1], [0, 0, 1, 1], [], []>} : vector<8x8xbf16>, vector<8x32xbf16>, vector<8x32xf32> -> vector<8x32xf32>
    %104 = arith.addf %73, %103 : vector<8x32xf32>
    %c3 = arith.constant 3 : index
    %c0_64 = arith.constant 0 : index
    %c0_65 = arith.constant 0 : index
    %105 = vector.load %arg3[%c3, %c0_64, %c0_65] : memref<4x32x8xbf16, #tpu.memory_space<vmem>>, vector<1x32x8xbf16>
    %106 = vector.shape_cast %105 : vector<1x32x8xbf16> to vector<32x8xbf16>
    %cst_66 = arith.constant dense<0.000000e+00> : vector<8x8xf32>
    %107 = tpu.matmul %7, %106, %cst_66 {dimension_numbers = #tpu.dot_dimension_numbers<[1], [0], [0], [1], [0, 0, 1, 1], [], []>} : vector<8x32xbf16>, vector<32x8xbf16>, vector<8x8xf32> -> vector<8x8xf32>
    %c3_67 = arith.constant 3 : index
    %c0_68 = arith.constant 0 : index
    %c0_69 = arith.constant 0 : index
    %108 = vector.load %arg4[%c3_67, %c0_68, %c0_69] : memref<4x1x8xf32, #tpu.memory_space<vmem>>, vector<1x1x8xf32>
    %109 = vector.shape_cast %108 : vector<1x1x8xf32> to vector<1x8xf32>
    %110 = vector.broadcast %109 : vector<1x8xf32> to vector<8x8xf32>
    %111 = arith.addf %107, %110 : vector<8x8xf32>
    %112 = arith.truncf %111 : vector<8x8xf32> to vector<8x8xbf16>
    %c3_70 = arith.constant 3 : index
    %c0_71 = arith.constant 0 : index
    %c0_72 = arith.constant 0 : index
    %113 = vector.load %arg20[%c3_70, %c0_71, %c0_72] : memref<4x8x8xbf16, #tpu.memory_space<vmem>>, vector<1x8x8xbf16>
    %114 = vector.shape_cast %113 : vector<1x8x8xbf16> to vector<8x8xbf16>
    %115 = tpu.transpose %114, [1, 0] : vector<8x8xbf16> -> vector<8x8xbf16>
    %cst_73 = arith.constant dense<0.000000e+00> : vector<8x8xf32>
    %116 = tpu.matmul %112, %115, %cst_73 {dimension_numbers = #tpu.dot_dimension_numbers<[1], [0], [0], [1], [0, 0, 1, 1], [], []>} : vector<8x8xbf16>, vector<8x8xbf16>, vector<8x8xf32> -> vector<8x8xf32>
    %cst_74 = arith.constant dense<0xFF800000> : vector<8xf32>
    %117 = vector.multi_reduction <maximumf>, %116, %cst_74 [1] : vector<8x8xf32> to vector<8xf32>
    %118 = vector.shape_cast %117 : vector<8xf32> to vector<8x1xf32>
    %119 = vector.broadcast %118 : vector<8x1xf32> to vector<8x8xf32>
    %120 = arith.subf %116, %119 : vector<8x8xf32>
    %121 = math.exp %120 : vector<8x8xf32>
    %cst_75 = arith.constant dense<0.000000e+00> : vector<8xf32>
    %122 = vector.multi_reduction <add>, %121, %cst_75 [1] : vector<8x8xf32> to vector<8xf32>
    %123 = vector.shape_cast %122 : vector<8xf32> to vector<8x1xf32>
    %124 = tpu.reciprocal %123 {approx = true} : vector<8x1xf32> -> vector<8x1xf32>
    %125 = vector.broadcast %124 : vector<8x1xf32> to vector<8x8xf32>
    %126 = arith.mulf %121, %125 : vector<8x8xf32>
    %127 = arith.truncf %126 : vector<8x8xf32> to vector<8x8xbf16>
    %c3_76 = arith.constant 3 : index
    %c0_77 = arith.constant 0 : index
    %c0_78 = arith.constant 0 : index
    %128 = vector.load %arg21[%c3_76, %c0_77, %c0_78] : memref<4x8x8xbf16, #tpu.memory_space<vmem>>, vector<1x8x8xbf16>
    %129 = vector.shape_cast %128 : vector<1x8x8xbf16> to vector<8x8xbf16>
    %cst_79 = arith.constant dense<0.000000e+00> : vector<8x8xf32>
    %130 = tpu.matmul %127, %129, %cst_79 {dimension_numbers = #tpu.dot_dimension_numbers<[1], [0], [0], [1], [0, 0, 1, 1], [], []>} : vector<8x8xbf16>, vector<8x8xbf16>, vector<8x8xf32> -> vector<8x8xf32>
    %131 = arith.truncf %130 : vector<8x8xf32> to vector<8x8xbf16>
    %c3_80 = arith.constant 3 : index
    %c0_81 = arith.constant 0 : index
    %c0_82 = arith.constant 0 : index
    %132 = vector.load %arg9[%c3_80, %c0_81, %c0_82] : memref<4x8x32xbf16, #tpu.memory_space<vmem>>, vector<1x8x32xbf16>
    %133 = vector.shape_cast %132 : vector<1x8x32xbf16> to vector<8x32xbf16>
    %cst_83 = arith.constant dense<0.000000e+00> : vector<8x32xf32>
    %134 = tpu.matmul %131, %133, %cst_83 {dimension_numbers = #tpu.dot_dimension_numbers<[1], [0], [0], [1], [0, 0, 1, 1], [], []>} : vector<8x8xbf16>, vector<8x32xbf16>, vector<8x32xf32> -> vector<8x32xf32>
    %135 = arith.addf %104, %134 : vector<8x32xf32>
    %136 = arith.addf %135, %8 : vector<8x32xf32>
    %cst_84 = arith.constant dense<0.000000e+00> : vector<8xf32>
    %137 = vector.multi_reduction <add>, %136, %cst_84 [1] : vector<8x32xf32> to vector<8xf32>
    %138 = vector.shape_cast %137 : vector<8xf32> to vector<8x1xf32>
    %cst_85 = arith.constant 3.200000e+01 : f32
    %139 = vector.broadcast %cst_85 : f32 to vector<8x1xf32>
    %140 = arith.divf %138, %139 : vector<8x1xf32>
    %141 = vector.broadcast %140 : vector<8x1xf32> to vector<8x32xf32>
    %142 = arith.subf %136, %141 : vector<8x32xf32>
    %143 = arith.mulf %142, %142 : vector<8x32xf32>
    %cst_86 = arith.constant dense<0.000000e+00> : vector<8xf32>
    %144 = vector.multi_reduction <add>, %143, %cst_86 [1] : vector<8x32xf32> to vector<8xf32>
    %145 = vector.shape_cast %144 : vector<8xf32> to vector<8x1xf32>
    %cst_87 = arith.constant 3.200000e+01 : f32
    %146 = vector.broadcast %cst_87 : f32 to vector<8x1xf32>
    %147 = arith.divf %145, %146 : vector<8x1xf32>
    %148 = vector.broadcast %140 : vector<8x1xf32> to vector<8x32xf32>
    %149 = arith.subf %136, %148 : vector<8x32xf32>
    %cst_88 = arith.constant 9.99999996E-13 : f32
    %150 = vector.broadcast %cst_88 : f32 to vector<8x1xf32>
    %151 = arith.addf %147, %150 : vector<8x1xf32>
    %152 = math.rsqrt %151 : vector<8x1xf32>
    %153 = vector.broadcast %152 : vector<8x1xf32> to vector<8x32xf32>
    %154 = arith.mulf %149, %153 : vector<8x32xf32>
    %c0_89 = arith.constant 0 : index
    %c0_90 = arith.constant 0 : index
    %155 = vector.load %arg11[%c0_89, %c0_90] : memref<1x32xf32, #tpu.memory_space<vmem>>, vector<1x32xf32>
    %156 = vector.broadcast %155 : vector<1x32xf32> to vector<8x32xf32>
    %157 = arith.mulf %154, %156 : vector<8x32xf32>
    %c0_91 = arith.constant 0 : index
    %c0_92 = arith.constant 0 : index
    %158 = vector.load %arg12[%c0_91, %c0_92] : memref<1x32xf32, #tpu.memory_space<vmem>>, vector<1x32xf32>
    %159 = vector.broadcast %158 : vector<1x32xf32> to vector<8x32xf32>
    %160 = arith.addf %157, %159 : vector<8x32xf32>
    %161 = arith.truncf %160 : vector<8x32xf32> to vector<8x32xbf16>
    %c0_93 = arith.constant 0 : index
    %c0_94 = arith.constant 0 : index
    %162 = vector.load %arg16[%c0_93, %c0_94] : memref<1x32xf32, #tpu.memory_space<vmem>>, vector<1x32xf32>
    %163 = vector.shape_cast %162 : vector<1x32xf32> to vector<1x32xf32>
    %164 = vector.broadcast %163 : vector<1x32xf32> to vector<8x32xf32>
    %c0_95 = arith.constant 0 : index
    %c0_96 = arith.constant 0 : index
    %c0_97 = arith.constant 0 : index
    %165 = vector.load %arg13[%c0_95, %c0_96, %c0_97] : memref<1x32x64xbf16, #tpu.memory_space<vmem>>, vector<1x32x64xbf16>
    %166 = vector.shape_cast %165 : vector<1x32x64xbf16> to vector<32x64xbf16>
    %cst_98 = arith.constant dense<0.000000e+00> : vector<8x64xf32>
    %167 = tpu.matmul %161, %166, %cst_98 {dimension_numbers = #tpu.dot_dimension_numbers<[1], [0], [0], [1], [0, 0, 1, 1], [], []>} : vector<8x32xbf16>, vector<32x64xbf16>, vector<8x64xf32> -> vector<8x64xf32>
    %c0_99 = arith.constant 0 : index
    %c0_100 = arith.constant 0 : index
    %c0_101 = arith.constant 0 : index
    %168 = vector.load %arg14[%c0_99, %c0_100, %c0_101] : memref<1x1x64xf32, #tpu.memory_space<vmem>>, vector<1x1x64xf32>
    %169 = vector.shape_cast %168 : vector<1x1x64xf32> to vector<1x64xf32>
    %170 = vector.broadcast %169 : vector<1x64xf32> to vector<8x64xf32>
    %171 = arith.addf %167, %170 : vector<8x64xf32>
    %cst_102 = arith.constant 0.000000e+00 : f32
    %172 = vector.broadcast %cst_102 : f32 to vector<8x64xf32>
    %173 = arith.maximumf %171, %172 : vector<8x64xf32>
    %174 = arith.truncf %173 : vector<8x64xf32> to vector<8x64xbf16>
    %c0_103 = arith.constant 0 : index
    %c0_104 = arith.constant 0 : index
    %c0_105 = arith.constant 0 : index
    %175 = vector.load %arg15[%c0_103, %c0_104, %c0_105] : memref<1x64x32xbf16, #tpu.memory_space<vmem>>, vector<1x64x32xbf16>
    %176 = vector.shape_cast %175 : vector<1x64x32xbf16> to vector<64x32xbf16>
    %cst_106 = arith.constant dense<0.000000e+00> : vector<8x32xf32>
    %177 = tpu.matmul %174, %176, %cst_106 {dimension_numbers = #tpu.dot_dimension_numbers<[1], [0], [0], [1], [0, 0, 1, 1], [], []>} : vector<8x64xbf16>, vector<64x32xbf16>, vector<8x32xf32> -> vector<8x32xf32>
    %178 = arith.addf %164, %177 : vector<8x32xf32>
    %179 = arith.addf %178, %160 : vector<8x32xf32>
    %cst_107 = arith.constant dense<0.000000e+00> : vector<8xf32>
    %180 = vector.multi_reduction <add>, %179, %cst_107 [1] : vector<8x32xf32> to vector<8xf32>
    %181 = vector.shape_cast %180 : vector<8xf32> to vector<8x1xf32>
    %cst_108 = arith.constant 3.200000e+01 : f32
    %182 = vector.broadcast %cst_108 : f32 to vector<8x1xf32>
    %183 = arith.divf %181, %182 : vector<8x1xf32>
    %184 = vector.broadcast %183 : vector<8x1xf32> to vector<8x32xf32>
    %185 = arith.subf %179, %184 : vector<8x32xf32>
    %186 = arith.mulf %185, %185 : vector<8x32xf32>
    %cst_109 = arith.constant dense<0.000000e+00> : vector<8xf32>
    %187 = vector.multi_reduction <add>, %186, %cst_109 [1] : vector<8x32xf32> to vector<8xf32>
    %188 = vector.shape_cast %187 : vector<8xf32> to vector<8x1xf32>
    %cst_110 = arith.constant 3.200000e+01 : f32
    %189 = vector.broadcast %cst_110 : f32 to vector<8x1xf32>
    %190 = arith.divf %188, %189 : vector<8x1xf32>
    %191 = vector.broadcast %183 : vector<8x1xf32> to vector<8x32xf32>
    %192 = arith.subf %179, %191 : vector<8x32xf32>
    %cst_111 = arith.constant 9.99999996E-13 : f32
    %193 = vector.broadcast %cst_111 : f32 to vector<8x1xf32>
    %194 = arith.addf %190, %193 : vector<8x1xf32>
    %195 = math.rsqrt %194 : vector<8x1xf32>
    %196 = vector.broadcast %195 : vector<8x1xf32> to vector<8x32xf32>
    %197 = arith.mulf %192, %196 : vector<8x32xf32>
    %c0_112 = arith.constant 0 : index
    %c0_113 = arith.constant 0 : index
    %198 = vector.load %arg17[%c0_112, %c0_113] : memref<1x32xf32, #tpu.memory_space<vmem>>, vector<1x32xf32>
    %199 = vector.broadcast %198 : vector<1x32xf32> to vector<8x32xf32>
    %200 = arith.mulf %197, %199 : vector<8x32xf32>
    %c0_114 = arith.constant 0 : index
    %c0_115 = arith.constant 0 : index
    %201 = vector.load %arg18[%c0_114, %c0_115] : memref<1x32xf32, #tpu.memory_space<vmem>>, vector<1x32xf32>
    %202 = vector.broadcast %201 : vector<1x32xf32> to vector<8x32xf32>
    %203 = arith.addf %200, %202 : vector<8x32xf32>
    %c0_116 = arith.constant 0 : index
    %c0_117 = arith.constant 0 : index
    %c0_118 = arith.constant 0 : index
    %204 = vector.load %arg19[%c0_116, %c0_117, %c0_118] : memref<1x8x32xf32, #tpu.memory_space<vmem>>, vector<1x8x32xf32>
    %205 = vector.shape_cast %204 : vector<1x8x32xf32> to vector<8x32xf32>
    %206 = vector.shape_cast %203 : vector<8x32xf32> to vector<1x8x32xf32>
    tpu.vector_store %arg19[%c0_116, %c0_117, %c0_118], %206 {strides = array<i32>} : memref<1x8x32xf32, #tpu.memory_space<vmem>>, vector<1x8x32xf32>,
    return
  }
  func.func @transform_0(%arg0: i32, %arg1: i32) -> (i32, i32, i32) {
    %c0_i32 = arith.constant 0 : i32
    %c0_i32_0 = arith.constant 0 : i32
    %c0_i32_1 = arith.constant 0 : i32
    return %arg0, %c0_i32, %c0_i32_0 : i32, i32, i32
  }
  func.func @transform_1(%arg0: i32, %arg1: i32) -> (i32, i32, i32) {
    %c0_i32 = arith.constant 0 : i32
    %c0_i32_0 = arith.constant 0 : i32
    %c0_i32_1 = arith.constant 0 : i32
    %c0_i32_2 = arith.constant 0 : i32
    return %c0_i32, %c0_i32_0, %c0_i32_1 : i32, i32, i32
  }
  func.func @transform_2(%arg0: i32, %arg1: i32) -> (i32, i32, i32) {
    %c0_i32 = arith.constant 0 : i32
    %c0_i32_0 = arith.constant 0 : i32
    %c0_i32_1 = arith.constant 0 : i32
    %c0_i32_2 = arith.constant 0 : i32
    return %c0_i32, %c0_i32_0, %c0_i32_1 : i32, i32, i32
  }
  func.func @transform_3(%arg0: i32, %arg1: i32) -> (i32, i32, i32) {
    %c0_i32 = arith.constant 0 : i32
    %c0_i32_0 = arith.constant 0 : i32
    %c0_i32_1 = arith.constant 0 : i32
    %c0_i32_2 = arith.constant 0 : i32
    return %c0_i32, %c0_i32_0, %c0_i32_1 : i32, i32, i32
  }
  func.func @transform_4(%arg0: i32, %arg1: i32) -> (i32, i32, i32) {
    %c0_i32 = arith.constant 0 : i32
    %c0_i32_0 = arith.constant 0 : i32
    %c0_i32_1 = arith.constant 0 : i32
    %c0_i32_2 = arith.constant 0 : i32
    return %c0_i32, %c0_i32_0, %c0_i32_1 : i32, i32, i32
  }
  func.func @transform_5(%arg0: i32, %arg1: i32) -> (i32, i32, i32) {
    %c0_i32 = arith.constant 0 : i32
    %c0_i32_0 = arith.constant 0 : i32
    %c0_i32_1 = arith.constant 0 : i32
    %c0_i32_2 = arith.constant 0 : i32
    return %c0_i32, %c0_i32_0, %c0_i32_1 : i32, i32, i32
  }
  func.func @transform_6(%arg0: i32, %arg1: i32) -> (i32, i32, i32) {
    %c0_i32 = arith.constant 0 : i32
    %c0_i32_0 = arith.constant 0 : i32
    %c0_i32_1 = arith.constant 0 : i32
    %c0_i32_2 = arith.constant 0 : i32
    return %c0_i32, %c0_i32_0, %c0_i32_1 : i32, i32, i32
  }
  func.func @transform_7(%arg0: i32, %arg1: i32) -> (i32, i32, i32) {
    %c0_i32 = arith.constant 0 : i32
    %c0_i32_0 = arith.constant 0 : i32
    %c0_i32_1 = arith.constant 0 : i32
    %c0_i32_2 = arith.constant 0 : i32
    return %c0_i32, %c0_i32_0, %c0_i32_1 : i32, i32, i32
  }
  func.func @transform_8(%arg0: i32, %arg1: i32) -> (i32, i32) {
    %c0_i32 = arith.constant 0 : i32
    %c0_i32_0 = arith.constant 0 : i32
    %c0_i32_1 = arith.constant 0 : i32
    return %c0_i32, %c0_i32_0 : i32, i32
  }
  func.func @transform_9(%arg0: i32, %arg1: i32) -> (i32, i32) {
    %c0_i32 = arith.constant 0 : i32
    %c0_i32_0 = arith.constant 0 : i32
    %c0_i32_1 = arith.constant 0 : i32
    return %c0_i32, %c0_i32_0 : i32, i32
  }
  func.func @transform_10(%arg0: i32, %arg1: i32) -> (i32, i32) {
    %c0_i32 = arith.constant 0 : i32
    %c0_i32_0 = arith.constant 0 : i32
    %c0_i32_1 = arith.constant 0 : i32
    return %c0_i32, %c0_i32_0 : i32, i32
  }
  func.func @transform_11(%arg0: i32, %arg1: i32) -> (i32, i32, i32) {
    %c0_i32 = arith.constant 0 : i32
    %c0_i32_0 = arith.constant 0 : i32
    %c0_i32_1 = arith.constant 0 : i32
    %c0_i32_2 = arith.constant 0 : i32
    return %c0_i32, %c0_i32_0, %c0_i32_1 : i32, i32, i32
  }
  func.func @transform_12(%arg0: i32, %arg1: i32) -> (i32, i32, i32) {
    %c0_i32 = arith.constant 0 : i32
    %c0_i32_0 = arith.constant 0 : i32
    %c0_i32_1 = arith.constant 0 : i32
    %c0_i32_2 = arith.constant 0 : i32
    return %c0_i32, %c0_i32_0, %c0_i32_1 : i32, i32, i32
  }
  func.func @transform_13(%arg0: i32, %arg1: i32) -> (i32, i32, i32) {
    %c0_i32 = arith.constant 0 : i32
    %c0_i32_0 = arith.constant 0 : i32
    %c0_i32_1 = arith.constant 0 : i32
    %c0_i32_2 = arith.constant 0 : i32
    return %c0_i32, %c0_i32_0, %c0_i32_1 : i32, i32, i32
  }
  func.func @transform_14(%arg0: i32, %arg1: i32) -> (i32, i32) {
    %c0_i32 = arith.constant 0 : i32
    %c0_i32_0 = arith.constant 0 : i32
    %c0_i32_1 = arith.constant 0 : i32
    return %c0_i32, %c0_i32_0 : i32, i32
  }
  func.func @transform_15(%arg0: i32, %arg1: i32) -> (i32, i32) {
    %c0_i32 = arith.constant 0 : i32
    %c0_i32_0 = arith.constant 0 : i32
    %c0_i32_1 = arith.constant 0 : i32
    return %c0_i32, %c0_i32_0 : i32, i32
  }
  func.func @transform_16(%arg0: i32, %arg1: i32) -> (i32, i32) {
    %c0_i32 = arith.constant 0 : i32
    %c0_i32_0 = arith.constant 0 : i32
    %c0_i32_1 = arith.constant 0 : i32
    return %c0_i32, %c0_i32_0 : i32, i32
  }
  func.func @transform_17(%arg0: i32, %arg1: i32) -> (i32, i32, i32) {
    %c0_i32 = arith.constant 0 : i32
    %c0_i32_0 = arith.constant 0 : i32
    return %arg0, %arg1, %c0_i32 : i32, i32, i32
  }
}

</mosaic_0001>

<llo_original>
// kernel: tpu_custom_call.1
$region0: #{tpu_custom_call.1}
  #allocation0 [shape = 'u32[]', space=smem, size = 0x4, offset = 0x4, fixed_abs, tag = 'smem constant byte address 0x4 - core index']
  #allocation1 [shape = 'u32[144,128]{1,0:T(1,128)}', space=vmem, size = 0x12000, scoped, tag = 'internal scratch']
  #allocation2 [shape = 'bf16[4,8,8]{2,1,0:T(8,128)(2,1)}', space=vmem, size = 0x2000, scoped, tag = 'scratch operand']
  #allocation3 [shape = 'bf16[4,8,8]{2,1,0:T(8,128)(2,1)}', space=vmem, size = 0x2000, scoped, tag = 'scratch operand']
  %s0 = inlined_call_operand.vmem [shape: bf16[2,8,32], index: 0, kind: input, shape index: {}]
  %s1 = inlined_call_operand.vmem [shape: bf16[4,32,8], index: 1, kind: input, shape index: {}]
  %s2 = inlined_call_operand.vmem [shape: f32[4,1,8], index: 2, kind: input, shape index: {}]
  %s3 = inlined_call_operand.vmem [shape: bf16[4,32,8], index: 3, kind: input, shape index: {}]
  %s4 = inlined_call_operand.vmem [shape: f32[4,1,8], index: 4, kind: input, shape index: {}]
  %s5 = inlined_call_operand.vmem [shape: bf16[4,32,8], index: 5, kind: input, shape index: {}]
  %s6 = inlined_call_operand.vmem [shape: f32[4,1,8], index: 6, kind: input, shape index: {}]
  %s7 = inlined_call_operand.vmem [shape: bf16[4,8,32], index: 7, kind: input, shape index: {}]
  %s8 = inlined_call_operand.vmem [shape: f32[1,32], index: 8, kind: input, shape index: {}]
  %s9 = inlined_call_operand.vmem [shape: f32[1,32], index: 9, kind: input, shape index: {}]
  %s10 = inlined_call_operand.vmem [shape: f32[1,32], index: 10, kind: input, shape index: {}]
  %s11 = inlined_call_operand.vmem [shape: bf16[1,32,64], index: 11, kind: input, shape index: {}]
  %s12 = inlined_call_operand.vmem [shape: f32[1,1,64], index: 12, kind: input, shape index: {}]
  %s13 = inlined_call_operand.vmem [shape: bf16[1,64,32], index: 13, kind: input, shape index: {}]
  %s14 = inlined_call_operand.vmem [shape: f32[1,32], index: 14, kind: input, shape index: {}]
  %s15 = inlined_call_operand.vmem [shape: f32[1,32], index: 15, kind: input, shape index: {}]
  %s16 = inlined_call_operand.vmem [shape: f32[1,32], index: 16, kind: input, shape index: {}]
  %s17 = inlined_call_operand.hbm [shape: f32[2,8,32], index: 17, kind: output, shape index: {}]
  %s18 = sld [smem:[#allocation0]]
  $region105: #{tpu_custom_call.1} parent=0
    _
  %s20 = ssub.s32 1, %s18
  %s21 = scalar_select 0, %s20, %s18
  $region1: #{tpu_custom_call.1} parent=0
    #allocation4 [shape = 'u8[8192]{0}', space=vmem, size = 0x2000, scoped, tag = 'output window, operand 0']
    #allocation5 [shape = 's32[2]{0}', space=sflag, size = 0x8, scoped, tag = 'scoped memory for tpu_custom_call.1']
    %22 = vsyncpa [#allocation5], 0
    %s23 = scalar_lea.sflag [#allocation5], 1
    %24 = vsyncpa %s23, 0
    loop: start=0, step=1, limit=4
    $region2: #{tpu_custom_call.1} parent=1 // loop_pre_header
      _
    $region3: #{tpu_custom_call.1} parent=1 // loop_header
      %s26 = sphi 0, %s30
      %p27 = scmp.ge.s32.totalorder %s26, 4
      %s33 = sphi 0, %s45
      %s34 = sphi 0, %s41
      %s35 = sphi 0, %s33
      %s36 = sphi 0, %s34
      %s37 = sphi 0, %s35
      %s38 = sphi 0, %s36
      %s48 = sphi 0, %s50
      %s51 = sphi 0, %s48
      %s52 = sphi 0, %s51
      %s68 = sphi 0, %s52
      %s72 = sphi 0, %s72
      %s74 = sphi 0, %s72
      %s75 = sphi 0, %s74
      %s89 = sphi 0, %s75
      %s93 = sphi 0, %s93
      %s95 = sphi 0, %s93
      %s96 = sphi 0, %s95
      %s110 = sphi 0, %s96
      %s114 = sphi 0, %s114
      %s116 = sphi 0, %s114
      %s117 = sphi 0, %s116
      %s131 = sphi 0, %s117
      %s135 = sphi 0, %s135
      %s137 = sphi 0, %s135
      %s138 = sphi 0, %s137
      %s152 = sphi 0, %s138
      %s156 = sphi 0, %s156
      %s158 = sphi 0, %s156
      %s159 = sphi 0, %s158
      %s173 = sphi 0, %s159
      %s177 = sphi 0, %s177
      %s179 = sphi 0, %s177
      %s180 = sphi 0, %s179
      %s194 = sphi 0, %s180
      %s198 = sphi 0, %s198
      %s200 = sphi 0, %s198
      %s201 = sphi 0, %s200
      %s215 = sphi 0, %s201
      %s219 = sphi 0, %s219
      %s221 = sphi 0, %s219
      %s222 = sphi 0, %s221
      %s236 = sphi 0, %s222
      %s240 = sphi 0, %s240
      %s242 = sphi 0, %s240
      %s243 = sphi 0, %s242
      %s257 = sphi 0, %s243
      %s261 = sphi 0, %s261
      %s263 = sphi 0, %s261
      %s264 = sphi 0, %s263
      %s278 = sphi 0, %s264
      %s282 = sphi 0, %s282
      %s284 = sphi 0, %s282
      %s285 = sphi 0, %s284
      %s299 = sphi 0, %s285
      %s303 = sphi 0, %s303
      %s305 = sphi 0, %s303
      %s306 = sphi 0, %s305
      %s320 = sphi 0, %s306
      %s324 = sphi 0, %s324
      %s326 = sphi 0, %s324
      %s327 = sphi 0, %s326
      %s341 = sphi 0, %s327
      %s345 = sphi 0, %s345
      %s347 = sphi 0, %s345
      %s348 = sphi 0, %s347
      %s362 = sphi 0, %s348
      %s366 = sphi 0, %s366
      %s368 = sphi 0, %s366
      %s369 = sphi 0, %s368
      %s383 = sphi 0, %s369
      %s387 = sphi 0, %s387
      %s389 = sphi 0, %s387
      %s390 = sphi 0, %s389
      %s404 = sphi 0, %s390
      %s412 = sphi 0, %s414
      %s415 = sphi 0, %s412
      %s416 = sphi 0, %s415
      %s432 = sphi 0, %s416
    $region4: #{tpu_custom_call.1} parent=1 // loop_header_branch
      %29 = sbr.rel (%p27) target = $region8
    $region5: #{tpu_custom_call.1} parent=1 // loop_body
      %s31 = ssub.s32 %s26, 1
      %s32 = ssub.s32 %s26, 2
      %s39 = sadd.s32 1, %s34
      %p40 = scmp.ge.s32.totalorder %s39, 1
      %s41 = scalar_select %p40, 0, %s39
      %s42 = sadd.s32 1, %s33
      %s43 = scalar_select %p40, %s42, %s33
      %p44 = scmp.ge.s32.totalorder %s43, 2
      %s45 = scalar_select %p44, 0, %s43
      %s46 = ssub.s32 %s33, %s45
      %p47 = scmp.eq.s32.totalorder %s46, 0
      %s49 = sadd.s32 %s48, 1
      %s50 = scalar_select %p47, %s48, %s49
      %p53 = pneg %p47
      %p54 = scmp.eq.s32.totalorder %s26, 1
      %p55 = por %p53, %p54
      %p56 = scmp.ne.s32.totalorder %s48, %s51
      %p57 = scmp.eq.s32.totalorder %s26, 0
      %p58 = por %p56, %p57
      %p59 = scmp.ne.s32.totalorder %s48, %s51
      %p60 = scmp.eq.s32.totalorder %s31, 1
      %p61 = por %p59, %p60
      %p62 = scmp.ne.s32.totalorder %s51, %s52
      %p63 = scmp.eq.s32.totalorder %s31, 0
      %p64 = por %p62, %p63
      %p65 = scmp.ne.s32.totalorder %s51, %s52
      %p66 = scmp.eq.s32.totalorder %s32, 1
      %p67 = por %p65, %p66
      %p69 = scmp.ne.s32.totalorder %s52, %s68
      %p70 = scmp.eq.s32.totalorder %s32, 0
      %p71 = por %p69, %p70
      %s73 = sadd.s32 %s72, 1
      %p76 = scmp.eq.s32.totalorder %s26, 1
      %p77 = scmp.ne.s32.totalorder %s72, %s74
      %p78 = scmp.eq.s32.totalorder %s26, 0
      %p79 = por %p77, %p78
      %p80 = scmp.ne.s32.totalorder %s72, %s74
      %p81 = scmp.eq.s32.totalorder %s31, 1
      %p82 = por %p80, %p81
      %p83 = scmp.ne.s32.totalorder %s74, %s75
      %p84 = scmp.eq.s32.totalorder %s31, 0
      %p85 = por %p83, %p84
      %p86 = scmp.ne.s32.totalorder %s74, %s75
      %p87 = scmp.eq.s32.totalorder %s32, 1
      %p88 = por %p86, %p87
      %p90 = scmp.ne.s32.totalorder %s75, %s89
      %p91 = scmp.eq.s32.totalorder %s32, 0
      %p92 = por %p90, %p91
      %s94 = sadd.s32 %s93, 1
      %p97 = scmp.eq.s32.totalorder %s26, 1
      %p98 = scmp.ne.s32.totalorder %s93, %s95
      %p99 = scmp.eq.s32.totalorder %s26, 0
      %p100 = por %p98, %p99
      %p101 = scmp.ne.s32.totalorder %s93, %s95
      %p102 = scmp.eq.s32.totalorder %s31, 1
      %p103 = por %p101, %p102
      %p104 = scmp.ne.s32.totalorder %s95, %s96
      %p105 = scmp.eq.s32.totalorder %s31, 0
      %p106 = por %p104, %p105
      %p107 = scmp.ne.s32.totalorder %s95, %s96
      %p108 = scmp.eq.s32.totalorder %s32, 1
      %p109 = por %p107, %p108
      %p111 = scmp.ne.s32.totalorder %s96, %s110
      %p112 = scmp.eq.s32.totalorder %s32, 0
      %p113 = por %p111, %p112
      %s115 = sadd.s32 %s114, 1
      %p118 = scmp.eq.s32.totalorder %s26, 1
      %p119 = scmp.ne.s32.totalorder %s114, %s116
      %p120 = scmp.eq.s32.totalorder %s26, 0
      %p121 = por %p119, %p120
      %p122 = scmp.ne.s32.totalorder %s114, %s116
      %p123 = scmp.eq.s32.totalorder %s31, 1
      %p124 = por %p122, %p123
      %p125 = scmp.ne.s32.totalorder %s116, %s117
      %p126 = scmp.eq.s32.totalorder %s31, 0
      %p127 = por %p125, %p126
      %p128 = scmp.ne.s32.totalorder %s116, %s117
      %p129 = scmp.eq.s32.totalorder %s32, 1
      %p130 = por %p128, %p129
      %p132 = scmp.ne.s32.totalorder %s117, %s131
      %p133 = scmp.eq.s32.totalorder %s32, 0
      %p134 = por %p132, %p133
      %s136 = sadd.s32 %s135, 1
      %p139 = scmp.eq.s32.totalorder %s26, 1
      %p140 = scmp.ne.s32.totalorder %s135, %s137
      %p141 = scmp.eq.s32.totalorder %s26, 0
      %p142 = por %p140, %p141
      %p143 = scmp.ne.s32.totalorder %s135, %s137
      %p144 = scmp.eq.s32.totalorder %s31, 1
      %p145 = por %p143, %p144
      %p146 = scmp.ne.s32.totalorder %s137, %s138
      %p147 = scmp.eq.s32.totalorder %s31, 0
      %p148 = por %p146, %p147
      %p149 = scmp.ne.s32.totalorder %s137, %s138
      %p150 = scmp.eq.s32.totalorder %s32, 1
      %p151 = por %p149, %p150
      %p153 = scmp.ne.s32.totalorder %s138, %s152
      %p154 = scmp.eq.s32.totalorder %s32, 0
      %p155 = por %p153, %p154
      %s157 = sadd.s32 %s156, 1
      %p160 = scmp.eq.s32.totalorder %s26, 1
      %p161 = scmp.ne.s32.totalorder %s156, %s158
      %p162 = scmp.eq.s32.totalorder %s26, 0
      %p163 = por %p161, %p162
      %p164 = scmp.ne.s32.totalorder %s156, %s158
      %p165 = scmp.eq.s32.totalorder %s31, 1
      %p166 = por %p164, %p165
      %p167 = scmp.ne.s32.totalorder %s158, %s159
      %p168 = scmp.eq.s32.totalorder %s31, 0
      %p169 = por %p167, %p168
      %p170 = scmp.ne.s32.totalorder %s158, %s159
      %p171 = scmp.eq.s32.totalorder %s32, 1
      %p172 = por %p170, %p171
      %p174 = scmp.ne.s32.totalorder %s159, %s173
      %p175 = scmp.eq.s32.totalorder %s32, 0
      %p176 = por %p174, %p175
      %s178 = sadd.s32 %s177, 1
      %p181 = scmp.eq.s32.totalorder %s26, 1
      %p182 = scmp.ne.s32.totalorder %s177, %s179
      %p183 = scmp.eq.s32.totalorder %s26, 0
      %p184 = por %p182, %p183
      %p185 = scmp.ne.s32.totalorder %s177, %s179
      %p186 = scmp.eq.s32.totalorder %s31, 1
      %p187 = por %p185, %p186
      %p188 = scmp.ne.s32.totalorder %s179, %s180
      %p189 = scmp.eq.s32.totalorder %s31, 0
      %p190 = por %p188, %p189
      %p191 = scmp.ne.s32.totalorder %s179, %s180
      %p192 = scmp.eq.s32.totalorder %s32, 1
      %p193 = por %p191, %p192
      %p195 = scmp.ne.s32.totalorder %s180, %s194
      %p196 = scmp.eq.s32.totalorder %s32, 0
      %p197 = por %p195, %p196
      %s199 = sadd.s32 %s198, 1
      %p202 = scmp.eq.s32.totalorder %s26, 1
      %p203 = scmp.ne.s32.totalorder %s198, %s200
      %p204 = scmp.eq.s32.totalorder %s26, 0
      %p205 = por %p203, %p204
      %p206 = scmp.ne.s32.totalorder %s198, %s200
      %p207 = scmp.eq.s32.totalorder %s31, 1
      %p208 = por %p206, %p207
      %p209 = scmp.ne.s32.totalorder %s200, %s201
      %p210 = scmp.eq.s32.totalorder %s31, 0
      %p211 = por %p209, %p210
      %p212 = scmp.ne.s32.totalorder %s200, %s201
      %p213 = scmp.eq.s32.totalorder %s32, 1
      %p214 = por %p212, %p213
      %p216 = scmp.ne.s32.totalorder %s201, %s215
      %p217 = scmp.eq.s32.totalorder %s32, 0
      %p218 = por %p216, %p217
      %s220 = sadd.s32 %s219, 1
      %p223 = scmp.eq.s32.totalorder %s26, 1
      %p224 = scmp.ne.s32.totalorder %s219, %s221
      %p225 = scmp.eq.s32.totalorder %s26, 0
      %p226 = por %p224, %p225
      %p227 = scmp.ne.s32.totalorder %s219, %s221
      %p228 = scmp.eq.s32.totalorder %s31, 1
      %p229 = por %p227, %p228
      %p230 = scmp.ne.s32.totalorder %s221, %s222
      %p231 = scmp.eq.s32.totalorder %s31, 0
      %p232 = por %p230, %p231
      %p233 = scmp.ne.s32.totalorder %s221, %s222
      %p234 = scmp.eq.s32.totalorder %s32, 1
      %p235 = por %p233, %p234
      %p237 = scmp.ne.s32.totalorder %s222, %s236
      %p238 = scmp.eq.s32.totalorder %s32, 0
      %p239 = por %p237, %p238
      %s241 = sadd.s32 %s240, 1
      %p244 = scmp.eq.s32.totalorder %s26, 1
      %p245 = scmp.ne.s32.totalorder %s240, %s242
      %p246 = scmp.eq.s32.totalorder %s26, 0
      %p247 = por %p245, %p246
      %p248 = scmp.ne.s32.totalorder %s240, %s242
      %p249 = scmp.eq.s32.totalorder %s31, 1
      %p250 = por %p248, %p249
      %p251 = scmp.ne.s32.totalorder %s242, %s243
      %p252 = scmp.eq.s32.totalorder %s31, 0
      %p253 = por %p251, %p252
      %p254 = scmp.ne.s32.totalorder %s242, %s243
      %p255 = scmp.eq.s32.totalorder %s32, 1
      %p256 = por %p254, %p255
      %p258 = scmp.ne.s32.totalorder %s243, %s257
      %p259 = scmp.eq.s32.totalorder %s32, 0
      %p260 = por %p258, %p259
      %s262 = sadd.s32 %s261, 1
      %p265 = scmp.eq.s32.totalorder %s26, 1
      %p266 = scmp.ne.s32.totalorder %s261, %s263
      %p267 = scmp.eq.s32.totalorder %s26, 0
      %p268 = por %p266, %p267
      %p269 = scmp.ne.s32.totalorder %s261, %s263
      %p270 = scmp.eq.s32.totalorder %s31, 1
      %p271 = por %p269, %p270
      %p272 = scmp.ne.s32.totalorder %s263, %s264
      %p273 = scmp.eq.s32.totalorder %s31, 0
      %p274 = por %p272, %p273
      %p275 = scmp.ne.s32.totalorder %s263, %s264
      %p276 = scmp.eq.s32.totalorder %s32, 1
      %p277 = por %p275, %p276
      %p279 = scmp.ne.s32.totalorder %s264, %s278
      %p280 = scmp.eq.s32.totalorder %s32, 0
      %p281 = por %p279, %p280
      %s283 = sadd.s32 %s282, 1
      %p286 = scmp.eq.s32.totalorder %s26, 1
      %p287 = scmp.ne.s32.totalorder %s282, %s284
      %p288 = scmp.eq.s32.totalorder %s26, 0
      %p289 = por %p287, %p288
      %p290 = scmp.ne.s32.totalorder %s282, %s284
      %p291 = scmp.eq.s32.totalorder %s31, 1
      %p292 = por %p290, %p291
      %p293 = scmp.ne.s32.totalorder %s284, %s285
      %p294 = scmp.eq.s32.totalorder %s31, 0
      %p295 = por %p293, %p294
      %p296 = scmp.ne.s32.totalorder %s284, %s285
      %p297 = scmp.eq.s32.totalorder %s32, 1
      %p298 = por %p296, %p297
      %p300 = scmp.ne.s32.totalorder %s285, %s299
      %p301 = scmp.eq.s32.totalorder %s32, 0
      %p302 = por %p300, %p301
      %s304 = sadd.s32 %s303, 1
      %p307 = scmp.eq.s32.totalorder %s26, 1
      %p308 = scmp.ne.s32.totalorder %s303, %s305
      %p309 = scmp.eq.s32.totalorder %s26, 0
      %p310 = por %p308, %p309
      %p311 = scmp.ne.s32.totalorder %s303, %s305
      %p312 = scmp.eq.s32.totalorder %s31, 1
      %p313 = por %p311, %p312
      %p314 = scmp.ne.s32.totalorder %s305, %s306
      %p315 = scmp.eq.s32.totalorder %s31, 0
      %p316 = por %p314, %p315
      %p317 = scmp.ne.s32.totalorder %s305, %s306
      %p318 = scmp.eq.s32.totalorder %s32, 1
      %p319 = por %p317, %p318
      %p321 = scmp.ne.s32.totalorder %s306, %s320
      %p322 = scmp.eq.s32.totalorder %s32, 0
      %p323 = por %p321, %p322
      %s325 = sadd.s32 %s324, 1
      %p328 = scmp.eq.s32.totalorder %s26, 1
      %p329 = scmp.ne.s32.totalorder %s324, %s326
      %p330 = scmp.eq.s32.totalorder %s26, 0
      %p331 = por %p329, %p330
      %p332 = scmp.ne.s32.totalorder %s324, %s326
      %p333 = scmp.eq.s32.totalorder %s31, 1
      %p334 = por %p332, %p333
      %p335 = scmp.ne.s32.totalorder %s326, %s327
      %p336 = scmp.eq.s32.totalorder %s31, 0
      %p337 = por %p335, %p336
      %p338 = scmp.ne.s32.totalorder %s326, %s327
      %p339 = scmp.eq.s32.totalorder %s32, 1
      %p340 = por %p338, %p339
      %p342 = scmp.ne.s32.totalorder %s327, %s341
      %p343 = scmp.eq.s32.totalorder %s32, 0
      %p344 = por %p342, %p343
      %s346 = sadd.s32 %s345, 1
      %p349 = scmp.eq.s32.totalorder %s26, 1
      %p350 = scmp.ne.s32.totalorder %s345, %s347
      %p351 = scmp.eq.s32.totalorder %s26, 0
      %p352 = por %p350, %p351
      %p353 = scmp.ne.s32.totalorder %s345, %s347
      %p354 = scmp.eq.s32.totalorder %s31, 1
      %p355 = por %p353, %p354
      %p356 = scmp.ne.s32.totalorder %s347, %s348
      %p357 = scmp.eq.s32.totalorder %s31, 0
      %p358 = por %p356, %p357
      %p359 = scmp.ne.s32.totalorder %s347, %s348
      %p360 = scmp.eq.s32.totalorder %s32, 1
      %p361 = por %p359, %p360
      %p363 = scmp.ne.s32.totalorder %s348, %s362
      %p364 = scmp.eq.s32.totalorder %s32, 0
      %p365 = por %p363, %p364
      %s367 = sadd.s32 %s366, 1
      %p370 = scmp.eq.s32.totalorder %s26, 1
      %p371 = scmp.ne.s32.totalorder %s366, %s368
      %p372 = scmp.eq.s32.totalorder %s26, 0
      %p373 = por %p371, %p372
      %p374 = scmp.ne.s32.totalorder %s366, %s368
      %p375 = scmp.eq.s32.totalorder %s31, 1
      %p376 = por %p374, %p375
      %p377 = scmp.ne.s32.totalorder %s368, %s369
      %p378 = scmp.eq.s32.totalorder %s31, 0
      %p379 = por %p377, %p378
      %p380 = scmp.ne.s32.totalorder %s368, %s369
      %p381 = scmp.eq.s32.totalorder %s32, 1
      %p382 = por %p380, %p381
      %p384 = scmp.ne.s32.totalorder %s369, %s383
      %p385 = scmp.eq.s32.totalorder %s32, 0
      %p386 = por %p384, %p385
      %s388 = sadd.s32 %s387, 1
      %p391 = scmp.eq.s32.totalorder %s26, 1
      %p392 = scmp.ne.s32.totalorder %s387, %s389
      %p393 = scmp.eq.s32.totalorder %s26, 0
      %p394 = por %p392, %p393
      %p395 = scmp.ne.s32.totalorder %s387, %s389
      %p396 = scmp.eq.s32.totalorder %s31, 1
      %p397 = por %p395, %p396
      %p398 = scmp.ne.s32.totalorder %s389, %s390
      %p399 = scmp.eq.s32.totalorder %s31, 0
      %p400 = por %p398, %p399
      %p401 = scmp.ne.s32.totalorder %s389, %s390
      %p402 = scmp.eq.s32.totalorder %s32, 1
      %p403 = por %p401, %p402
      %p405 = scmp.ne.s32.totalorder %s390, %s404
      %p406 = scmp.eq.s32.totalorder %s32, 0
      %p407 = por %p405, %p406
      %s408 = ssub.s32 %s33, %s45
      %s409 = ssub.s32 %s34, %s41
      %s410 = sor.u32 %s408, %s409
      %p411 = scmp.eq.s32.totalorder %s410, 0
      %s413 = sadd.s32 %s412, 1
      %s414 = scalar_select %p411, %s412, %s413
      %p417 = pneg %p411
      %p418 = scmp.eq.s32.totalorder %s26, 1
      %p419 = por %p417, %p418
      %p420 = scmp.ne.s32.totalorder %s412, %s415
      %p421 = scmp.eq.s32.totalorder %s26, 0
      %p422 = por %p420, %p421
      %p423 = scmp.ne.s32.totalorder %s412, %s415
      %p424 = scmp.eq.s32.totalorder %s31, 1
      %p425 = por %p423, %p424
      %p426 = scmp.ne.s32.totalorder %s415, %s416
      %p427 = scmp.eq.s32.totalorder %s31, 0
      %p428 = por %p426, %p427
      %p429 = scmp.ne.s32.totalorder %s415, %s416
      %p430 = scmp.eq.s32.totalorder %s32, 1
      %p431 = por %p429, %p430
      %p433 = scmp.ne.s32.totalorder %s416, %s432
      %p434 = scmp.eq.s32.totalorder %s32, 0
      %p435 = por %p433, %p434
      %p436 = scmp.le.s32.totalorder 1, %s26
      %p437 = scmp.lt.s32.totalorder %s26, 3
      %p438 = pnand %p436, %p437
      %p439 = pneg %p438
      // Predicated region
      $region9: #{tpu_custom_call.1} parent=5 // pred_check
        _
      $region10: #{tpu_custom_call.1} parent=5 // pred_check_branch
        %441 = sbr.rel (%p438) target = $region12
      $region11: #{tpu_custom_call.1} parent=5 // pred_region
        %s442 = ssub.s32 %s26, 1
        // Predicated region
        $region13: #{tpu_custom_call.1} parent=11 // pred_check
          %p443 = pneg %p85
        $region14: #{tpu_custom_call.1} parent=11 // pred_check_branch
          %445 = sbr.rel (%p443) target = $region16
        $region15: #{tpu_custom_call.1} parent=11 // pred_region
          _
        $region16: #{tpu_custom_call.1} parent=11 // pred_fallthru
          _
        // Predicated region
        $region17: #{tpu_custom_call.1} parent=11 // pred_check
          %p446 = pneg %p106
        $region18: #{tpu_custom_call.1} parent=11 // pred_check_branch
          %448 = sbr.rel (%p446) target = $region20
        $region19: #{tpu_custom_call.1} parent=11 // pred_region
          _
        $region20: #{tpu_custom_call.1} parent=11 // pred_fallthru
          _
        // Predicated region
        $region21: #{tpu_custom_call.1} parent=11 // pred_check
          %p449 = pneg %p127
        $region22: #{tpu_custom_call.1} parent=11 // pred_check_branch
          %451 = sbr.rel (%p449) target = $region24
        $region23: #{tpu_custom_call.1} parent=11 // pred_region
          _
        $region24: #{tpu_custom_call.1} parent=11 // pred_fallthru
          _
        // Predicated region
        $region25: #{tpu_custom_call.1} parent=11 // pred_check
          %p452 = pneg %p148
        $region26: #{tpu_custom_call.1} parent=11 // pred_check_branch
          %454 = sbr.rel (%p452) target = $region28
        $region27: #{tpu_custom_call.1} parent=11 // pred_region
          _
        $region28: #{tpu_custom_call.1} parent=11 // pred_fallthru
          _
        // Predicated region
        $region29: #{tpu_custom_call.1} parent=11 // pred_check
          %p455 = pneg %p169
        $region30: #{tpu_custom_call.1} parent=11 // pred_check_branch
          %457 = sbr.rel (%p455) target = $region32
        $region31: #{tpu_custom_call.1} parent=11 // pred_region
          _
        $region32: #{tpu_custom_call.1} parent=11 // pred_fallthru
          _
        // Predicated region
        $region33: #{tpu_custom_call.1} parent=11 // pred_check
          %p458 = pneg %p190
        $region34: #{tpu_custom_call.1} parent=11 // pred_check_branch
          %460 = sbr.rel (%p458) target = $region36
        $region35: #{tpu_custom_call.1} parent=11 // pred_region
          _
        $region36: #{tpu_custom_call.1} parent=11 // pred_fallthru
          _
        // Predicated region
        $region37: #{tpu_custom_call.1} parent=11 // pred_check
          %p461 = pneg %p211
        $region38: #{tpu_custom_call.1} parent=11 // pred_check_branch
          %463 = sbr.rel (%p461) target = $region40
        $region39: #{tpu_custom_call.1} parent=11 // pred_region
          _
        $region40: #{tpu_custom_call.1} parent=11 // pred_fallthru
          _
        // Predicated region
        $region41: #{tpu_custom_call.1} parent=11 // pred_check
          %p464 = pneg %p232
        $region42: #{tpu_custom_call.1} parent=11 // pred_check_branch
          %466 = sbr.rel (%p464) target = $region44
        $region43: #{tpu_custom_call.1} parent=11 // pred_region
          _
        $region44: #{tpu_custom_call.1} parent=11 // pred_fallthru
          _
        // Predicated region
        $region45: #{tpu_custom_call.1} parent=11 // pred_check
          %p467 = pneg %p253
        $region46: #{tpu_custom_call.1} parent=11 // pred_check_branch
          %469 = sbr.rel (%p467) target = $region48
        $region47: #{tpu_custom_call.1} parent=11 // pred_region
          _
        $region48: #{tpu_custom_call.1} parent=11 // pred_fallthru
          _
        // Predicated region
        $region49: #{tpu_custom_call.1} parent=11 // pred_check
          %p470 = pneg %p274
        $region50: #{tpu_custom_call.1} parent=11 // pred_check_branch
          %472 = sbr.rel (%p470) target = $region52
        $region51: #{tpu_custom_call.1} parent=11 // pred_region
          _
        $region52: #{tpu_custom_call.1} parent=11 // pred_fallthru
          _
        // Predicated region
        $region53: #{tpu_custom_call.1} parent=11 // pred_check
          %p473 = pneg %p295
        $region54: #{tpu_custom_call.1} parent=11 // pred_check_branch
          %475 = sbr.rel (%p473) target = $region56
        $region55: #{tpu_custom_call.1} parent=11 // pred_region
          _
        $region56: #{tpu_custom_call.1} parent=11 // pred_fallthru
          _
        // Predicated region
        $region57: #{tpu_custom_call.1} parent=11 // pred_check
          %p476 = pneg %p316
        $region58: #{tpu_custom_call.1} parent=11 // pred_check_branch
          %478 = sbr.rel (%p476) target = $region60
        $region59: #{tpu_custom_call.1} parent=11 // pred_region
          _
        $region60: #{tpu_custom_call.1} parent=11 // pred_fallthru
          _
        // Predicated region
        $region61: #{tpu_custom_call.1} parent=11 // pred_check
          %p479 = pneg %p337
        $region62: #{tpu_custom_call.1} parent=11 // pred_check_branch
          %481 = sbr.rel (%p479) target = $region64
        $region63: #{tpu_custom_call.1} parent=11 // pred_region
          _
        $region64: #{tpu_custom_call.1} parent=11 // pred_fallthru
          _
        // Predicated region
        $region65: #{tpu_custom_call.1} parent=11 // pred_check
          %p482 = pneg %p358
        $region66: #{tpu_custom_call.1} parent=11 // pred_check_branch
          %484 = sbr.rel (%p482) target = $region68
        $region67: #{tpu_custom_call.1} parent=11 // pred_region
          _
        $region68: #{tpu_custom_call.1} parent=11 // pred_fallthru
          _
        // Predicated region
        $region69: #{tpu_custom_call.1} parent=11 // pred_check
          %p485 = pneg %p379
        $region70: #{tpu_custom_call.1} parent=11 // pred_check_branch
          %487 = sbr.rel (%p485) target = $region72
        $region71: #{tpu_custom_call.1} parent=11 // pred_region
          _
        $region72: #{tpu_custom_call.1} parent=11 // pred_fallthru
          _
        // Predicated region
        $region73: #{tpu_custom_call.1} parent=11 // pred_check
          %p488 = pneg %p400
        $region74: #{tpu_custom_call.1} parent=11 // pred_check_branch
          %490 = sbr.rel (%p488) target = $region76
        $region75: #{tpu_custom_call.1} parent=11 // pred_region
          _
        $region76: #{tpu_custom_call.1} parent=11 // pred_fallthru
          _
      $region12: #{tpu_custom_call.1} parent=5 // pred_fallthru
        _
      %p491 = scmp.lt.s32.totalorder %s26, 2
      // Predicated region
      $region77: #{tpu_custom_call.1} parent=5 // pred_check
        %p492 = pneg %p491
      $region78: #{tpu_custom_call.1} parent=5 // pred_check_branch
        %494 = sbr.rel (%p492) target = $region80
      $region79: #{tpu_custom_call.1} parent=5 // pred_region
        // Predicated region
        $region81: #{tpu_custom_call.1} parent=79 // pred_check
          %p495 = pneg %p58
        $region82: #{tpu_custom_call.1} parent=79 // pred_check_branch
          %497 = sbr.rel (%p495) target = $region84
        $region83: #{tpu_custom_call.1} parent=79 // pred_region
          %p498 = scmp.lt.s32.totalorder %s33, 1
          %s499 = scalar_select %p498, %s33, 1
          %s500 = smul.addr %s499, 4
          %s501 = scalar_lea.vmem %s0, %s500
        $region84: #{tpu_custom_call.1} parent=79 // pred_fallthru
          _
      $region80: #{tpu_custom_call.1} parent=5 // pred_fallthru
        _
      %p502 = scmp.le.s32.totalorder 1, %s26
      %p503 = scmp.lt.s32.totalorder %s26, 3
      %p504 = pnand %p502, %p503
      %p505 = pneg %p504
      // Predicated region
      $region85: #{tpu_custom_call.1} parent=5 // pred_check
        _
      $region86: #{tpu_custom_call.1} parent=5 // pred_check_branch
        %507 = sbr.rel (%p504) target = $region88
      $region87: #{tpu_custom_call.1} parent=5 // pred_region
        %s508 = ssub.s32 %s26, 1
        %p509 = scmp.lt.s32.totalorder %s35, 1
        %s510 = scalar_select %p509, %s35, 1
        %s511 = smul.addr %s510, 4
        %s512 = scalar_lea.vmem %s0, %s511
        %p513 = pneg %p64
        %p514 = pneg %p61
        %p515 = pneg %p85
        %p516 = pneg %p82
        %p517 = pneg %p106
        %p518 = pneg %p103
        %p519 = pneg %p127
        %p520 = pneg %p124
        %p521 = pneg %p148
        %p522 = pneg %p145
        %p523 = pneg %p169
        %p524 = pneg %p166
        %p525 = pneg %p190
        %p526 = pneg %p187
        %p527 = pneg %p211
        %p528 = pneg %p208
        %p529 = pneg %p232
        %p530 = pneg %p229
        %p531 = pneg %p253
        %p532 = pneg %p250
        %p533 = pneg %p274
        %p534 = pneg %p271
        %p535 = pneg %p295
        %p536 = pneg %p292
        %p537 = pneg %p316
        %p538 = pneg %p313
        %p539 = pneg %p337
        %p540 = pneg %p334
        %p541 = pneg %p358
        %p542 = pneg %p355
        %p543 = pneg %p379
        %p544 = pneg %p376
        %p545 = pneg %p400
        %p546 = pneg %p397
        %p547 = pneg %p428
        %p548 = pneg %p425
        %s549 = sand.u32 %s415, 1
        %s550 = scalar_lea.sflag [#allocation5], %s549
        %s551 = sand.u32 %s415, 1
        %s552 = smul.addr %s551, 8
        %s553 = scalar_lea.vmem [#allocation4], %s552
        %p554 = scmp.lt.s32.totalorder %s35, 1
        %s555 = scalar_select %p554, %s35, 1
        %s556 = smul.addr %s555, 4
        %s557 = scalar_lea.vmem %s0, %s556
        %p559 = scmp.eq.s32.totalorder %s36, 0
        // Predicated region
        $region89: #{tpu_custom_call.1} parent=87 // pred_check
          %p560 = pneg %p559
        $region90: #{tpu_custom_call.1} parent=87 // pred_check_branch
          %562 = sbr.rel (%p560) target = $region92
        $region91: #{tpu_custom_call.1} parent=87 // pred_region
          %v563 = vld [vmem:[%s557] sm:$0xf]
          %v564 = vld [vmem:[%s3] sm:$0xf]
          %v565 = vld [vmem:[%s3 + $0x4] sm:$0xf]
          %v566 = vld [vmem:[%s3 + $0x8] sm:$0xf]
          %v567 = vld [vmem:[%s3 + $0xc] sm:$0xf]
          %v568 = vld [vmem:[%s4] sm:$0x1]
          %v570 = vlaneseq
          %v571 = vshrl.u32 %v570, 7
          %v572 = vsub.s32 0, %v571
          %v573 = vrot.slane %v568, %v572
          %v579 = vunpack.c.l.b16 %v564
          %v580 = vunpack.c.l.b16 %v565
          %v581 = vunpack.c.l.b16 %v566
          %v582 = vunpack.c.l.b16 %v567
          %v583 = vpack.c.b16 %v580, %v579
          %v584 = vpack.c.b16 %v582, %v581
          %vm587 = vcmask 261120
          %v589 = vsel %vm587, %v563, 0
          %591 = vmatprep.subr.bf16.mxu0 0
          %592 = vmatpush1.bf16.msra.mxu0 0
          %593 = vmatprep.subr.bf16.mxu0 0
          %594 = vmatpush1.bf16.msra.mxu0 0
          %595 = vmatprep.subr.bf16.mxu0 0
          %596 = vmatpush1.bf16.msra.mxu0 0
          %597 = vmatprep.subr.bf16.mxu0 0
          %598 = vmatpush1.bf16.msra.mxu0 0
          %599 = vmatprep.subr.bf16.mxu0 0
          %600 = vmatpush1.bf16.msra.mxu0 0
          %601 = vmatprep.subr.bf16.mxu0 0
          %602 = vmatpush1.bf16.msra.mxu0 0
          %603 = vmatprep.subr.bf16.mxu0 0
          %604 = vmatpush1.bf16.msra.mxu0 %v584
          %605 = vmatprep.subr.bf16.mxu0 0
          %606 = vmatpush1.bf16.msra.mxu0 %v583
          %607 = vmatprep.subr.bf16.mxu0 0
          %608 = vmatpush2.bf16.msra.mxu0 0
          %609 = vmatprep.subr.bf16.mxu0 0
          %610 = vmatpush2.bf16.msra.mxu0 0
          %611 = vmatprep.subr.bf16.mxu0 0
          %612 = vmatpush2.bf16.msra.mxu0 0
          %613 = vmatprep.subr.bf16.mxu0 0
          %614 = vmatpush2.bf16.msra.mxu0 0
          %615 = vmatprep.subr.bf16.mxu0 0
          %616 = vmatpush2.bf16.msra.mxu0 0
          %617 = vmatprep.subr.bf16.mxu0 0
          %618 = vmatpush2.bf16.msra.mxu0 0
          %619 = vmatprep.subr.bf16.mxu0 0
          %620 = vmatpush2.bf16.msra.mxu0 0
          %621 = vmatprep.subr.bf16.mxu0 0
          %622 = vmatpush2.bf16.msra.mxu0 0
          %623 = vmatprep.mubr.bf16.mxu0 0
          %624 = vmatmul.mubr.bf16.gmra.mxu0 %v589
          %v625 = vpop.f32.mrf.mxu0
          %v626 = vadd.f32 %v573, %v625
          %v627 = vpop.f32.mrf.mxu0
          %v628 = vpop.f32.mrf.mxu0
          %v629 = vpop.f32.mrf.mxu0
          %630 = vdwg.mxu0
          %v631 = vld [vmem:[%s5] sm:$0xf]
          %v632 = vld [vmem:[%s5 + $0x4] sm:$0xf]
          %v633 = vld [vmem:[%s5 + $0x8] sm:$0xf]
          %v634 = vld [vmem:[%s5 + $0xc] sm:$0xf]
          %v635 = vld [vmem:[%s6] sm:$0x1]
          %v637 = vlaneseq
          %v638 = vshrl.u32 %v637, 7
          %v639 = vsub.s32 0, %v638
          %v640 = vrot.slane %v635, %v639
          %v646 = vunpack.c.l.b16 %v631
          %v647 = vunpack.c.l.b16 %v632
          %v648 = vunpack.c.l.b16 %v633
          %v649 = vunpack.c.l.b16 %v634
          %v650 = vpack.c.b16 %v647, %v646
          %v651 = vpack.c.b16 %v649, %v648
          %654 = vmatprep.subr.bf16.mxu0 0
          %655 = vmatpush1.bf16.msra.mxu0 0
          %656 = vmatprep.subr.bf16.mxu0 0
          %657 = vmatpush1.bf16.msra.mxu0 0
          %658 = vmatprep.subr.bf16.mxu0 0
          %659 = vmatpush1.bf16.msra.mxu0 0
          %660 = vmatprep.subr.bf16.mxu0 0
          %661 = vmatpush1.bf16.msra.mxu0 0
          %662 = vmatprep.subr.bf16.mxu0 0
          %663 = vmatpush1.bf16.msra.mxu0 0
          %664 = vmatprep.subr.bf16.mxu0 0
          %665 = vmatpush1.bf16.msra.mxu0 0
          %666 = vmatprep.subr.bf16.mxu0 0
          %667 = vmatpush1.bf16.msra.mxu0 %v651
          %668 = vmatprep.subr.bf16.mxu0 0
          %669 = vmatpush1.bf16.msra.mxu0 %v650
          %670 = vmatprep.subr.bf16.mxu0 0
          %671 = vmatpush2.bf16.msra.mxu0 0
          %672 = vmatprep.subr.bf16.mxu0 0
          %673 = vmatpush2.bf16.msra.mxu0 0
          %674 = vmatprep.subr.bf16.mxu0 0
          %675 = vmatpush2.bf16.msra.mxu0 0
          %676 = vmatprep.subr.bf16.mxu0 0
          %677 = vmatpush2.bf16.msra.mxu0 0
          %678 = vmatprep.subr.bf16.mxu0 0
          %679 = vmatpush2.bf16.msra.mxu0 0
          %680 = vmatprep.subr.bf16.mxu0 0
          %681 = vmatpush2.bf16.msra.mxu0 0
          %682 = vmatprep.subr.bf16.mxu0 0
          %683 = vmatpush2.bf16.msra.mxu0 0
          %684 = vmatprep.subr.bf16.mxu0 0
          %685 = vmatpush2.bf16.msra.mxu0 0
          %686 = vmatprep.mubr.bf16.mxu0 0
          %687 = vmatmul.mubr.bf16.gmra.mxu0 %v589
          %v688 = vpop.f32.mrf.mxu0
          %v689 = vadd.f32 %v640, %v688
          %v690 = vpop.f32.mrf.mxu0
          %v691 = vpop.f32.mrf.mxu0
          %v692 = vpop.f32.mrf.mxu0
          %693 = vdwg.mxu0
          %v694 = vpack.c.bf16 %v626, %v626
          %vm695 = vcmask 60416
          %696 = vst.msk [vmem:[#allocation2] sm:$0xf] %vm695, %v694
          %v697 = vpack.c.bf16 %v689, %v689
          %698 = vst.msk [vmem:[#allocation3] sm:$0xf] %vm695, %v697
          %s699 = scalar_lea.vmem %s3, 16
          %v700 = vld [vmem:[%s699] sm:$0xf]
          %v701 = vld [vmem:[%s699 + $0x4] sm:$0xf]
          %v702 = vld [vmem:[%s699 + $0x8] sm:$0xf]
          %v703 = vld [vmem:[%s699 + $0xc] sm:$0xf]
          %s704 = scalar_lea.vmem %s4, 1
          %v705 = vld [vmem:[%s704] sm:$0x1]
          %v707 = vlaneseq
          %v708 = vshrl.u32 %v707, 7
          %v709 = vsub.s32 0, %v708
          %v710 = vrot.slane %v705, %v709
          %v716 = vunpack.c.l.b16 %v700
          %v717 = vunpack.c.l.b16 %v701
          %v718 = vunpack.c.l.b16 %v702
          %v719 = vunpack.c.l.b16 %v703
          %v720 = vpack.c.b16 %v717, %v716
          %v721 = vpack.c.b16 %v719, %v718
          %724 = vmatprep.subr.bf16.mxu0 0
          %725 = vmatpush1.bf16.msra.mxu0 0
          %726 = vmatprep.subr.bf16.mxu0 0
          %727 = vmatpush1.bf16.msra.mxu0 0
          %728 = vmatprep.subr.bf16.mxu0 0
          %729 = vmatpush1.bf16.msra.mxu0 0
          %730 = vmatprep.subr.bf16.mxu0 0
          %731 = vmatpush1.bf16.msra.mxu0 0
          %732 = vmatprep.subr.bf16.mxu0 0
          %733 = vmatpush1.bf16.msra.mxu0 0
          %734 = vmatprep.subr.bf16.mxu0 0
          %735 = vmatpush1.bf16.msra.mxu0 0
          %736 = vmatprep.subr.bf16.mxu0 0
          %737 = vmatpush1.bf16.msra.mxu0 %v721
          %738 = vmatprep.subr.bf16.mxu0 0
          %739 = vmatpush1.bf16.msra.mxu0 %v720
          %740 = vmatprep.subr.bf16.mxu0 0
          %741 = vmatpush2.bf16.msra.mxu0 0
          %742 = vmatprep.subr.bf16.mxu0 0
          %743 = vmatpush2.bf16.msra.mxu0 0
          %744 = vmatprep.subr.bf16.mxu0 0
          %745 = vmatpush2.bf16.msra.mxu0 0
          %746 = vmatprep.subr.bf16.mxu0 0
          %747 = vmatpush2.bf16.msra.mxu0 0
          %748 = vmatprep.subr.bf16.mxu0 0
          %749 = vmatpush2.bf16.msra.mxu0 0
          %750 = vmatprep.subr.bf16.mxu0 0
          %751 = vmatpush2.bf16.msra.mxu0 0
          %752 = vmatprep.subr.bf16.mxu0 0
          %753 = vmatpush2.bf16.msra.mxu0 0
          %754 = vmatprep.subr.bf16.mxu0 0
          %755 = vmatpush2.bf16.msra.mxu0 0
          %756 = vmatprep.mubr.bf16.mxu0 0
          %757 = vmatmul.mubr.bf16.gmra.mxu0 %v589
          %v758 = vpop.f32.mrf.mxu0
          %v759 = vadd.f32 %v710, %v758
          %v760 = vpop.f32.mrf.mxu0
          %v761 = vpop.f32.mrf.mxu0
          %v762 = vpop.f32.mrf.mxu0
          %763 = vdwg.mxu0
          %s764 = scalar_lea.vmem %s5, 16
          %v765 = vld [vmem:[%s764] sm:$0xf]
          %v766 = vld [vmem:[%s764 + $0x4] sm:$0xf]
          %v767 = vld [vmem:[%s764 + $0x8] sm:$0xf]
          %v768 = vld [vmem:[%s764 + $0xc] sm:$0xf]
          %s769 = scalar_lea.vmem %s6, 1
          %v770 = vld [vmem:[%s769] sm:$0x1]
          %v772 = vlaneseq
          %v773 = vshrl.u32 %v772, 7
          %v774 = vsub.s32 0, %v773
          %v775 = vrot.slane %v770, %v774
          %v781 = vunpack.c.l.b16 %v765
          %v782 = vunpack.c.l.b16 %v766
          %v783 = vunpack.c.l.b16 %v767
          %v784 = vunpack.c.l.b16 %v768
          %v785 = vpack.c.b16 %v782, %v781
          %v786 = vpack.c.b16 %v784, %v783
          %789 = vmatprep.subr.bf16.mxu0 0
          %790 = vmatpush1.bf16.msra.mxu0 0
          %791 = vmatprep.subr.bf16.mxu0 0
          %792 = vmatpush1.bf16.msra.mxu0 0
          %793 = vmatprep.subr.bf16.mxu0 0
          %794 = vmatpush1.bf16.msra.mxu0 0
          %795 = vmatprep.subr.bf16.mxu0 0
          %796 = vmatpush1.bf16.msra.mxu0 0
          %797 = vmatprep.subr.bf16.mxu0 0
          %798 = vmatpush1.bf16.msra.mxu0 0
          %799 = vmatprep.subr.bf16.mxu0 0
          %800 = vmatpush1.bf16.msra.mxu0 0
          %801 = vmatprep.subr.bf16.mxu0 0
          %802 = vmatpush1.bf16.msra.mxu0 %v786
          %803 = vmatprep.subr.bf16.mxu0 0
          %804 = vmatpush1.bf16.msra.mxu0 %v785
          %805 = vmatprep.subr.bf16.mxu0 0
          %806 = vmatpush2.bf16.msra.mxu0 0
          %807 = vmatprep.subr.bf16.mxu0 0
          %808 = vmatpush2.bf16.msra.mxu0 0
          %809 = vmatprep.subr.bf16.mxu0 0
          %810 = vmatpush2.bf16.msra.mxu0 0
          %811 = vmatprep.subr.bf16.mxu0 0
          %812 = vmatpush2.bf16.msra.mxu0 0
          %813 = vmatprep.subr.bf16.mxu0 0
          %814 = vmatpush2.bf16.msra.mxu0 0
          %815 = vmatprep.subr.bf16.mxu0 0
          %816 = vmatpush2.bf16.msra.mxu0 0
          %817 = vmatprep.subr.bf16.mxu0 0
          %818 = vmatpush2.bf16.msra.mxu0 0
          %819 = vmatprep.subr.bf16.mxu0 0
          %820 = vmatpush2.bf16.msra.mxu0 0
          %821 = vmatprep.mubr.bf16.mxu0 0
          %822 = vmatmul.mubr.bf16.gmra.mxu0 %v589
          %v823 = vpop.f32.mrf.mxu0
          %v824 = vadd.f32 %v775, %v823
          %v825 = vpop.f32.mrf.mxu0
          %v826 = vpop.f32.mrf.mxu0
          %v827 = vpop.f32.mrf.mxu0
          %828 = vdwg.mxu0
          %v829 = vpack.c.bf16 %v759, %v759
          %s830 = scalar_lea.vmem [#allocation2], 4
          %831 = vst.msk [vmem:[%s830] sm:$0xf] %vm695, %v829
          %v832 = vpack.c.bf16 %v824, %v824
          %s833 = scalar_lea.vmem [#allocation3], 4
          %834 = vst.msk [vmem:[%s833] sm:$0xf] %vm695, %v832
          %s835 = scalar_lea.vmem %s3, 32
          %v836 = vld [vmem:[%s835] sm:$0xf]
          %v837 = vld [vmem:[%s835 + $0x4] sm:$0xf]
          %v838 = vld [vmem:[%s835 + $0x8] sm:$0xf]
          %v839 = vld [vmem:[%s835 + $0xc] sm:$0xf]
          %s840 = scalar_lea.vmem %s4, 2
          %v841 = vld [vmem:[%s840] sm:$0x1]
          %v843 = vlaneseq
          %v844 = vshrl.u32 %v843, 7
          %v845 = vsub.s32 0, %v844
          %v846 = vrot.slane %v841, %v845
          %v852 = vunpack.c.l.b16 %v836
          %v853 = vunpack.c.l.b16 %v837
          %v854 = vunpack.c.l.b16 %v838
          %v855 = vunpack.c.l.b16 %v839
          %v856 = vpack.c.b16 %v853, %v852
          %v857 = vpack.c.b16 %v855, %v854
          %860 = vmatprep.subr.bf16.mxu0 0
          %861 = vmatpush1.bf16.msra.mxu0 0
          %862 = vmatprep.subr.bf16.mxu0 0
          %863 = vmatpush1.bf16.msra.mxu0 0
          %864 = vmatprep.subr.bf16.mxu0 0
          %865 = vmatpush1.bf16.msra.mxu0 0
          %866 = vmatprep.subr.bf16.mxu0 0
          %867 = vmatpush1.bf16.msra.mxu0 0
          %868 = vmatprep.subr.bf16.mxu0 0
          %869 = vmatpush1.bf16.msra.mxu0 0
          %870 = vmatprep.subr.bf16.mxu0 0
          %871 = vmatpush1.bf16.msra.mxu0 0
          %872 = vmatprep.subr.bf16.mxu0 0
          %873 = vmatpush1.bf16.msra.mxu0 %v857
          %874 = vmatprep.subr.bf16.mxu0 0
          %875 = vmatpush1.bf16.msra.mxu0 %v856
          %876 = vmatprep.subr.bf16.mxu0 0
          %877 = vmatpush2.bf16.msra.mxu0 0
          %878 = vmatprep.subr.bf16.mxu0 0
          %879 = vmatpush2.bf16.msra.mxu0 0
          %880 = vmatprep.subr.bf16.mxu0 0
          %881 = vmatpush2.bf16.msra.mxu0 0
          %882 = vmatprep.subr.bf16.mxu0 0
          %883 = vmatpush2.bf16.msra.mxu0 0
          %884 = vmatprep.subr.bf16.mxu0 0
          %885 = vmatpush2.bf16.msra.mxu0 0
          %886 = vmatprep.subr.bf16.mxu0 0
          %887 = vmatpush2.bf16.msra.mxu0 0
          %888 = vmatprep.subr.bf16.mxu0 0
          %889 = vmatpush2.bf16.msra.mxu0 0
          %890 = vmatprep.subr.bf16.mxu0 0
          %891 = vmatpush2.bf16.msra.mxu0 0
          %892 = vmatprep.mubr.bf16.mxu0 0
          %893 = vmatmul.mubr.bf16.gmra.mxu0 %v589
          %v894 = vpop.f32.mrf.mxu0
          %v895 = vadd.f32 %v846, %v894
          %v896 = vpop.f32.mrf.mxu0
          %v897 = vpop.f32.mrf.mxu0
          %v898 = vpop.f32.mrf.mxu0
          %899 = vdwg.mxu0
          %s900 = scalar_lea.vmem %s5, 32
          %v901 = vld [vmem:[%s900] sm:$0xf]
          %v902 = vld [vmem:[%s900 + $0x4] sm:$0xf]
          %v903 = vld [vmem:[%s900 + $0x8] sm:$0xf]
          %v904 = vld [vmem:[%s900 + $0xc] sm:$0xf]
          %s905 = scalar_lea.vmem %s6, 2
          %v906 = vld [vmem:[%s905] sm:$0x1]
          %v908 = vlaneseq
          %v909 = vshrl.u32 %v908, 7
          %v910 = vsub.s32 0, %v909
          %v911 = vrot.slane %v906, %v910
          %v917 = vunpack.c.l.b16 %v901
          %v918 = vunpack.c.l.b16 %v902
          %v919 = vunpack.c.l.b16 %v903
          %v920 = vunpack.c.l.b16 %v904
          %v921 = vpack.c.b16 %v918, %v917
          %v922 = vpack.c.b16 %v920, %v919
          %925 = vmatprep.subr.bf16.mxu0 0
          %926 = vmatpush1.bf16.msra.mxu0 0
          %927 = vmatprep.subr.bf16.mxu0 0
          %928 = vmatpush1.bf16.msra.mxu0 0
          %929 = vmatprep.subr.bf16.mxu0 0
          %930 = vmatpush1.bf16.msra.mxu0 0
          %931 = vmatprep.subr.bf16.mxu0 0
          %932 = vmatpush1.bf16.msra.mxu0 0
          %933 = vmatprep.subr.bf16.mxu0 0
          %934 = vmatpush1.bf16.msra.mxu0 0
          %935 = vmatprep.subr.bf16.mxu0 0
          %936 = vmatpush1.bf16.msra.mxu0 0
          %937 = vmatprep.subr.bf16.mxu0 0
          %938 = vmatpush1.bf16.msra.mxu0 %v922
          %939 = vmatprep.subr.bf16.mxu0 0
          %940 = vmatpush1.bf16.msra.mxu0 %v921
          %941 = vmatprep.subr.bf16.mxu0 0
          %942 = vmatpush2.bf16.msra.mxu0 0
          %943 = vmatprep.subr.bf16.mxu0 0
          %944 = vmatpush2.bf16.msra.mxu0 0
          %945 = vmatprep.subr.bf16.mxu0 0
          %946 = vmatpush2.bf16.msra.mxu0 0
          %947 = vmatprep.subr.bf16.mxu0 0
          %948 = vmatpush2.bf16.msra.mxu0 0
          %949 = vmatprep.subr.bf16.mxu0 0
          %950 = vmatpush2.bf16.msra.mxu0 0
          %951 = vmatprep.subr.bf16.mxu0 0
          %952 = vmatpush2.bf16.msra.mxu0 0
          %953 = vmatprep.subr.bf16.mxu0 0
          %954 = vmatpush2.bf16.msra.mxu0 0
          %955 = vmatprep.subr.bf16.mxu0 0
          %956 = vmatpush2.bf16.msra.mxu0 0
          %957 = vmatprep.mubr.bf16.mxu0 0
          %958 = vmatmul.mubr.bf16.gmra.mxu0 %v589
          %v959 = vpop.f32.mrf.mxu0
          %v960 = vadd.f32 %v911, %v959
          %v961 = vpop.f32.mrf.mxu0
          %v962 = vpop.f32.mrf.mxu0
          %v963 = vpop.f32.mrf.mxu0
          %964 = vdwg.mxu0
          %v965 = vpack.c.bf16 %v895, %v895
          %s966 = scalar_lea.vmem [#allocation2], 8
          %967 = vst.msk [vmem:[%s966] sm:$0xf] %vm695, %v965
          %v968 = vpack.c.bf16 %v960, %v960
          %s969 = scalar_lea.vmem [#allocation3], 8
          %970 = vst.msk [vmem:[%s969] sm:$0xf] %vm695, %v968
          %s971 = scalar_lea.vmem %s3, 48
          %v972 = vld [vmem:[%s971] sm:$0xf]
          %v973 = vld [vmem:[%s971 + $0x4] sm:$0xf]
          %v974 = vld [vmem:[%s971 + $0x8] sm:$0xf]
          %v975 = vld [vmem:[%s971 + $0xc] sm:$0xf]
          %s976 = scalar_lea.vmem %s4, 3
          %v977 = vld [vmem:[%s976] sm:$0x1]
          %v979 = vlaneseq
          %v980 = vshrl.u32 %v979, 7
          %v981 = vsub.s32 0, %v980
          %v982 = vrot.slane %v977, %v981
          %v988 = vunpack.c.l.b16 %v972
          %v989 = vunpack.c.l.b16 %v973
          %v990 = vunpack.c.l.b16 %v974
          %v991 = vunpack.c.l.b16 %v975
          %v992 = vpack.c.b16 %v989, %v988
          %v993 = vpack.c.b16 %v991, %v990
          %996 = vmatprep.subr.bf16.mxu0 0
          %997 = vmatpush1.bf16.msra.mxu0 0
          %998 = vmatprep.subr.bf16.mxu0 0
          %999 = vmatpush1.bf16.msra.mxu0 0
          %1000 = vmatprep.subr.bf16.mxu0 0
          %1001 = vmatpush1.bf16.msra.mxu0 0
          %1002 = vmatprep.subr.bf16.mxu0 0
          %1003 = vmatpush1.bf16.msra.mxu0 0
          %1004 = vmatprep.subr.bf16.mxu0 0
          %1005 = vmatpush1.bf16.msra.mxu0 0
          %1006 = vmatprep.subr.bf16.mxu0 0
          %1007 = vmatpush1.bf16.msra.mxu0 0
          %1008 = vmatprep.subr.bf16.mxu0 0
          %1009 = vmatpush1.bf16.msra.mxu0 %v993
          %1010 = vmatprep.subr.bf16.mxu0 0
          %1011 = vmatpush1.bf16.msra.mxu0 %v992
          %1012 = vmatprep.subr.bf16.mxu0 0
          %1013 = vmatpush2.bf16.msra.mxu0 0
          %1014 = vmatprep.subr.bf16.mxu0 0
          %1015 = vmatpush2.bf16.msra.mxu0 0
          %1016 = vmatprep.subr.bf16.mxu0 0
          %1017 = vmatpush2.bf16.msra.mxu0 0
          %1018 = vmatprep.subr.bf16.mxu0 0
          %1019 = vmatpush2.bf16.msra.mxu0 0
          %1020 = vmatprep.subr.bf16.mxu0 0
          %1021 = vmatpush2.bf16.msra.mxu0 0
          %1022 = vmatprep.subr.bf16.mxu0 0
          %1023 = vmatpush2.bf16.msra.mxu0 0
          %1024 = vmatprep.subr.bf16.mxu0 0
          %1025 = vmatpush2.bf16.msra.mxu0 0
          %1026 = vmatprep.subr.bf16.mxu0 0
          %1027 = vmatpush2.bf16.msra.mxu0 0
          %1028 = vmatprep.mubr.bf16.mxu0 0
          %1029 = vmatmul.mubr.bf16.gmra.mxu0 %v589
          %v1030 = vpop.f32.mrf.mxu0
          %v1031 = vadd.f32 %v982, %v1030
          %v1032 = vpop.f32.mrf.mxu0
          %v1033 = vpop.f32.mrf.mxu0
          %v1034 = vpop.f32.mrf.mxu0
          %1035 = vdwg.mxu0
          %s1036 = scalar_lea.vmem %s5, 48
          %v1037 = vld [vmem:[%s1036] sm:$0xf]
          %v1038 = vld [vmem:[%s1036 + $0x4] sm:$0xf]
          %v1039 = vld [vmem:[%s1036 + $0x8] sm:$0xf]
          %v1040 = vld [vmem:[%s1036 + $0xc] sm:$0xf]
          %s1041 = scalar_lea.vmem %s6, 3
          %v1042 = vld [vmem:[%s1041] sm:$0x1]
          %v1044 = vlaneseq
          %v1045 = vshrl.u32 %v1044, 7
          %v1046 = vsub.s32 0, %v1045
          %v1047 = vrot.slane %v1042, %v1046
          %v1053 = vunpack.c.l.b16 %v1037
          %v1054 = vunpack.c.l.b16 %v1038
          %v1055 = vunpack.c.l.b16 %v1039
          %v1056 = vunpack.c.l.b16 %v1040
          %v1057 = vpack.c.b16 %v1054, %v1053
          %v1058 = vpack.c.b16 %v1056, %v1055
          %1061 = vmatprep.subr.bf16.mxu0 0
          %1062 = vmatpush1.bf16.msra.mxu0 0
          %1063 = vmatprep.subr.bf16.mxu0 0
          %1064 = vmatpush1.bf16.msra.mxu0 0
          %1065 = vmatprep.subr.bf16.mxu0 0
          %1066 = vmatpush1.bf16.msra.mxu0 0
          %1067 = vmatprep.subr.bf16.mxu0 0
          %1068 = vmatpush1.bf16.msra.mxu0 0
          %1069 = vmatprep.subr.bf16.mxu0 0
          %1070 = vmatpush1.bf16.msra.mxu0 0
          %1071 = vmatprep.subr.bf16.mxu0 0
          %1072 = vmatpush1.bf16.msra.mxu0 0
          %1073 = vmatprep.subr.bf16.mxu0 0
          %1074 = vmatpush1.bf16.msra.mxu0 %v1058
          %1075 = vmatprep.subr.bf16.mxu0 0
          %1076 = vmatpush1.bf16.msra.mxu0 %v1057
          %1077 = vmatprep.subr.bf16.mxu0 0
          %1078 = vmatpush2.bf16.msra.mxu0 0
          %1079 = vmatprep.subr.bf16.mxu0 0
          %1080 = vmatpush2.bf16.msra.mxu0 0
          %1081 = vmatprep.subr.bf16.mxu0 0
          %1082 = vmatpush2.bf16.msra.mxu0 0
          %1083 = vmatprep.subr.bf16.mxu0 0
          %1084 = vmatpush2.bf16.msra.mxu0 0
          %1085 = vmatprep.subr.bf16.mxu0 0
          %1086 = vmatpush2.bf16.msra.mxu0 0
          %1087 = vmatprep.subr.bf16.mxu0 0
          %1088 = vmatpush2.bf16.msra.mxu0 0
          %1089 = vmatprep.subr.bf16.mxu0 0
          %1090 = vmatpush2.bf16.msra.mxu0 0
          %1091 = vmatprep.subr.bf16.mxu0 0
          %1092 = vmatpush2.bf16.msra.mxu0 0
          %1093 = vmatprep.mubr.bf16.mxu0 0
          %1094 = vmatmul.mubr.bf16.gmra.mxu0 %v589
          %v1095 = vpop.f32.mrf.mxu0
          %v1096 = vadd.f32 %v1047, %v1095
          %v1097 = vpop.f32.mrf.mxu0
          %v1098 = vpop.f32.mrf.mxu0
          %v1099 = vpop.f32.mrf.mxu0
          %1100 = vdwg.mxu0
          %v1101 = vpack.c.bf16 %v1031, %v1031
          %s1102 = scalar_lea.vmem [#allocation2], 12
          %1103 = vst.msk [vmem:[%s1102] sm:$0xf] %vm695, %v1101
          %v1104 = vpack.c.bf16 %v1096, %v1096
          %s1105 = scalar_lea.vmem [#allocation3], 12
          %1106 = vst.msk [vmem:[%s1105] sm:$0xf] %vm695, %v1104
        $region92: #{tpu_custom_call.1} parent=87 // pred_fallthru
          _
        %s1107 = smul.u32 %s36, 8
        %s1108 = sshra.s32 %s1107, 3
        %s1109 = sand.u32 %s1107, 7
        %s1110 = smul.addr %s1108, 4
        %s1111 = scalar_lea.vmem %s557, %s1110
        %v1112 = vld [vmem:[%s1111] sm:$0xf]
        %v1113 = vunpack.c.l.bf16 %v1112
        %v1114 = vld [vmem:[%s8] sm:$0x1]
        %v1116 = vlaneseq
        %v1117 = vshrl.u32 %v1116, 7
        %v1118 = vsub.s32 0, %v1117
        %v1119 = vrot.slane %v1114, %v1118
        %v1121 = vld [vmem:[%s1] sm:$0xf]
        %v1122 = vld [vmem:[%s1 + $0x4] sm:$0xf]
        %v1123 = vld [vmem:[%s1 + $0x8] sm:$0xf]
        %v1124 = vld [vmem:[%s1 + $0xc] sm:$0xf]
        %v1125 = vld [vmem:[%s2] sm:$0x1]
        %v1127 = vlaneseq
        %v1128 = vshrl.u32 %v1127, 7
        %v1129 = vsub.s32 0, %v1128
        %v1130 = vrot.slane %v1125, %v1129
        %v1136 = vunpack.c.l.b16 %v1121
        %v1137 = vunpack.c.l.b16 %v1122
        %v1138 = vunpack.c.l.b16 %v1123
        %v1139 = vunpack.c.l.b16 %v1124
        %v1140 = vpack.c.b16 %v1137, %v1136
        %v1141 = vpack.c.b16 %v1139, %v1138
        %vm1144 = vcmask 261120
        %v1146 = vsel %vm1144, %v1112, 0
        %1148 = vmatprep.subr.bf16.mxu0 0
        %1149 = vmatpush1.bf16.msra.mxu0 0
        %1150 = vmatprep.subr.bf16.mxu0 0
        %1151 = vmatpush1.bf16.msra.mxu0 0
        %1152 = vmatprep.subr.bf16.mxu0 0
        %1153 = vmatpush1.bf16.msra.mxu0 0
        %1154 = vmatprep.subr.bf16.mxu0 0
        %1155 = vmatpush1.bf16.msra.mxu0 0
        %1156 = vmatprep.subr.bf16.mxu0 0
        %1157 = vmatpush1.bf16.msra.mxu0 0
        %1158 = vmatprep.subr.bf16.mxu0 0
        %1159 = vmatpush1.bf16.msra.mxu0 0
        %1160 = vmatprep.subr.bf16.mxu0 0
        %1161 = vmatpush1.bf16.msra.mxu0 %v1141
        %1162 = vmatprep.subr.bf16.mxu0 0
        %1163 = vmatpush1.bf16.msra.mxu0 %v1140
        %1164 = vmatprep.subr.bf16.mxu0 0
        %1165 = vmatpush2.bf16.msra.mxu0 0
        %1166 = vmatprep.subr.bf16.mxu0 0
        %1167 = vmatpush2.bf16.msra.mxu0 0
        %1168 = vmatprep.subr.bf16.mxu0 0
        %1169 = vmatpush2.bf16.msra.mxu0 0
        %1170 = vmatprep.subr.bf16.mxu0 0
        %1171 = vmatpush2.bf16.msra.mxu0 0
        %1172 = vmatprep.subr.bf16.mxu0 0
        %1173 = vmatpush2.bf16.msra.mxu0 0
        %1174 = vmatprep.subr.bf16.mxu0 0
        %1175 = vmatpush2.bf16.msra.mxu0 0
        %1176 = vmatprep.subr.bf16.mxu0 0
        %1177 = vmatpush2.bf16.msra.mxu0 0
        %1178 = vmatprep.subr.bf16.mxu0 0
        %1179 = vmatpush2.bf16.msra.mxu0 0
        %1180 = vmatprep.mubr.bf16.mxu0 0
        %1181 = vmatmul.mubr.bf16.gmra.mxu0 %v1146
        %v1182 = vpop.f32.mrf.mxu0
        %v1183 = vadd.f32 %v1130, %v1182
        %v1184 = vpop.f32.mrf.mxu0
        %v1185 = vpop.f32.mrf.mxu0
        %v1186 = vpop.f32.mrf.mxu0
        %1187 = vdwg.mxu0
        %v1188 = vpack.c.bf16 %v1183, %v1183
        %v1189 = vld [vmem:[#allocation2] sm:$0xf]
        %vm1190 = vcmask 64512
        %v1192 = vsel %vm1190, %v1188, 0
        %v1195 = vsel %vm1190, %v1189, 0
        %1197 = vmatprep.subr.bf16.mxu0 0
        %1198 = vmatpush1.bf16.xpose.msra.mxu0 0
        %1199 = vmatprep.subr.bf16.mxu0 0
        %1200 = vmatpush1.bf16.xpose.msra.mxu0 0
        %1201 = vmatprep.subr.bf16.mxu0 0
        %1202 = vmatpush1.bf16.xpose.msra.mxu0 0
        %1203 = vmatprep.subr.bf16.mxu0 0
        %1204 = vmatpush1.bf16.xpose.msra.mxu0 0
        %1205 = vmatprep.subr.bf16.mxu0 0
        %1206 = vmatpush1.bf16.xpose.msra.mxu0 0
        %1207 = vmatprep.subr.bf16.mxu0 0
        %1208 = vmatpush1.bf16.xpose.msra.mxu0 0
        %1209 = vmatprep.subr.bf16.mxu0 0
        %1210 = vmatpush1.bf16.xpose.msra.mxu0 0
        %1211 = vmatprep.subr.bf16.mxu0 0
        %1212 = vmatpush1.bf16.xpose.msra.mxu0 %v1195
        %1213 = vmatprep.subr.bf16.mxu0 0
        %1214 = vmatpush2.bf16.xpose.msra.mxu0 0
        %1215 = vmatprep.subr.bf16.mxu0 0
        %1216 = vmatpush2.bf16.xpose.msra.mxu0 0
        %1217 = vmatprep.subr.bf16.mxu0 0
        %1218 = vmatpush2.bf16.xpose.msra.mxu0 0
        %1219 = vmatprep.subr.bf16.mxu0 0
        %1220 = vmatpush2.bf16.xpose.msra.mxu0 0
        %1221 = vmatprep.subr.bf16.mxu0 0
        %1222 = vmatpush2.bf16.xpose.msra.mxu0 0
        %1223 = vmatprep.subr.bf16.mxu0 0
        %1224 = vmatpush2.bf16.xpose.msra.mxu0 0
        %1225 = vmatprep.subr.bf16.mxu0 0
        %1226 = vmatpush2.bf16.xpose.msra.mxu0 0
        %1227 = vmatprep.subr.bf16.mxu0 0
        %1228 = vmatpush2.bf16.xpose.msra.mxu0 0
        %1229 = vmatprep.mubr.bf16.mxu0 0
        %1230 = vmatmul.mubr.bf16.gmra.mxu0 %v1192
        %v1231 = vpop.f32.mrf.mxu0
        %v1232 = vadd.f32 0.0, %v1231
        %v1233 = vpop.f32.mrf.mxu0
        %v1234 = vpop.f32.mrf.mxu0
        %v1235 = vpop.f32.mrf.mxu0
        %1236 = vdwg.mxu0
        %v1237 = vsel %vm1190, %v1232, -inf
        %1238 = vmax.xlane.f32.xlu0 %v1237
        %v1239 = vpop.xlane.xlu0 %1238
        %v1240 = vsub.f32 %v1232, %v1239
        %v1241 = vmul.f32 %v1240, 1.442695
        %v1242 = vpow.pop %v1241
        %v1243 = vsel %vm1190, %v1242, 0.0
        %1244 = vadd.xlane.f32.xlu0 %v1243
        %v1245 = vpop.xlane.xlu0 %1244
        %v1246 = vrcp.pop %v1245
        %v1247 = vmul.f32 %v1242, %v1246
        %v1248 = vpack.c.bf16 %v1247, %v1247
        %v1249 = vld [vmem:[#allocation3] sm:$0xf]
        %v1251 = vsel %vm1190, %v1248, 0
        %vm1253 = vcmask 1043456
        %v1255 = vsel %vm1253, %v1249, 0
        %1257 = vmatprep.subr.bf16.mxu0 0
        %1258 = vmatpush1.bf16.msra.mxu0 0
        %1259 = vmatprep.subr.bf16.mxu0 0
        %1260 = vmatpush1.bf16.msra.mxu0 0
        %1261 = vmatprep.subr.bf16.mxu0 0
        %1262 = vmatpush1.bf16.msra.mxu0 0
        %1263 = vmatprep.subr.bf16.mxu0 0
        %1264 = vmatpush1.bf16.msra.mxu0 0
        %1265 = vmatprep.subr.bf16.mxu0 0
        %1266 = vmatpush1.bf16.msra.mxu0 0
        %1267 = vmatprep.subr.bf16.mxu0 0
        %1268 = vmatpush1.bf16.msra.mxu0 0
        %1269 = vmatprep.subr.bf16.mxu0 0
        %1270 = vmatpush1.bf16.msra.mxu0 0
        %1271 = vmatprep.subr.bf16.mxu0 0
        %1272 = vmatpush1.bf16.msra.mxu0 %v1255
        %1273 = vmatprep.subr.bf16.mxu0 0
        %1274 = vmatpush2.bf16.msra.mxu0 0
        %1275 = vmatprep.subr.bf16.mxu0 0
        %1276 = vmatpush2.bf16.msra.mxu0 0
        %1277 = vmatprep.subr.bf16.mxu0 0
        %1278 = vmatpush2.bf16.msra.mxu0 0
        %1279 = vmatprep.subr.bf16.mxu0 0
        %1280 = vmatpush2.bf16.msra.mxu0 0
        %1281 = vmatprep.subr.bf16.mxu0 0
        %1282 = vmatpush2.bf16.msra.mxu0 0
        %1283 = vmatprep.subr.bf16.mxu0 0
        %1284 = vmatpush2.bf16.msra.mxu0 0
        %1285 = vmatprep.subr.bf16.mxu0 0
        %1286 = vmatpush2.bf16.msra.mxu0 0
        %1287 = vmatprep.subr.bf16.mxu0 0
        %1288 = vmatpush2.bf16.msra.mxu0 0
        %1289 = vmatprep.mubr.bf16.mxu0 0
        %1290 = vmatmul.mubr.bf16.gmra.mxu0 %v1251
        %v1291 = vpop.f32.mrf.mxu0
        %v1292 = vadd.f32 0.0, %v1291
        %v1293 = vpop.f32.mrf.mxu0
        %v1294 = vpop.f32.mrf.mxu0
        %v1295 = vpop.f32.mrf.mxu0
        %1296 = vdwg.mxu0
        %v1297 = vpack.c.bf16 %v1292, %v1292
        %v1298 = vld [vmem:[%s7] sm:$0xf]
        %v1300 = vsel %vm1190, %v1297, 0
        %v1303 = vsel %vm1253, %v1298, 0
        %1305 = vmatprep.subr.bf16.mxu0 0
        %1306 = vmatpush1.bf16.msra.mxu0 0
        %1307 = vmatprep.subr.bf16.mxu0 0
        %1308 = vmatpush1.bf16.msra.mxu0 0
        %1309 = vmatprep.subr.bf16.mxu0 0
        %1310 = vmatpush1.bf16.msra.mxu0 0
        %1311 = vmatprep.subr.bf16.mxu0 0
        %1312 = vmatpush1.bf16.msra.mxu0 0
        %1313 = vmatprep.subr.bf16.mxu0 0
        %1314 = vmatpush1.bf16.msra.mxu0 0
        %1315 = vmatprep.subr.bf16.mxu0 0
        %1316 = vmatpush1.bf16.msra.mxu0 0
        %1317 = vmatprep.subr.bf16.mxu0 0
        %1318 = vmatpush1.bf16.msra.mxu0 0
        %1319 = vmatprep.subr.bf16.mxu0 0
        %1320 = vmatpush1.bf16.msra.mxu0 %v1303
        %1321 = vmatprep.subr.bf16.mxu0 0
        %1322 = vmatpush2.bf16.msra.mxu0 0
        %1323 = vmatprep.subr.bf16.mxu0 0
        %1324 = vmatpush2.bf16.msra.mxu0 0
        %1325 = vmatprep.subr.bf16.mxu0 0
        %1326 = vmatpush2.bf16.msra.mxu0 0
        %1327 = vmatprep.subr.bf16.mxu0 0
        %1328 = vmatpush2.bf16.msra.mxu0 0
        %1329 = vmatprep.subr.bf16.mxu0 0
        %1330 = vmatpush2.bf16.msra.mxu0 0
        %1331 = vmatprep.subr.bf16.mxu0 0
        %1332 = vmatpush2.bf16.msra.mxu0 0
        %1333 = vmatprep.subr.bf16.mxu0 0
        %1334 = vmatpush2.bf16.msra.mxu0 0
        %1335 = vmatprep.subr.bf16.mxu0 0
        %1336 = vmatpush2.bf16.msra.mxu0 0
        %1337 = vmatprep.mubr.bf16.mxu0 0
        %1338 = vmatmul.mubr.bf16.gmra.mxu0 %v1300
        %v1339 = vpop.f32.mrf.mxu0
        %v1340 = vadd.f32 0.0, %v1339
        %v1341 = vpop.f32.mrf.mxu0
        %v1342 = vpop.f32.mrf.mxu0
        %v1343 = vpop.f32.mrf.mxu0
        %1344 = vdwg.mxu0
        %v1345 = vadd.f32 %v1119, %v1340
        %s1346 = scalar_lea.vmem %s1, 16
        %v1347 = vld [vmem:[%s1346] sm:$0xf]
        %v1348 = vld [vmem:[%s1346 + $0x4] sm:$0xf]
        %v1349 = vld [vmem:[%s1346 + $0x8] sm:$0xf]
        %v1350 = vld [vmem:[%s1346 + $0xc] sm:$0xf]
        %s1351 = scalar_lea.vmem %s2, 1
        %v1352 = vld [vmem:[%s1351] sm:$0x1]
        %v1354 = vlaneseq
        %v1355 = vshrl.u32 %v1354, 7
        %v1356 = vsub.s32 0, %v1355
        %v1357 = vrot.slane %v1352, %v1356
        %v1363 = vunpack.c.l.b16 %v1347
        %v1364 = vunpack.c.l.b16 %v1348
        %v1365 = vunpack.c.l.b16 %v1349
        %v1366 = vunpack.c.l.b16 %v1350
        %v1367 = vpack.c.b16 %v1364, %v1363
        %v1368 = vpack.c.b16 %v1366, %v1365
        %1371 = vmatprep.subr.bf16.mxu0 0
        %1372 = vmatpush1.bf16.msra.mxu0 0
        %1373 = vmatprep.subr.bf16.mxu0 0
        %1374 = vmatpush1.bf16.msra.mxu0 0
        %1375 = vmatprep.subr.bf16.mxu0 0
        %1376 = vmatpush1.bf16.msra.mxu0 0
        %1377 = vmatprep.subr.bf16.mxu0 0
        %1378 = vmatpush1.bf16.msra.mxu0 0
        %1379 = vmatprep.subr.bf16.mxu0 0
        %1380 = vmatpush1.bf16.msra.mxu0 0
        %1381 = vmatprep.subr.bf16.mxu0 0
        %1382 = vmatpush1.bf16.msra.mxu0 0
        %1383 = vmatprep.subr.bf16.mxu0 0
        %1384 = vmatpush1.bf16.msra.mxu0 %v1368
        %1385 = vmatprep.subr.bf16.mxu0 0
        %1386 = vmatpush1.bf16.msra.mxu0 %v1367
        %1387 = vmatprep.subr.bf16.mxu0 0
        %1388 = vmatpush2.bf16.msra.mxu0 0
        %1389 = vmatprep.subr.bf16.mxu0 0
        %1390 = vmatpush2.bf16.msra.mxu0 0
        %1391 = vmatprep.subr.bf16.mxu0 0
        %1392 = vmatpush2.bf16.msra.mxu0 0
        %1393 = vmatprep.subr.bf16.mxu0 0
        %1394 = vmatpush2.bf16.msra.mxu0 0
        %1395 = vmatprep.subr.bf16.mxu0 0
        %1396 = vmatpush2.bf16.msra.mxu0 0
        %1397 = vmatprep.subr.bf16.mxu0 0
        %1398 = vmatpush2.bf16.msra.mxu0 0
        %1399 = vmatprep.subr.bf16.mxu0 0
        %1400 = vmatpush2.bf16.msra.mxu0 0
        %1401 = vmatprep.subr.bf16.mxu0 0
        %1402 = vmatpush2.bf16.msra.mxu0 0
        %1403 = vmatprep.mubr.bf16.mxu0 0
        %1404 = vmatmul.mubr.bf16.gmra.mxu0 %v1146
        %v1405 = vpop.f32.mrf.mxu0
        %v1406 = vadd.f32 %v1357, %v1405
        %v1407 = vpop.f32.mrf.mxu0
        %v1408 = vpop.f32.mrf.mxu0
        %v1409 = vpop.f32.mrf.mxu0
        %1410 = vdwg.mxu0
        %v1411 = vpack.c.bf16 %v1406, %v1406
        %s1412 = scalar_lea.vmem [#allocation2], 4
        %v1413 = vld [vmem:[%s1412] sm:$0xf]
        %v1415 = vsel %vm1190, %v1411, 0
        %v1418 = vsel %vm1190, %v1413, 0
        %1420 = vmatprep.subr.bf16.mxu0 0
        %1421 = vmatpush1.bf16.xpose.msra.mxu0 0
        %1422 = vmatprep.subr.bf16.mxu0 0
        %1423 = vmatpush1.bf16.xpose.msra.mxu0 0
        %1424 = vmatprep.subr.bf16.mxu0 0
        %1425 = vmatpush1.bf16.xpose.msra.mxu0 0
        %1426 = vmatprep.subr.bf16.mxu0 0
        %1427 = vmatpush1.bf16.xpose.msra.mxu0 0
        %1428 = vmatprep.subr.bf16.mxu0 0
        %1429 = vmatpush1.bf16.xpose.msra.mxu0 0
        %1430 = vmatprep.subr.bf16.mxu0 0
        %1431 = vmatpush1.bf16.xpose.msra.mxu0 0
        %1432 = vmatprep.subr.bf16.mxu0 0
        %1433 = vmatpush1.bf16.xpose.msra.mxu0 0
        %1434 = vmatprep.subr.bf16.mxu0 0
        %1435 = vmatpush1.bf16.xpose.msra.mxu0 %v1418
        %1436 = vmatprep.subr.bf16.mxu0 0
        %1437 = vmatpush2.bf16.xpose.msra.mxu0 0
        %1438 = vmatprep.subr.bf16.mxu0 0
        %1439 = vmatpush2.bf16.xpose.msra.mxu0 0
        %1440 = vmatprep.subr.bf16.mxu0 0
        %1441 = vmatpush2.bf16.xpose.msra.mxu0 0
        %1442 = vmatprep.subr.bf16.mxu0 0
        %1443 = vmatpush2.bf16.xpose.msra.mxu0 0
        %1444 = vmatprep.subr.bf16.mxu0 0
        %1445 = vmatpush2.bf16.xpose.msra.mxu0 0
        %1446 = vmatprep.subr.bf16.mxu0 0
        %1447 = vmatpush2.bf16.xpose.msra.mxu0 0
        %1448 = vmatprep.subr.bf16.mxu0 0
        %1449 = vmatpush2.bf16.xpose.msra.mxu0 0
        %1450 = vmatprep.subr.bf16.mxu0 0
        %1451 = vmatpush2.bf16.xpose.msra.mxu0 0
        %1452 = vmatprep.mubr.bf16.mxu0 0
        %1453 = vmatmul.mubr.bf16.gmra.mxu0 %v1415
        %v1454 = vpop.f32.mrf.mxu0
        %v1455 = vadd.f32 0.0, %v1454
        %v1456 = vpop.f32.mrf.mxu0
        %v1457 = vpop.f32.mrf.mxu0
        %v1458 = vpop.f32.mrf.mxu0
        %1459 = vdwg.mxu0
        %v1460 = vsel %vm1190, %v1455, -inf
        %1461 = vmax.xlane.f32.xlu0 %v1460
        %v1462 = vpop.xlane.xlu0 %1461
        %v1463 = vsub.f32 %v1455, %v1462
        %v1464 = vmul.f32 %v1463, 1.442695
        %v1465 = vpow.pop %v1464
        %v1466 = vsel %vm1190, %v1465, 0.0
        %1467 = vadd.xlane.f32.xlu0 %v1466
        %v1468 = vpop.xlane.xlu0 %1467
        %v1469 = vrcp.pop %v1468
        %v1470 = vmul.f32 %v1465, %v1469
        %v1471 = vpack.c.bf16 %v1470, %v1470
        %s1472 = scalar_lea.vmem [#allocation3], 4
        %v1473 = vld [vmem:[%s1472] sm:$0xf]
        %v1475 = vsel %vm1190, %v1471, 0
        %v1478 = vsel %vm1253, %v1473, 0
        %1480 = vmatprep.subr.bf16.mxu0 0
        %1481 = vmatpush1.bf16.msra.mxu0 0
        %1482 = vmatprep.subr.bf16.mxu0 0
        %1483 = vmatpush1.bf16.msra.mxu0 0
        %1484 = vmatprep.subr.bf16.mxu0 0
        %1485 = vmatpush1.bf16.msra.mxu0 0
        %1486 = vmatprep.subr.bf16.mxu0 0
        %1487 = vmatpush1.bf16.msra.mxu0 0
        %1488 = vmatprep.subr.bf16.mxu0 0
        %1489 = vmatpush1.bf16.msra.mxu0 0
        %1490 = vmatprep.subr.bf16.mxu0 0
        %1491 = vmatpush1.bf16.msra.mxu0 0
        %1492 = vmatprep.subr.bf16.mxu0 0
        %1493 = vmatpush1.bf16.msra.mxu0 0
        %1494 = vmatprep.subr.bf16.mxu0 0
        %1495 = vmatpush1.bf16.msra.mxu0 %v1478
        %1496 = vmatprep.subr.bf16.mxu0 0
        %1497 = vmatpush2.bf16.msra.mxu0 0
        %1498 = vmatprep.subr.bf16.mxu0 0
        %1499 = vmatpush2.bf16.msra.mxu0 0
        %1500 = vmatprep.subr.bf16.mxu0 0
        %1501 = vmatpush2.bf16.msra.mxu0 0
        %1502 = vmatprep.subr.bf16.mxu0 0
        %1503 = vmatpush2.bf16.msra.mxu0 0
        %1504 = vmatprep.subr.bf16.mxu0 0
        %1505 = vmatpush2.bf16.msra.mxu0 0
        %1506 = vmatprep.subr.bf16.mxu0 0
        %1507 = vmatpush2.bf16.msra.mxu0 0
        %1508 = vmatprep.subr.bf16.mxu0 0
        %1509 = vmatpush2.bf16.msra.mxu0 0
        %1510 = vmatprep.subr.bf16.mxu0 0
        %1511 = vmatpush2.bf16.msra.mxu0 0
        %1512 = vmatprep.mubr.bf16.mxu0 0
        %1513 = vmatmul.mubr.bf16.gmra.mxu0 %v1475
        %v1514 = vpop.f32.mrf.mxu0
        %v1515 = vadd.f32 0.0, %v1514
        %v1516 = vpop.f32.mrf.mxu0
        %v1517 = vpop.f32.mrf.mxu0
        %v1518 = vpop.f32.mrf.mxu0
        %1519 = vdwg.mxu0
        %v1520 = vpack.c.bf16 %v1515, %v1515
        %s1521 = scalar_lea.vmem %s7, 4
        %v1522 = vld [vmem:[%s1521] sm:$0xf]
        %v1524 = vsel %vm1190, %v1520, 0
        %v1527 = vsel %vm1253, %v1522, 0
        %1529 = vmatprep.subr.bf16.mxu0 0
        %1530 = vmatpush1.bf16.msra.mxu0 0
        %1531 = vmatprep.subr.bf16.mxu0 0
        %1532 = vmatpush1.bf16.msra.mxu0 0
        %1533 = vmatprep.subr.bf16.mxu0 0
        %1534 = vmatpush1.bf16.msra.mxu0 0
        %1535 = vmatprep.subr.bf16.mxu0 0
        %1536 = vmatpush1.bf16.msra.mxu0 0
        %1537 = vmatprep.subr.bf16.mxu0 0
        %1538 = vmatpush1.bf16.msra.mxu0 0
        %1539 = vmatprep.subr.bf16.mxu0 0
        %1540 = vmatpush1.bf16.msra.mxu0 0
        %1541 = vmatprep.subr.bf16.mxu0 0
        %1542 = vmatpush1.bf16.msra.mxu0 0
        %1543 = vmatprep.subr.bf16.mxu0 0
        %1544 = vmatpush1.bf16.msra.mxu0 %v1527
        %1545 = vmatprep.subr.bf16.mxu0 0
        %1546 = vmatpush2.bf16.msra.mxu0 0
        %1547 = vmatprep.subr.bf16.mxu0 0
        %1548 = vmatpush2.bf16.msra.mxu0 0
        %1549 = vmatprep.subr.bf16.mxu0 0
        %1550 = vmatpush2.bf16.msra.mxu0 0
        %1551 = vmatprep.subr.bf16.mxu0 0
        %1552 = vmatpush2.bf16.msra.mxu0 0
        %1553 = vmatprep.subr.bf16.mxu0 0
        %1554 = vmatpush2.bf16.msra.mxu0 0
        %1555 = vmatprep.subr.bf16.mxu0 0
        %1556 = vmatpush2.bf16.msra.mxu0 0
        %1557 = vmatprep.subr.bf16.mxu0 0
        %1558 = vmatpush2.bf16.msra.mxu0 0
        %1559 = vmatprep.subr.bf16.mxu0 0
        %1560 = vmatpush2.bf16.msra.mxu0 0
        %1561 = vmatprep.mubr.bf16.mxu0 0
        %1562 = vmatmul.mubr.bf16.gmra.mxu0 %v1524
        %v1563 = vpop.f32.mrf.mxu0
        %v1564 = vadd.f32 0.0, %v1563
        %v1565 = vpop.f32.mrf.mxu0
        %v1566 = vpop.f32.mrf.mxu0
        %v1567 = vpop.f32.mrf.mxu0
        %1568 = vdwg.mxu0
        %v1569 = vadd.f32 %v1345, %v1564
        %s1570 = scalar_lea.vmem %s1, 32
        %v1571 = vld [vmem:[%s1570] sm:$0xf]
        %v1572 = vld [vmem:[%s1570 + $0x4] sm:$0xf]
        %v1573 = vld [vmem:[%s1570 + $0x8] sm:$0xf]
        %v1574 = vld [vmem:[%s1570 + $0xc] sm:$0xf]
        %s1575 = scalar_lea.vmem %s2, 2
        %v1576 = vld [vmem:[%s1575] sm:$0x1]
        %v1578 = vlaneseq
        %v1579 = vshrl.u32 %v1578, 7
        %v1580 = vsub.s32 0, %v1579
        %v1581 = vrot.slane %v1576, %v1580
        %v1587 = vunpack.c.l.b16 %v1571
        %v1588 = vunpack.c.l.b16 %v1572
        %v1589 = vunpack.c.l.b16 %v1573
        %v1590 = vunpack.c.l.b16 %v1574
        %v1591 = vpack.c.b16 %v1588, %v1587
        %v1592 = vpack.c.b16 %v1590, %v1589
        %1595 = vmatprep.subr.bf16.mxu0 0
        %1596 = vmatpush1.bf16.msra.mxu0 0
        %1597 = vmatprep.subr.bf16.mxu0 0
        %1598 = vmatpush1.bf16.msra.mxu0 0
        %1599 = vmatprep.subr.bf16.mxu0 0
        %1600 = vmatpush1.bf16.msra.mxu0 0
        %1601 = vmatprep.subr.bf16.mxu0 0
        %1602 = vmatpush1.bf16.msra.mxu0 0
        %1603 = vmatprep.subr.bf16.mxu0 0
        %1604 = vmatpush1.bf16.msra.mxu0 0
        %1605 = vmatprep.subr.bf16.mxu0 0
        %1606 = vmatpush1.bf16.msra.mxu0 0
        %1607 = vmatprep.subr.bf16.mxu0 0
        %1608 = vmatpush1.bf16.msra.mxu0 %v1592
        %1609 = vmatprep.subr.bf16.mxu0 0
        %1610 = vmatpush1.bf16.msra.mxu0 %v1591
        %1611 = vmatprep.subr.bf16.mxu0 0
        %1612 = vmatpush2.bf16.msra.mxu0 0
        %1613 = vmatprep.subr.bf16.mxu0 0
        %1614 = vmatpush2.bf16.msra.mxu0 0
        %1615 = vmatprep.subr.bf16.mxu0 0
        %1616 = vmatpush2.bf16.msra.mxu0 0
        %1617 = vmatprep.subr.bf16.mxu0 0
        %1618 = vmatpush2.bf16.msra.mxu0 0
        %1619 = vmatprep.subr.bf16.mxu0 0
        %1620 = vmatpush2.bf16.msra.mxu0 0
        %1621 = vmatprep.subr.bf16.mxu0 0
        %1622 = vmatpush2.bf16.msra.mxu0 0
        %1623 = vmatprep.subr.bf16.mxu0 0
        %1624 = vmatpush2.bf16.msra.mxu0 0
        %1625 = vmatprep.subr.bf16.mxu0 0
        %1626 = vmatpush2.bf16.msra.mxu0 0
        %1627 = vmatprep.mubr.bf16.mxu0 0
        %1628 = vmatmul.mubr.bf16.gmra.mxu0 %v1146
        %v1629 = vpop.f32.mrf.mxu0
        %v1630 = vadd.f32 %v1581, %v1629
        %v1631 = vpop.f32.mrf.mxu0
        %v1632 = vpop.f32.mrf.mxu0
        %v1633 = vpop.f32.mrf.mxu0
        %1634 = vdwg.mxu0
        %v1635 = vpack.c.bf16 %v1630, %v1630
        %s1636 = scalar_lea.vmem [#allocation2], 8
        %v1637 = vld [vmem:[%s1636] sm:$0xf]
        %v1639 = vsel %vm1190, %v1635, 0
        %v1642 = vsel %vm1190, %v1637, 0
        %1644 = vmatprep.subr.bf16.mxu0 0
        %1645 = vmatpush1.bf16.xpose.msra.mxu0 0
        %1646 = vmatprep.subr.bf16.mxu0 0
        %1647 = vmatpush1.bf16.xpose.msra.mxu0 0
        %1648 = vmatprep.subr.bf16.mxu0 0
        %1649 = vmatpush1.bf16.xpose.msra.mxu0 0
        %1650 = vmatprep.subr.bf16.mxu0 0
        %1651 = vmatpush1.bf16.xpose.msra.mxu0 0
        %1652 = vmatprep.subr.bf16.mxu0 0
        %1653 = vmatpush1.bf16.xpose.msra.mxu0 0
        %1654 = vmatprep.subr.bf16.mxu0 0
        %1655 = vmatpush1.bf16.xpose.msra.mxu0 0
        %1656 = vmatprep.subr.bf16.mxu0 0
        %1657 = vmatpush1.bf16.xpose.msra.mxu0 0
        %1658 = vmatprep.subr.bf16.mxu0 0
        %1659 = vmatpush1.bf16.xpose.msra.mxu0 %v1642
        %1660 = vmatprep.subr.bf16.mxu0 0
        %1661 = vmatpush2.bf16.xpose.msra.mxu0 0
        %1662 = vmatprep.subr.bf16.mxu0 0
        %1663 = vmatpush2.bf16.xpose.msra.mxu0 0
        %1664 = vmatprep.subr.bf16.mxu0 0
        %1665 = vmatpush2.bf16.xpose.msra.mxu0 0
        %1666 = vmatprep.subr.bf16.mxu0 0
        %1667 = vmatpush2.bf16.xpose.msra.mxu0 0
        %1668 = vmatprep.subr.bf16.mxu0 0
        %1669 = vmatpush2.bf16.xpose.msra.mxu0 0
        %1670 = vmatprep.subr.bf16.mxu0 0
        %1671 = vmatpush2.bf16.xpose.msra.mxu0 0
        %1672 = vmatprep.subr.bf16.mxu0 0
        %1673 = vmatpush2.bf16.xpose.msra.mxu0 0
        %1674 = vmatprep.subr.bf16.mxu0 0
        %1675 = vmatpush2.bf16.xpose.msra.mxu0 0
        %1676 = vmatprep.mubr.bf16.mxu0 0
        %1677 = vmatmul.mubr.bf16.gmra.mxu0 %v1639
        %v1678 = vpop.f32.mrf.mxu0
        %v1679 = vadd.f32 0.0, %v1678
        %v1680 = vpop.f32.mrf.mxu0
        %v1681 = vpop.f32.mrf.mxu0
        %v1682 = vpop.f32.mrf.mxu0
        %1683 = vdwg.mxu0
        %v1684 = vsel %vm1190, %v1679, -inf
        %1685 = vmax.xlane.f32.xlu0 %v1684
        %v1686 = vpop.xlane.xlu0 %1685
        %v1687 = vsub.f32 %v1679, %v1686
        %v1688 = vmul.f32 %v1687, 1.442695
        %v1689 = vpow.pop %v1688
        %v1690 = vsel %vm1190, %v1689, 0.0
        %1691 = vadd.xlane.f32.xlu0 %v1690
        %v1692 = vpop.xlane.xlu0 %1691
        %v1693 = vrcp.pop %v1692
        %v1694 = vmul.f32 %v1689, %v1693
        %v1695 = vpack.c.bf16 %v1694, %v1694
        %s1696 = scalar_lea.vmem [#allocation3], 8
        %v1697 = vld [vmem:[%s1696] sm:$0xf]
        %v1699 = vsel %vm1190, %v1695, 0
        %v1702 = vsel %vm1253, %v1697, 0
        %1704 = vmatprep.subr.bf16.mxu0 0
        %1705 = vmatpush1.bf16.msra.mxu0 0
        %1706 = vmatprep.subr.bf16.mxu0 0
        %1707 = vmatpush1.bf16.msra.mxu0 0
        %1708 = vmatprep.subr.bf16.mxu0 0
        %1709 = vmatpush1.bf16.msra.mxu0 0
        %1710 = vmatprep.subr.bf16.mxu0 0
        %1711 = vmatpush1.bf16.msra.mxu0 0
        %1712 = vmatprep.subr.bf16.mxu0 0
        %1713 = vmatpush1.bf16.msra.mxu0 0
        %1714 = vmatprep.subr.bf16.mxu0 0
        %1715 = vmatpush1.bf16.msra.mxu0 0
        %1716 = vmatprep.subr.bf16.mxu0 0
        %1717 = vmatpush1.bf16.msra.mxu0 0
        %1718 = vmatprep.subr.bf16.mxu0 0
        %1719 = vmatpush1.bf16.msra.mxu0 %v1702
        %1720 = vmatprep.subr.bf16.mxu0 0
        %1721 = vmatpush2.bf16.msra.mxu0 0
        %1722 = vmatprep.subr.bf16.mxu0 0
        %1723 = vmatpush2.bf16.msra.mxu0 0
        %1724 = vmatprep.subr.bf16.mxu0 0
        %1725 = vmatpush2.bf16.msra.mxu0 0
        %1726 = vmatprep.subr.bf16.mxu0 0
        %1727 = vmatpush2.bf16.msra.mxu0 0
        %1728 = vmatprep.subr.bf16.mxu0 0
        %1729 = vmatpush2.bf16.msra.mxu0 0
        %1730 = vmatprep.subr.bf16.mxu0 0
        %1731 = vmatpush2.bf16.msra.mxu0 0
        %1732 = vmatprep.subr.bf16.mxu0 0
        %1733 = vmatpush2.bf16.msra.mxu0 0
        %1734 = vmatprep.subr.bf16.mxu0 0
        %1735 = vmatpush2.bf16.msra.mxu0 0
        %1736 = vmatprep.mubr.bf16.mxu0 0
        %1737 = vmatmul.mubr.bf16.gmra.mxu0 %v1699
        %v1738 = vpop.f32.mrf.mxu0
        %v1739 = vadd.f32 0.0, %v1738
        %v1740 = vpop.f32.mrf.mxu0
        %v1741 = vpop.f32.mrf.mxu0
        %v1742 = vpop.f32.mrf.mxu0
        %1743 = vdwg.mxu0
        %v1744 = vpack.c.bf16 %v1739, %v1739
        %s1745 = scalar_lea.vmem %s7, 8
        %v1746 = vld [vmem:[%s1745] sm:$0xf]
        %v1748 = vsel %vm1190, %v1744, 0
        %v1751 = vsel %vm1253, %v1746, 0
        %1753 = vmatprep.subr.bf16.mxu0 0
        %1754 = vmatpush1.bf16.msra.mxu0 0
        %1755 = vmatprep.subr.bf16.mxu0 0
        %1756 = vmatpush1.bf16.msra.mxu0 0
        %1757 = vmatprep.subr.bf16.mxu0 0
        %1758 = vmatpush1.bf16.msra.mxu0 0
        %1759 = vmatprep.subr.bf16.mxu0 0
        %1760 = vmatpush1.bf16.msra.mxu0 0
        %1761 = vmatprep.subr.bf16.mxu0 0
        %1762 = vmatpush1.bf16.msra.mxu0 0
        %1763 = vmatprep.subr.bf16.mxu0 0
        %1764 = vmatpush1.bf16.msra.mxu0 0
        %1765 = vmatprep.subr.bf16.mxu0 0
        %1766 = vmatpush1.bf16.msra.mxu0 0
        %1767 = vmatprep.subr.bf16.mxu0 0
        %1768 = vmatpush1.bf16.msra.mxu0 %v1751
        %1769 = vmatprep.subr.bf16.mxu0 0
        %1770 = vmatpush2.bf16.msra.mxu0 0
        %1771 = vmatprep.subr.bf16.mxu0 0
        %1772 = vmatpush2.bf16.msra.mxu0 0
        %1773 = vmatprep.subr.bf16.mxu0 0
        %1774 = vmatpush2.bf16.msra.mxu0 0
        %1775 = vmatprep.subr.bf16.mxu0 0
        %1776 = vmatpush2.bf16.msra.mxu0 0
        %1777 = vmatprep.subr.bf16.mxu0 0
        %1778 = vmatpush2.bf16.msra.mxu0 0
        %1779 = vmatprep.subr.bf16.mxu0 0
        %1780 = vmatpush2.bf16.msra.mxu0 0
        %1781 = vmatprep.subr.bf16.mxu0 0
        %1782 = vmatpush2.bf16.msra.mxu0 0
        %1783 = vmatprep.subr.bf16.mxu0 0
        %1784 = vmatpush2.bf16.msra.mxu0 0
        %1785 = vmatprep.mubr.bf16.mxu0 0
        %1786 = vmatmul.mubr.bf16.gmra.mxu0 %v1748
        %v1787 = vpop.f32.mrf.mxu0
        %v1788 = vadd.f32 0.0, %v1787
        %v1789 = vpop.f32.mrf.mxu0
        %v1790 = vpop.f32.mrf.mxu0
        %v1791 = vpop.f32.mrf.mxu0
        %1792 = vdwg.mxu0
        %v1793 = vadd.f32 %v1569, %v1788
        %s1794 = scalar_lea.vmem %s1, 48
        %v1795 = vld [vmem:[%s1794] sm:$0xf]
        %v1796 = vld [vmem:[%s1794 + $0x4] sm:$0xf]
        %v1797 = vld [vmem:[%s1794 + $0x8] sm:$0xf]
        %v1798 = vld [vmem:[%s1794 + $0xc] sm:$0xf]
        %s1799 = scalar_lea.vmem %s2, 3
        %v1800 = vld [vmem:[%s1799] sm:$0x1]
        %v1802 = vlaneseq
        %v1803 = vshrl.u32 %v1802, 7
        %v1804 = vsub.s32 0, %v1803
        %v1805 = vrot.slane %v1800, %v1804
        %v1811 = vunpack.c.l.b16 %v1795
        %v1812 = vunpack.c.l.b16 %v1796
        %v1813 = vunpack.c.l.b16 %v1797
        %v1814 = vunpack.c.l.b16 %v1798
        %v1815 = vpack.c.b16 %v1812, %v1811
        %v1816 = vpack.c.b16 %v1814, %v1813
        %1819 = vmatprep.subr.bf16.mxu0 0
        %1820 = vmatpush1.bf16.msra.mxu0 0
        %1821 = vmatprep.subr.bf16.mxu0 0
        %1822 = vmatpush1.bf16.msra.mxu0 0
        %1823 = vmatprep.subr.bf16.mxu0 0
        %1824 = vmatpush1.bf16.msra.mxu0 0
        %1825 = vmatprep.subr.bf16.mxu0 0
        %1826 = vmatpush1.bf16.msra.mxu0 0
        %1827 = vmatprep.subr.bf16.mxu0 0
        %1828 = vmatpush1.bf16.msra.mxu0 0
        %1829 = vmatprep.subr.bf16.mxu0 0
        %1830 = vmatpush1.bf16.msra.mxu0 0
        %1831 = vmatprep.subr.bf16.mxu0 0
        %1832 = vmatpush1.bf16.msra.mxu0 %v1816
        %1833 = vmatprep.subr.bf16.mxu0 0
        %1834 = vmatpush1.bf16.msra.mxu0 %v1815
        %1835 = vmatprep.subr.bf16.mxu0 0
        %1836 = vmatpush2.bf16.msra.mxu0 0
        %1837 = vmatprep.subr.bf16.mxu0 0
        %1838 = vmatpush2.bf16.msra.mxu0 0
        %1839 = vmatprep.subr.bf16.mxu0 0
        %1840 = vmatpush2.bf16.msra.mxu0 0
        %1841 = vmatprep.subr.bf16.mxu0 0
        %1842 = vmatpush2.bf16.msra.mxu0 0
        %1843 = vmatprep.subr.bf16.mxu0 0
        %1844 = vmatpush2.bf16.msra.mxu0 0
        %1845 = vmatprep.subr.bf16.mxu0 0
        %1846 = vmatpush2.bf16.msra.mxu0 0
        %1847 = vmatprep.subr.bf16.mxu0 0
        %1848 = vmatpush2.bf16.msra.mxu0 0
        %1849 = vmatprep.subr.bf16.mxu0 0
        %1850 = vmatpush2.bf16.msra.mxu0 0
        %1851 = vmatprep.mubr.bf16.mxu0 0
        %1852 = vmatmul.mubr.bf16.gmra.mxu0 %v1146
        %v1853 = vpop.f32.mrf.mxu0
        %v1854 = vadd.f32 %v1805, %v1853
        %v1855 = vpop.f32.mrf.mxu0
        %v1856 = vpop.f32.mrf.mxu0
        %v1857 = vpop.f32.mrf.mxu0
        %1858 = vdwg.mxu0
        %v1859 = vpack.c.bf16 %v1854, %v1854
        %s1860 = scalar_lea.vmem [#allocation2], 12
        %v1861 = vld [vmem:[%s1860] sm:$0xf]
        %v1863 = vsel %vm1190, %v1859, 0
        %v1866 = vsel %vm1190, %v1861, 0
        %1868 = vmatprep.subr.bf16.mxu0 0
        %1869 = vmatpush1.bf16.xpose.msra.mxu0 0
        %1870 = vmatprep.subr.bf16.mxu0 0
        %1871 = vmatpush1.bf16.xpose.msra.mxu0 0
        %1872 = vmatprep.subr.bf16.mxu0 0
        %1873 = vmatpush1.bf16.xpose.msra.mxu0 0
        %1874 = vmatprep.subr.bf16.mxu0 0
        %1875 = vmatpush1.bf16.xpose.msra.mxu0 0
        %1876 = vmatprep.subr.bf16.mxu0 0
        %1877 = vmatpush1.bf16.xpose.msra.mxu0 0
        %1878 = vmatprep.subr.bf16.mxu0 0
        %1879 = vmatpush1.bf16.xpose.msra.mxu0 0
        %1880 = vmatprep.subr.bf16.mxu0 0
        %1881 = vmatpush1.bf16.xpose.msra.mxu0 0
        %1882 = vmatprep.subr.bf16.mxu0 0
        %1883 = vmatpush1.bf16.xpose.msra.mxu0 %v1866
        %1884 = vmatprep.subr.bf16.mxu0 0
        %1885 = vmatpush2.bf16.xpose.msra.mxu0 0
        %1886 = vmatprep.subr.bf16.mxu0 0
        %1887 = vmatpush2.bf16.xpose.msra.mxu0 0
        %1888 = vmatprep.subr.bf16.mxu0 0
        %1889 = vmatpush2.bf16.xpose.msra.mxu0 0
        %1890 = vmatprep.subr.bf16.mxu0 0
        %1891 = vmatpush2.bf16.xpose.msra.mxu0 0
        %1892 = vmatprep.subr.bf16.mxu0 0
        %1893 = vmatpush2.bf16.xpose.msra.mxu0 0
        %1894 = vmatprep.subr.bf16.mxu0 0
        %1895 = vmatpush2.bf16.xpose.msra.mxu0 0
        %1896 = vmatprep.subr.bf16.mxu0 0
        %1897 = vmatpush2.bf16.xpose.msra.mxu0 0
        %1898 = vmatprep.subr.bf16.mxu0 0
        %1899 = vmatpush2.bf16.xpose.msra.mxu0 0
        %1900 = vmatprep.mubr.bf16.mxu0 0
        %1901 = vmatmul.mubr.bf16.gmra.mxu0 %v1863
        %v1902 = vpop.f32.mrf.mxu0
        %v1903 = vadd.f32 0.0, %v1902
        %v1904 = vpop.f32.mrf.mxu0
        %v1905 = vpop.f32.mrf.mxu0
        %v1906 = vpop.f32.mrf.mxu0
        %1907 = vdwg.mxu0
        %v1908 = vsel %vm1190, %v1903, -inf
        %1909 = vmax.xlane.f32.xlu0 %v1908
        %v1910 = vpop.xlane.xlu0 %1909
        %v1911 = vsub.f32 %v1903, %v1910
        %v1912 = vmul.f32 %v1911, 1.442695
        %v1913 = vpow.pop %v1912
        %v1914 = vsel %vm1190, %v1913, 0.0
        %1915 = vadd.xlane.f32.xlu0 %v1914
        %v1916 = vpop.xlane.xlu0 %1915
        %v1917 = vrcp.pop %v1916
        %v1918 = vmul.f32 %v1913, %v1917
        %v1919 = vpack.c.bf16 %v1918, %v1918
        %s1920 = scalar_lea.vmem [#allocation3], 12
        %v1921 = vld [vmem:[%s1920] sm:$0xf]
        %v1923 = vsel %vm1190, %v1919, 0
        %v1926 = vsel %vm1253, %v1921, 0
        %1928 = vmatprep.subr.bf16.mxu0 0
        %1929 = vmatpush1.bf16.msra.mxu0 0
        %1930 = vmatprep.subr.bf16.mxu0 0
        %1931 = vmatpush1.bf16.msra.mxu0 0
        %1932 = vmatprep.subr.bf16.mxu0 0
        %1933 = vmatpush1.bf16.msra.mxu0 0
        %1934 = vmatprep.subr.bf16.mxu0 0
        %1935 = vmatpush1.bf16.msra.mxu0 0
        %1936 = vmatprep.subr.bf16.mxu0 0
        %1937 = vmatpush1.bf16.msra.mxu0 0
        %1938 = vmatprep.subr.bf16.mxu0 0
        %1939 = vmatpush1.bf16.msra.mxu0 0
        %1940 = vmatprep.subr.bf16.mxu0 0
        %1941 = vmatpush1.bf16.msra.mxu0 0
        %1942 = vmatprep.subr.bf16.mxu0 0
        %1943 = vmatpush1.bf16.msra.mxu0 %v1926
        %1944 = vmatprep.subr.bf16.mxu0 0
        %1945 = vmatpush2.bf16.msra.mxu0 0
        %1946 = vmatprep.subr.bf16.mxu0 0
        %1947 = vmatpush2.bf16.msra.mxu0 0
        %1948 = vmatprep.subr.bf16.mxu0 0
        %1949 = vmatpush2.bf16.msra.mxu0 0
        %1950 = vmatprep.subr.bf16.mxu0 0
        %1951 = vmatpush2.bf16.msra.mxu0 0
        %1952 = vmatprep.subr.bf16.mxu0 0
        %1953 = vmatpush2.bf16.msra.mxu0 0
        %1954 = vmatprep.subr.bf16.mxu0 0
        %1955 = vmatpush2.bf16.msra.mxu0 0
        %1956 = vmatprep.subr.bf16.mxu0 0
        %1957 = vmatpush2.bf16.msra.mxu0 0
        %1958 = vmatprep.subr.bf16.mxu0 0
        %1959 = vmatpush2.bf16.msra.mxu0 0
        %1960 = vmatprep.mubr.bf16.mxu0 0
        %1961 = vmatmul.mubr.bf16.gmra.mxu0 %v1923
        %v1962 = vpop.f32.mrf.mxu0
        %v1963 = vadd.f32 0.0, %v1962
        %v1964 = vpop.f32.mrf.mxu0
        %v1965 = vpop.f32.mrf.mxu0
        %v1966 = vpop.f32.mrf.mxu0
        %1967 = vdwg.mxu0
        %v1968 = vpack.c.bf16 %v1963, %v1963
        %s1969 = scalar_lea.vmem %s7, 12
        %v1970 = vld [vmem:[%s1969] sm:$0xf]
        %v1972 = vsel %vm1190, %v1968, 0
        %v1975 = vsel %vm1253, %v1970, 0
        %1977 = vmatprep.subr.bf16.mxu0 0
        %1978 = vmatpush1.bf16.msra.mxu0 0
        %1979 = vmatprep.subr.bf16.mxu0 0
        %1980 = vmatpush1.bf16.msra.mxu0 0
        %1981 = vmatprep.subr.bf16.mxu0 0
        %1982 = vmatpush1.bf16.msra.mxu0 0
        %1983 = vmatprep.subr.bf16.mxu0 0
        %1984 = vmatpush1.bf16.msra.mxu0 0
        %1985 = vmatprep.subr.bf16.mxu0 0
        %1986 = vmatpush1.bf16.msra.mxu0 0
        %1987 = vmatprep.subr.bf16.mxu0 0
        %1988 = vmatpush1.bf16.msra.mxu0 0
        %1989 = vmatprep.subr.bf16.mxu0 0
        %1990 = vmatpush1.bf16.msra.mxu0 0
        %1991 = vmatprep.subr.bf16.mxu0 0
        %1992 = vmatpush1.bf16.msra.mxu0 %v1975
        %1993 = vmatprep.subr.bf16.mxu0 0
        %1994 = vmatpush2.bf16.msra.mxu0 0
        %1995 = vmatprep.subr.bf16.mxu0 0
        %1996 = vmatpush2.bf16.msra.mxu0 0
        %1997 = vmatprep.subr.bf16.mxu0 0
        %1998 = vmatpush2.bf16.msra.mxu0 0
        %1999 = vmatprep.subr.bf16.mxu0 0
        %2000 = vmatpush2.bf16.msra.mxu0 0
        %2001 = vmatprep.subr.bf16.mxu0 0
        %2002 = vmatpush2.bf16.msra.mxu0 0
        %2003 = vmatprep.subr.bf16.mxu0 0
        %2004 = vmatpush2.bf16.msra.mxu0 0
        %2005 = vmatprep.subr.bf16.mxu0 0
        %2006 = vmatpush2.bf16.msra.mxu0 0
        %2007 = vmatprep.subr.bf16.mxu0 0
        %2008 = vmatpush2.bf16.msra.mxu0 0
        %2009 = vmatprep.mubr.bf16.mxu0 0
        %2010 = vmatmul.mubr.bf16.gmra.mxu0 %v1972
        %v2011 = vpop.f32.mrf.mxu0
        %v2012 = vadd.f32 0.0, %v2011
        %v2013 = vpop.f32.mrf.mxu0
        %v2014 = vpop.f32.mrf.mxu0
        %v2015 = vpop.f32.mrf.mxu0
        %2016 = vdwg.mxu0
        %v2017 = vadd.f32 %v1793, %v2012
        %v2018 = vadd.f32 %v2017, %v1113
        %v2019 = vsel %vm1144, %v2018, 0.0
        %2020 = vadd.xlane.f32.xlu0 %v2019
        %v2021 = vpop.xlane.xlu0 %2020
        %v2022 = vrcp.pop 32.0
        %v2023 = vmul.f32 %v2021, %v2022
        %v2024 = vsub.f32 %v2018, %v2023
        %v2025 = vmul.f32 %v2024, %v2024
        %v2026 = vsel %vm1144, %v2025, 0.0
        %2027 = vadd.xlane.f32.xlu0 %v2026
        %v2028 = vpop.xlane.xlu0 %2027
        %v2029 = vmul.f32 %v2028, %v2022
        %v2030 = vadd.f32 %v2029, 1e-12
        %v2031 = vrsqrt.pop %v2030
        %v2032 = vmul.f32 %v2024, %v2031
        %v2033 = vld [vmem:[%s9] sm:$0x1]
        %v2035 = vlaneseq
        %v2036 = vshrl.u32 %v2035, 7
        %v2037 = vsub.s32 0, %v2036
        %v2038 = vrot.slane %v2033, %v2037
        %v2040 = vmul.f32 %v2032, %v2038
        %v2041 = vld [vmem:[%s10] sm:$0x1]
        %v2043 = vlaneseq
        %v2044 = vshrl.u32 %v2043, 7
        %v2045 = vsub.s32 0, %v2044
        %v2046 = vrot.slane %v2041, %v2045
        %v2048 = vadd.f32 %v2040, %v2046
        %v2049 = vpack.c.bf16 %v2048, %v2048
        %v2050 = vld [vmem:[%s14] sm:$0x1]
        %v2052 = vlaneseq
        %v2053 = vshrl.u32 %v2052, 7
        %v2054 = vsub.s32 0, %v2053
        %v2055 = vrot.slane %v2050, %v2054
        %v2057 = vld [vmem:[%s11] sm:$0xf]
        %v2058 = vld [vmem:[%s11 + $0x4] sm:$0xf]
        %v2059 = vld [vmem:[%s11 + $0x8] sm:$0xf]
        %v2060 = vld [vmem:[%s11 + $0xc] sm:$0xf]
        %v2061 = vld [vmem:[%s12] sm:$0x1]
        %v2063 = vlaneseq
        %v2064 = vshrl.u32 %v2063, 7
        %v2065 = vsub.s32 0, %v2064
        %v2066 = vrot.slane %v2061, %v2065
        %v2072 = vunpack.c.l.b16 %v2057
        %v2073 = vunpack.c.l.b16 %v2058
        %v2074 = vunpack.c.l.b16 %v2059
        %v2075 = vunpack.c.l.b16 %v2060
        %v2076 = vpack.c.b16 %v2073, %v2072
        %v2077 = vpack.c.b16 %v2075, %v2074
        %v2081 = vsel %vm1144, %v2049, 0
        %2083 = vmatprep.subr.bf16.mxu0 0
        %2084 = vmatpush1.bf16.msra.mxu0 0
        %2085 = vmatprep.subr.bf16.mxu0 0
        %2086 = vmatpush1.bf16.msra.mxu0 0
        %2087 = vmatprep.subr.bf16.mxu0 0
        %2088 = vmatpush1.bf16.msra.mxu0 0
        %2089 = vmatprep.subr.bf16.mxu0 0
        %2090 = vmatpush1.bf16.msra.mxu0 0
        %2091 = vmatprep.subr.bf16.mxu0 0
        %2092 = vmatpush1.bf16.msra.mxu0 0
        %2093 = vmatprep.subr.bf16.mxu0 0
        %2094 = vmatpush1.bf16.msra.mxu0 0
        %2095 = vmatprep.subr.bf16.mxu0 0
        %2096 = vmatpush1.bf16.msra.mxu0 %v2077
        %2097 = vmatprep.subr.bf16.mxu0 0
        %2098 = vmatpush1.bf16.msra.mxu0 %v2076
        %2099 = vmatprep.subr.bf16.mxu0 0
        %2100 = vmatpush2.bf16.msra.mxu0 0
        %2101 = vmatprep.subr.bf16.mxu0 0
        %2102 = vmatpush2.bf16.msra.mxu0 0
        %2103 = vmatprep.subr.bf16.mxu0 0
        %2104 = vmatpush2.bf16.msra.mxu0 0
        %2105 = vmatprep.subr.bf16.mxu0 0
        %2106 = vmatpush2.bf16.msra.mxu0 0
        %2107 = vmatprep.subr.bf16.mxu0 0
        %2108 = vmatpush2.bf16.msra.mxu0 0
        %2109 = vmatprep.subr.bf16.mxu0 0
        %2110 = vmatpush2.bf16.msra.mxu0 0
        %2111 = vmatprep.subr.bf16.mxu0 0
        %2112 = vmatpush2.bf16.msra.mxu0 0
        %2113 = vmatprep.subr.bf16.mxu0 0
        %2114 = vmatpush2.bf16.msra.mxu0 0
        %2115 = vmatprep.mubr.bf16.mxu0 0
        %2116 = vmatmul.mubr.bf16.gmra.mxu0 %v2081
        %v2117 = vpop.f32.mrf.mxu0
        %v2118 = vadd.f32 %v2066, %v2117
        %v2119 = vpop.f32.mrf.mxu0
        %v2120 = vpop.f32.mrf.mxu0
        %v2121 = vpop.f32.mrf.mxu0
        %2122 = vdwg.mxu0
        %v2123 = vmax.f32 %v2118, 0.0
        %v2124 = vpack.c.bf16 %v2123, %v2123
        %v2125 = vld [vmem:[%s13] sm:$0xf]
        %v2126 = vld [vmem:[%s13 + $0x4] sm:$0xf]
        %v2127 = vld [vmem:[%s13 + $0x8] sm:$0xf]
        %v2128 = vld [vmem:[%s13 + $0xc] sm:$0xf]
        %v2129 = vld [vmem:[%s13 + $0x10] sm:$0xf]
        %v2130 = vld [vmem:[%s13 + $0x14] sm:$0xf]
        %v2131 = vld [vmem:[%s13 + $0x18] sm:$0xf]
        %v2132 = vld [vmem:[%s13 + $0x1c] sm:$0xf]
        %v2141 = vunpack.c.l.b16 %v2125
        %v2142 = vunpack.c.l.b16 %v2126
        %v2143 = vunpack.c.l.b16 %v2127
        %v2144 = vunpack.c.l.b16 %v2128
        %v2145 = vunpack.c.l.b16 %v2129
        %v2146 = vunpack.c.l.b16 %v2130
        %v2147 = vunpack.c.l.b16 %v2131
        %v2148 = vunpack.c.l.b16 %v2132
        %v2149 = vpack.c.b16 %v2142, %v2141
        %v2150 = vpack.c.b16 %v2144, %v2143
        %v2151 = vpack.c.b16 %v2146, %v2145
        %v2152 = vpack.c.b16 %v2148, %v2147
        %vm2157 = vcmask 523264
        %v2159 = vsel %vm2157, %v2124, 0
        %2161 = vmatprep.subr.bf16.mxu0 0
        %2162 = vmatpush1.bf16.msra.mxu0 0
        %2163 = vmatprep.subr.bf16.mxu0 0
        %2164 = vmatpush1.bf16.msra.mxu0 0
        %2165 = vmatprep.subr.bf16.mxu0 0
        %2166 = vmatpush1.bf16.msra.mxu0 0
        %2167 = vmatprep.subr.bf16.mxu0 0
        %2168 = vmatpush1.bf16.msra.mxu0 0
        %2169 = vmatprep.subr.bf16.mxu0 0
        %2170 = vmatpush1.bf16.msra.mxu0 %v2152
        %2171 = vmatprep.subr.bf16.mxu0 0
        %2172 = vmatpush1.bf16.msra.mxu0 %v2151
        %2173 = vmatprep.subr.bf16.mxu0 0
        %2174 = vmatpush1.bf16.msra.mxu0 %v2150
        %2175 = vmatprep.subr.bf16.mxu0 0
        %2176 = vmatpush1.bf16.msra.mxu0 %v2149
        %2177 = vmatprep.subr.bf16.mxu0 0
        %2178 = vmatpush2.bf16.msra.mxu0 0
        %2179 = vmatprep.subr.bf16.mxu0 0
        %2180 = vmatpush2.bf16.msra.mxu0 0
        %2181 = vmatprep.subr.bf16.mxu0 0
        %2182 = vmatpush2.bf16.msra.mxu0 0
        %2183 = vmatprep.subr.bf16.mxu0 0
        %2184 = vmatpush2.bf16.msra.mxu0 0
        %2185 = vmatprep.subr.bf16.mxu0 0
        %2186 = vmatpush2.bf16.msra.mxu0 0
        %2187 = vmatprep.subr.bf16.mxu0 0
        %2188 = vmatpush2.bf16.msra.mxu0 0
        %2189 = vmatprep.subr.bf16.mxu0 0
        %2190 = vmatpush2.bf16.msra.mxu0 0
        %2191 = vmatprep.subr.bf16.mxu0 0
        %2192 = vmatpush2.bf16.msra.mxu0 0
        %2193 = vmatprep.mubr.bf16.mxu0 0
        %2194 = vmatmul.mubr.bf16.gmra.mxu0 %v2159
        %v2195 = vpop.f32.mrf.mxu0
        %v2196 = vadd.f32 0.0, %v2195
        %v2197 = vpop.f32.mrf.mxu0
        %v2198 = vpop.f32.mrf.mxu0
        %v2199 = vpop.f32.mrf.mxu0
        %2200 = vdwg.mxu0
        %v2201 = vadd.f32 %v2055, %v2196
        %v2202 = vadd.f32 %v2201, %v2048
        %v2203 = vsel %vm1144, %v2202, 0.0
        %2204 = vadd.xlane.f32.xlu0 %v2203
        %v2205 = vpop.xlane.xlu0 %2204
        %v2206 = vmul.f32 %v2205, %v2022
        %v2207 = vsub.f32 %v2202, %v2206
        %v2208 = vmul.f32 %v2207, %v2207
        %v2209 = vsel %vm1144, %v2208, 0.0
        %2210 = vadd.xlane.f32.xlu0 %v2209
        %v2211 = vpop.xlane.xlu0 %2210
        %v2212 = vmul.f32 %v2211, %v2022
        %v2213 = vadd.f32 %v2212, 1e-12
        %v2214 = vrsqrt.pop %v2213
        %v2215 = vmul.f32 %v2207, %v2214
        %v2216 = vld [vmem:[%s15] sm:$0x1]
        %v2218 = vlaneseq
        %v2219 = vshrl.u32 %v2218, 7
        %v2220 = vsub.s32 0, %v2219
        %v2221 = vrot.slane %v2216, %v2220
        %v2223 = vmul.f32 %v2215, %v2221
        %v2224 = vld [vmem:[%s16] sm:$0x1]
        %v2226 = vlaneseq
        %v2227 = vshrl.u32 %v2226, 7
        %v2228 = vsub.s32 0, %v2227
        %v2229 = vrot.slane %v2224, %v2228
        %v2231 = vadd.f32 %v2223, %v2229
        %2232 = vst.msk [vmem:[%s553] sm:$0xff] %vm1144, %v2231
        %s2233 = sand.u32 %s415, 1
        %s2234 = scalar_lea.sflag [#allocation5], %s2233
        %s2235 = sand.u32 %s415, 1
        %s2236 = smul.addr %s2235, 8
        %s2237 = scalar_lea.vmem [#allocation4], %s2236
        // Predicated region
        $region93: #{tpu_custom_call.1} parent=87 // pred_check
          %p2238 = pneg %p425
        $region94: #{tpu_custom_call.1} parent=87 // pred_check_branch
          %2240 = sbr.rel (%p2238) target = $region96
        $region95: #{tpu_custom_call.1} parent=87 // pred_region
          %s2242 = ssub.s32 128, 128
          %2243 = vsyncadd %s2234, %s2242
          %s2244 = sadd.s32 %s36, %s35
          %s2245 = smul.addr %s2244, 128
          %s2246 = scalar_lea.hbm %s17, %s2245
          %s2248 = sshll.u32 %s2237, 4
          %s2249 = int_to_ptr.vmem [resolvable:$true] %s2248
          %2251 = dma.vmem_to_hbm [thread:$0]  %s2249, 128, %s2246, %s2234
        $region96: #{tpu_custom_call.1} parent=87 // pred_fallthru
          _
      $region88: #{tpu_custom_call.1} parent=5 // pred_fallthru
        _
      %p2252 = scmp.le.s32.totalorder 2, %s26
      // Predicated region
      $region97: #{tpu_custom_call.1} parent=5 // pred_check
        %p2253 = pneg %p2252
      $region98: #{tpu_custom_call.1} parent=5 // pred_check_branch
        %2255 = sbr.rel (%p2253) target = $region100
      $region99: #{tpu_custom_call.1} parent=5 // pred_region
        %s2256 = ssub.s32 %s26, 2
        // Predicated region
        $region101: #{tpu_custom_call.1} parent=99 // pred_check
          %p2257 = pneg %p431
        $region102: #{tpu_custom_call.1} parent=99 // pred_check_branch
          %2259 = sbr.rel (%p2257) target = $region104
        $region103: #{tpu_custom_call.1} parent=99 // pred_region
          %s2260 = sand.u32 %s416, 1
          %s2261 = scalar_lea.sflag [#allocation5], %s2260
          %s2262 = sand.u32 %s416, 1
          %s2263 = smul.addr %s2262, 8
          %s2264 = scalar_lea.vmem [#allocation4], %s2263
          %2265 = dma.done %s2261, 128
        $region104: #{tpu_custom_call.1} parent=99 // pred_fallthru
          _
      $region100: #{tpu_custom_call.1} parent=5 // pred_fallthru
        _
    $region6: #{tpu_custom_call.1} parent=1 // loop_footer
      %s30 = sadd.s32 1, %s26
    $region7: #{tpu_custom_call.1} parent=1 // loop_footer_branch
      %25 = sbr.rel target = $region3
    $region8: #{tpu_custom_call.1} parent=1 // loop_exit
      _
    %2266 = vsyncpa [#allocation5], 1
    %s2267 = scalar_lea.sflag [#allocation5], 1
    %2268 = vsyncpa %s2267, 1

// kernel: tpu_custom_call.1
$region0: #{tpu_custom_call.1}
  #allocation0 [shape = 'u32[]', space=smem, size = 0x4, offset = 0x4, fixed_abs, tag = 'smem constant byte address 0x4 - core index']
  #allocation1 [shape = 'u32[144,128]{1,0:T(1,128)}', space=vmem, size = 0x12000, scoped, tag = 'internal scratch']
  #allocation2 [shape = 'bf16[4,8,8]{2,1,0:T(8,128)(2,1)}', space=vmem, size = 0x2000, scoped, tag = 'scratch operand']
  #allocation3 [shape = 'bf16[4,8,8]{2,1,0:T(8,128)(2,1)}', space=vmem, size = 0x2000, scoped, tag = 'scratch operand']
  %s0 = inlined_call_operand.vmem [shape: bf16[2,8,32], index: 0, kind: input, shape index: {}]
  %s1 = inlined_call_operand.vmem [shape: bf16[4,32,8], index: 1, kind: input, shape index: {}]
  %s2 = inlined_call_operand.vmem [shape: f32[4,1,8], index: 2, kind: input, shape index: {}]
  %s3 = inlined_call_operand.vmem [shape: bf16[4,32,8], index: 3, kind: input, shape index: {}]
  %s4 = inlined_call_operand.vmem [shape: f32[4,1,8], index: 4, kind: input, shape index: {}]
  %s5 = inlined_call_operand.vmem [shape: bf16[4,32,8], index: 5, kind: input, shape index: {}]
  %s6 = inlined_call_operand.vmem [shape: f32[4,1,8], index: 6, kind: input, shape index: {}]
  %s7 = inlined_call_operand.vmem [shape: bf16[4,8,32], index: 7, kind: input, shape index: {}]
  %s8 = inlined_call_operand.vmem [shape: f32[1,32], index: 8, kind: input, shape index: {}]
  %s9 = inlined_call_operand.vmem [shape: f32[1,32], index: 9, kind: input, shape index: {}]
  %s10 = inlined_call_operand.vmem [shape: f32[1,32], index: 10, kind: input, shape index: {}]
  %s11 = inlined_call_operand.vmem [shape: bf16[1,32,64], index: 11, kind: input, shape index: {}]
  %s12 = inlined_call_operand.vmem [shape: f32[1,1,64], index: 12, kind: input, shape index: {}]
  %s13 = inlined_call_operand.vmem [shape: bf16[1,64,32], index: 13, kind: input, shape index: {}]
  %s14 = inlined_call_operand.vmem [shape: f32[1,32], index: 14, kind: input, shape index: {}]
  %s15 = inlined_call_operand.vmem [shape: f32[1,32], index: 15, kind: input, shape index: {}]
  %s16 = inlined_call_operand.vmem [shape: f32[1,32], index: 16, kind: input, shape index: {}]
  %s17 = inlined_call_operand.hbm [shape: f32[2,8,32], index: 17, kind: output, shape index: {}]
  %s18 = sld [smem:[#allocation0]]
  $region105: #{tpu_custom_call.1} parent=0
    _
  %s20 = ssub.s32 1, %s18
  %s21 = scalar_select 0, %s20, %s18
  $region1: #{tpu_custom_call.1} parent=0
    #allocation4 [shape = 'u8[8192]{0}', space=vmem, size = 0x2000, scoped, tag = 'output window, operand 0']
    #allocation5 [shape = 's32[2]{0}', space=sflag, size = 0x8, scoped, tag = 'scoped memory for tpu_custom_call.1']
    %22 = vsyncpa [#allocation5], 0
    %s23 = scalar_lea.sflag [#allocation5], 1
    %24 = vsyncpa %s23, 0
    loop: start=0, step=1, limit=4
    $region2: #{tpu_custom_call.1} parent=1 // loop_pre_header
      _
    $region3: #{tpu_custom_call.1} parent=1 // loop_header
      %s26 = sphi 0, %s30
      %p27 = scmp.ge.s32.totalorder %s26, 4
      %s33 = sphi 0, %s45
      %s34 = sphi 0, %s41
      %s35 = sphi 0, %s33
      %s36 = sphi 0, %s34
      %s37 = sphi 0, %s35
      %s38 = sphi 0, %s36
      %s48 = sphi 0, %s50
      %s51 = sphi 0, %s48
      %s52 = sphi 0, %s51
      %s68 = sphi 0, %s52
      %s72 = sphi 0, %s72
      %s74 = sphi 0, %s72
      %s75 = sphi 0, %s74
      %s89 = sphi 0, %s75
      %s93 = sphi 0, %s93
      %s95 = sphi 0, %s93
      %s96 = sphi 0, %s95
      %s110 = sphi 0, %s96
      %s114 = sphi 0, %s114
      %s116 = sphi 0, %s114
      %s117 = sphi 0, %s116
      %s131 = sphi 0, %s117
      %s135 = sphi 0, %s135
      %s137 = sphi 0, %s135
      %s138 = sphi 0, %s137
      %s152 = sphi 0, %s138
      %s156 = sphi 0, %s156
      %s158 = sphi 0, %s156
      %s159 = sphi 0, %s158
      %s173 = sphi 0, %s159
      %s177 = sphi 0, %s177
      %s179 = sphi 0, %s177
      %s180 = sphi 0, %s179
      %s194 = sphi 0, %s180
      %s198 = sphi 0, %s198
      %s200 = sphi 0, %s198
      %s201 = sphi 0, %s200
      %s215 = sphi 0, %s201
      %s219 = sphi 0, %s219
      %s221 = sphi 0, %s219
      %s222 = sphi 0, %s221
      %s236 = sphi 0, %s222
      %s240 = sphi 0, %s240
      %s242 = sphi 0, %s240
      %s243 = sphi 0, %s242
      %s257 = sphi 0, %s243
      %s261 = sphi 0, %s261
      %s263 = sphi 0, %s261
      %s264 = sphi 0, %s263
      %s278 = sphi 0, %s264
      %s282 = sphi 0, %s282
      %s284 = sphi 0, %s282
      %s285 = sphi 0, %s284
      %s299 = sphi 0, %s285
      %s303 = sphi 0, %s303
      %s305 = sphi 0, %s303
      %s306 = sphi 0, %s305
      %s320 = sphi 0, %s306
      %s324 = sphi 0, %s324
      %s326 = sphi 0, %s324
      %s327 = sphi 0, %s326
      %s341 = sphi 0, %s327
      %s345 = sphi 0, %s345
      %s347 = sphi 0, %s345
      %s348 = sphi 0, %s347
      %s362 = sphi 0, %s348
      %s366 = sphi 0, %s366
      %s368 = sphi 0, %s366
      %s369 = sphi 0, %s368
      %s383 = sphi 0, %s369
      %s387 = sphi 0, %s387
      %s389 = sphi 0, %s387
      %s390 = sphi 0, %s389
      %s404 = sphi 0, %s390
      %s412 = sphi 0, %s414
      %s415 = sphi 0, %s412
      %s416 = sphi 0, %s415
      %s432 = sphi 0, %s416
    $region4: #{tpu_custom_call.1} parent=1 // loop_header_branch
      %29 = sbr.rel (%p27) target = $region8
    $region5: #{tpu_custom_call.1} parent=1 // loop_body
      %s31 = ssub.s32 %s26, 1
      %s32 = ssub.s32 %s26, 2
      %s39 = sadd.s32 1, %s34
      %p40 = scmp.ge.s32.totalorder %s39, 1
      %s41 = scalar_select %p40, 0, %s39
      %s42 = sadd.s32 1, %s33
      %s43 = scalar_select %p40, %s42, %s33
      %p44 = scmp.ge.s32.totalorder %s43, 2
      %s45 = scalar_select %p44, 0, %s43
      %s46 = ssub.s32 %s33, %s45
      %p47 = scmp.eq.s32.totalorder %s46, 0
      %s49 = sadd.s32 %s48, 1
      %s50 = scalar_select %p47, %s48, %s49
      %p53 = pneg %p47
      %p54 = scmp.eq.s32.totalorder %s26, 1
      %p55 = por %p53, %p54
      %p56 = scmp.ne.s32.totalorder %s48, %s51
      %p57 = scmp.eq.s32.totalorder %s26, 0
      %p58 = por %p56, %p57
      %p59 = scmp.ne.s32.totalorder %s48, %s51
      %p60 = scmp.eq.s32.totalorder %s31, 1
      %p61 = por %p59, %p60
      %p62 = scmp.ne.s32.totalorder %s51, %s52
      %p63 = scmp.eq.s32.totalorder %s31, 0
      %p64 = por %p62, %p63
      %p65 = scmp.ne.s32.totalorder %s51, %s52
      %p66 = scmp.eq.s32.totalorder %s32, 1
      %p67 = por %p65, %p66
      %p69 = scmp.ne.s32.totalorder %s52, %s68
      %p70 = scmp.eq.s32.totalorder %s32, 0
      %p71 = por %p69, %p70
      %s73 = sadd.s32 %s72, 1
      %p76 = scmp.eq.s32.totalorder %s26, 1
      %p77 = scmp.ne.s32.totalorder %s72, %s74
      %p78 = scmp.eq.s32.totalorder %s26, 0
      %p79 = por %p77, %p78
      %p80 = scmp.ne.s32.totalorder %s72, %s74
      %p81 = scmp.eq.s32.totalorder %s31, 1
      %p82 = por %p80, %p81
      %p83 = scmp.ne.s32.totalorder %s74, %s75
      %p84 = scmp.eq.s32.totalorder %s31, 0
      %p85 = por %p83, %p84
      %p86 = scmp.ne.s32.totalorder %s74, %s75
      %p87 = scmp.eq.s32.totalorder %s32, 1
      %p88 = por %p86, %p87
      %p90 = scmp.ne.s32.totalorder %s75, %s89
      %p91 = scmp.eq.s32.totalorder %s32, 0
      %p92 = por %p90, %p91
      %s94 = sadd.s32 %s93, 1
      %p97 = scmp.eq.s32.totalorder %s26, 1
      %p98 = scmp.ne.s32.totalorder %s93, %s95
      %p99 = scmp.eq.s32.totalorder %s26, 0
      %p100 = por %p98, %p99
      %p101 = scmp.ne.s32.totalorder %s93, %s95
      %p102 = scmp.eq.s32.totalorder %s31, 1
      %p103 = por %p101, %p102
      %p104 = scmp.ne.s32.totalorder %s95, %s96
      %p105 = scmp.eq.s32.totalorder %s31, 0
      %p106 = por %p104, %p105
      %p107 = scmp.ne.s32.totalorder %s95, %s96
      %p108 = scmp.eq.s32.totalorder %s32, 1
      %p109 = por %p107, %p108
      %p111 = scmp.ne.s32.totalorder %s96, %s110
      %p112 = scmp.eq.s32.totalorder %s32, 0
      %p113 = por %p111, %p112
      %s115 = sadd.s32 %s114, 1
      %p118 = scmp.eq.s32.totalorder %s26, 1
      %p119 = scmp.ne.s32.totalorder %s114, %s116
      %p120 = scmp.eq.s32.totalorder %s26, 0
      %p121 = por %p119, %p120
      %p122 = scmp.ne.s32.totalorder %s114, %s116
      %p123 = scmp.eq.s32.totalorder %s31, 1
      %p124 = por %p122, %p123
      %p125 = scmp.ne.s32.totalorder %s116, %s117
      %p126 = scmp.eq.s32.totalorder %s31, 0
      %p127 = por %p125, %p126
      %p128 = scmp.ne.s32.totalorder %s116, %s117
      %p129 = scmp.eq.s32.totalorder %s32, 1
      %p130 = por %p128, %p129
      %p132 = scmp.ne.s32.totalorder %s117, %s131
      %p133 = scmp.eq.s32.totalorder %s32, 0
      %p134 = por %p132, %p133
      %s136 = sadd.s32 %s135, 1
      %p139 = scmp.eq.s32.totalorder %s26, 1
      %p140 = scmp.ne.s32.totalorder %s135, %s137
      %p141 = scmp.eq.s32.totalorder %s26, 0
      %p142 = por %p140, %p141
      %p143 = scmp.ne.s32.totalorder %s135, %s137
      %p144 = scmp.eq.s32.totalorder %s31, 1
      %p145 = por %p143, %p144
      %p146 = scmp.ne.s32.totalorder %s137, %s138
      %p147 = scmp.eq.s32.totalorder %s31, 0
      %p148 = por %p146, %p147
      %p149 = scmp.ne.s32.totalorder %s137, %s138
      %p150 = scmp.eq.s32.totalorder %s32, 1
      %p151 = por %p149, %p150
      %p153 = scmp.ne.s32.totalorder %s138, %s152
      %p154 = scmp.eq.s32.totalorder %s32, 0
      %p155 = por %p153, %p154
      %s157 = sadd.s32 %s156, 1
      %p160 = scmp.eq.s32.totalorder %s26, 1
      %p161 = scmp.ne.s32.totalorder %s156, %s158
      %p162 = scmp.eq.s32.totalorder %s26, 0
      %p163 = por %p161, %p162
      %p164 = scmp.ne.s32.totalorder %s156, %s158
      %p165 = scmp.eq.s32.totalorder %s31, 1
      %p166 = por %p164, %p165
      %p167 = scmp.ne.s32.totalorder %s158, %s159
      %p168 = scmp.eq.s32.totalorder %s31, 0
      %p169 = por %p167, %p168
      %p170 = scmp.ne.s32.totalorder %s158, %s159
      %p171 = scmp.eq.s32.totalorder %s32, 1
      %p172 = por %p170, %p171
      %p174 = scmp.ne.s32.totalorder %s159, %s173
      %p175 = scmp.eq.s32.totalorder %s32, 0
      %p176 = por %p174, %p175
      %s178 = sadd.s32 %s177, 1
      %p181 = scmp.eq.s32.totalorder %s26, 1
      %p182 = scmp.ne.s32.totalorder %s177, %s179
      %p183 = scmp.eq.s32.totalorder %s26, 0
      %p184 = por %p182, %p183
      %p185 = scmp.ne.s32.totalorder %s177, %s179
      %p186 = scmp.eq.s32.totalorder %s31, 1
      %p187 = por %p185, %p186
      %p188 = scmp.ne.s32.totalorder %s179, %s180
      %p189 = scmp.eq.s32.totalorder %s31, 0
      %p190 = por %p188, %p189
      %p191 = scmp.ne.s32.totalorder %s179, %s180
      %p192 = scmp.eq.s32.totalorder %s32, 1
      %p193 = por %p191, %p192
      %p195 = scmp.ne.s32.totalorder %s180, %s194
      %p196 = scmp.eq.s32.totalorder %s32, 0
      %p197 = por %p195, %p196
      %s199 = sadd.s32 %s198, 1
      %p202 = scmp.eq.s32.totalorder %s26, 1
      %p203 = scmp.ne.s32.totalorder %s198, %s200
      %p204 = scmp.eq.s32.totalorder %s26, 0
      %p205 = por %p203, %p204
      %p206 = scmp.ne.s32.totalorder %s198, %s200
      %p207 = scmp.eq.s32.totalorder %s31, 1
      %p208 = por %p206, %p207
      %p209 = scmp.ne.s32.totalorder %s200, %s201
      %p210 = scmp.eq.s32.totalorder %s31, 0
      %p211 = por %p209, %p210
      %p212 = scmp.ne.s32.totalorder %s200, %s201
      %p213 = scmp.eq.s32.totalorder %s32, 1
      %p214 = por %p212, %p213
      %p216 = scmp.ne.s32.totalorder %s201, %s215
      %p217 = scmp.eq.s32.totalorder %s32, 0
      %p218 = por %p216, %p217
      %s220 = sadd.s32 %s219, 1
      %p223 = scmp.eq.s32.totalorder %s26, 1
      %p224 = scmp.ne.s32.totalorder %s219, %s221
      %p225 = scmp.eq.s32.totalorder %s26, 0
      %p226 = por %p224, %p225
      %p227 = scmp.ne.s32.totalorder %s219, %s221
      %p228 = scmp.eq.s32.totalorder %s31, 1
      %p229 = por %p227, %p228
      %p230 = scmp.ne.s32.totalorder %s221, %s222
      %p231 = scmp.eq.s32.totalorder %s31, 0
      %p232 = por %p230, %p231
      %p233 = scmp.ne.s32.totalorder %s221, %s222
      %p234 = scmp.eq.s32.totalorder %s32, 1
      %p235 = por %p233, %p234
      %p237 = scmp.ne.s32.totalorder %s222, %s236
      %p238 = scmp.eq.s32.totalorder %s32, 0
      %p239 = por %p237, %p238
      %s241 = sadd.s32 %s240, 1
      %p244 = scmp.eq.s32.totalorder %s26, 1
      %p245 = scmp.ne.s32.totalorder %s240, %s242
      %p246 = scmp.eq.s32.totalorder %s26, 0
      %p247 = por %p245, %p246
      %p248 = scmp.ne.s32.totalorder %s240, %s242
      %p249 = scmp.eq.s32.totalorder %s31, 1
      %p250 = por %p248, %p249
      %p251 = scmp.ne.s32.totalorder %s242, %s243
      %p252 = scmp.eq.s32.totalorder %s31, 0
      %p253 = por %p251, %p252
      %p254 = scmp.ne.s32.totalorder %s242, %s243
      %p255 = scmp.eq.s32.totalorder %s32, 1
      %p256 = por %p254, %p255
      %p258 = scmp.ne.s32.totalorder %s243, %s257
      %p259 = scmp.eq.s32.totalorder %s32, 0
      %p260 = por %p258, %p259
      %s262 = sadd.s32 %s261, 1
      %p265 = scmp.eq.s32.totalorder %s26, 1
      %p266 = scmp.ne.s32.totalorder %s261, %s263
      %p267 = scmp.eq.s32.totalorder %s26, 0
      %p268 = por %p266, %p267
      %p269 = scmp.ne.s32.totalorder %s261, %s263
      %p270 = scmp.eq.s32.totalorder %s31, 1
      %p271 = por %p269, %p270
      %p272 = scmp.ne.s32.totalorder %s263, %s264
      %p273 = scmp.eq.s32.totalorder %s31, 0
      %p274 = por %p272, %p273
      %p275 = scmp.ne.s32.totalorder %s263, %s264
      %p276 = scmp.eq.s32.totalorder %s32, 1
      %p277 = por %p275, %p276
      %p279 = scmp.ne.s32.totalorder %s264, %s278
      %p280 = scmp.eq.s32.totalorder %s32, 0
      %p281 = por %p279, %p280
      %s283 = sadd.s32 %s282, 1
      %p286 = scmp.eq.s32.totalorder %s26, 1
      %p287 = scmp.ne.s32.totalorder %s282, %s284
      %p288 = scmp.eq.s32.totalorder %s26, 0
      %p289 = por %p287, %p288
      %p290 = scmp.ne.s32.totalorder %s282, %s284
      %p291 = scmp.eq.s32.totalorder %s31, 1
      %p292 = por %p290, %p291
      %p293 = scmp.ne.s32.totalorder %s284, %s285
      %p294 = scmp.eq.s32.totalorder %s31, 0
      %p295 = por %p293, %p294
      %p296 = scmp.ne.s32.totalorder %s284, %s285
      %p297 = scmp.eq.s32.totalorder %s32, 1
      %p298 = por %p296, %p297
      %p300 = scmp.ne.s32.totalorder %s285, %s299
      %p301 = scmp.eq.s32.totalorder %s32, 0
      %p302 = por %p300, %p301
      %s304 = sadd.s32 %s303, 1
      %p307 = scmp.eq.s32.totalorder %s26, 1
      %p308 = scmp.ne.s32.totalorder %s303, %s305
      %p309 = scmp.eq.s32.totalorder %s26, 0
      %p310 = por %p308, %p309
      %p311 = scmp.ne.s32.totalorder %s303, %s305
      %p312 = scmp.eq.s32.totalorder %s31, 1
      %p313 = por %p311, %p312
      %p314 = scmp.ne.s32.totalorder %s305, %s306
      %p315 = scmp.eq.s32.totalorder %s31, 0
      %p316 = por %p314, %p315
      %p317 = scmp.ne.s32.totalorder %s305, %s306
      %p318 = scmp.eq.s32.totalorder %s32, 1
      %p319 = por %p317, %p318
      %p321 = scmp.ne.s32.totalorder %s306, %s320
      %p322 = scmp.eq.s32.totalorder %s32, 0
      %p323 = por %p321, %p322
      %s325 = sadd.s32 %s324, 1
      %p328 = scmp.eq.s32.totalorder %s26, 1
      %p329 = scmp.ne.s32.totalorder %s324, %s326
      %p330 = scmp.eq.s32.totalorder %s26, 0
      %p331 = por %p329, %p330
      %p332 = scmp.ne.s32.totalorder %s324, %s326
      %p333 = scmp.eq.s32.totalorder %s31, 1
      %p334 = por %p332, %p333
      %p335 = scmp.ne.s32.totalorder %s326, %s327
      %p336 = scmp.eq.s32.totalorder %s31, 0
      %p337 = por %p335, %p336
      %p338 = scmp.ne.s32.totalorder %s326, %s327
      %p339 = scmp.eq.s32.totalorder %s32, 1
      %p340 = por %p338, %p339
      %p342 = scmp.ne.s32.totalorder %s327, %s341
      %p343 = scmp.eq.s32.totalorder %s32, 0
      %p344 = por %p342, %p343
      %s346 = sadd.s32 %s345, 1
      %p349 = scmp.eq.s32.totalorder %s26, 1
      %p350 = scmp.ne.s32.totalorder %s345, %s347
      %p351 = scmp.eq.s32.totalorder %s26, 0
      %p352 = por %p350, %p351
      %p353 = scmp.ne.s32.totalorder %s345, %s347
      %p354 = scmp.eq.s32.totalorder %s31, 1
      %p355 = por %p353, %p354
      %p356 = scmp.ne.s32.totalorder %s347, %s348
      %p357 = scmp.eq.s32.totalorder %s31, 0
      %p358 = por %p356, %p357
      %p359 = scmp.ne.s32.totalorder %s347, %s348
      %p360 = scmp.eq.s32.totalorder %s32, 1
      %p361 = por %p359, %p360
      %p363 = scmp.ne.s32.totalorder %s348, %s362
      %p364 = scmp.eq.s32.totalorder %s32, 0
      %p365 = por %p363, %p364
      %s367 = sadd.s32 %s366, 1
      %p370 = scmp.eq.s32.totalorder %s26, 1
      %p371 = scmp.ne.s32.totalorder %s366, %s368
      %p372 = scmp.eq.s32.totalorder %s26, 0
      %p373 = por %p371, %p372
      %p374 = scmp.ne.s32.totalorder %s366, %s368
      %p375 = scmp.eq.s32.totalorder %s31, 1
      %p376 = por %p374, %p375
      %p377 = scmp.ne.s32.totalorder %s368, %s369
      %p378 = scmp.eq.s32.totalorder %s31, 0
      %p379 = por %p377, %p378
      %p380 = scmp.ne.s32.totalorder %s368, %s369
      %p381 = scmp.eq.s32.totalorder %s32, 1
      %p382 = por %p380, %p381
      %p384 = scmp.ne.s32.totalorder %s369, %s383
      %p385 = scmp.eq.s32.totalorder %s32, 0
      %p386 = por %p384, %p385
      %s388 = sadd.s32 %s387, 1
      %p391 = scmp.eq.s32.totalorder %s26, 1
      %p392 = scmp.ne.s32.totalorder %s387, %s389
      %p393 = scmp.eq.s32.totalorder %s26, 0
      %p394 = por %p392, %p393
      %p395 = scmp.ne.s32.totalorder %s387, %s389
      %p396 = scmp.eq.s32.totalorder %s31, 1
      %p397 = por %p395, %p396
      %p398 = scmp.ne.s32.totalorder %s389, %s390
      %p399 = scmp.eq.s32.totalorder %s31, 0
      %p400 = por %p398, %p399
      %p401 = scmp.ne.s32.totalorder %s389, %s390
      %p402 = scmp.eq.s32.totalorder %s32, 1
      %p403 = por %p401, %p402
      %p405 = scmp.ne.s32.totalorder %s390, %s404
      %p406 = scmp.eq.s32.totalorder %s32, 0
      %p407 = por %p405, %p406
      %s408 = ssub.s32 %s33, %s45
      %s409 = ssub.s32 %s34, %s41
      %s410 = sor.u32 %s408, %s409
      %p411 = scmp.eq.s32.totalorder %s410, 0
      %s413 = sadd.s32 %s412, 1
      %s414 = scalar_select %p411, %s412, %s413
      %p417 = pneg %p411
      %p418 = scmp.eq.s32.totalorder %s26, 1
      %p419 = por %p417, %p418
      %p420 = scmp.ne.s32.totalorder %s412, %s415
      %p421 = scmp.eq.s32.totalorder %s26, 0
      %p422 = por %p420, %p421
      %p423 = scmp.ne.s32.totalorder %s412, %s415
      %p424 = scmp.eq.s32.totalorder %s31, 1
      %p425 = por %p423, %p424
      %p426 = scmp.ne.s32.totalorder %s415, %s416
      %p427 = scmp.eq.s32.totalorder %s31, 0
      %p428 = por %p426, %p427
      %p429 = scmp.ne.s32.totalorder %s415, %s416
      %p430 = scmp.eq.s32.totalorder %s32, 1
      %p431 = por %p429, %p430
      %p433 = scmp.ne.s32.totalorder %s416, %s432
      %p434 = scmp.eq.s32.totalorder %s32, 0
      %p435 = por %p433, %p434
      %p436 = scmp.le.s32.totalorder 1, %s26
      %p437 = scmp.lt.s32.totalorder %s26, 3
      %p438 = pnand %p436, %p437
      %p439 = pneg %p438
      // Predicated region
      $region9: #{tpu_custom_call.1} parent=5 // pred_check
        _
      $region10: #{tpu_custom_call.1} parent=5 // pred_check_branch
        %441 = sbr.rel (%p438) target = $region12
      $region11: #{tpu_custom_call.1} parent=5 // pred_region
        %s442 = ssub.s32 %s26, 1
        // Predicated region
        $region13: #{tpu_custom_call.1} parent=11 // pred_check
          %p443 = pneg %p85
        $region14: #{tpu_custom_call.1} parent=11 // pred_check_branch
          %445 = sbr.rel (%p443) target = $region16
        $region15: #{tpu_custom_call.1} parent=11 // pred_region
          _
        $region16: #{tpu_custom_call.1} parent=11 // pred_fallthru
          _
        // Predicated region
        $region17: #{tpu_custom_call.1} parent=11 // pred_check
          %p446 = pneg %p106
        $region18: #{tpu_custom_call.1} parent=11 // pred_check_branch
          %448 = sbr.rel (%p446) target = $region20
        $region19: #{tpu_custom_call.1} parent=11 // pred_region
          _
        $region20: #{tpu_custom_call.1} parent=11 // pred_fallthru
          _
        // Predicated region
        $region21: #{tpu_custom_call.1} parent=11 // pred_check
          %p449 = pneg %p127
        $region22: #{tpu_custom_call.1} parent=11 // pred_check_branch
          %451 = sbr.rel (%p449) target = $region24
        $region23: #{tpu_custom_call.1} parent=11 // pred_region
          _
        $region24: #{tpu_custom_call.1} parent=11 // pred_fallthru
          _
        // Predicated region
        $region25: #{tpu_custom_call.1} parent=11 // pred_check
          %p452 = pneg %p148
        $region26: #{tpu_custom_call.1} parent=11 // pred_check_branch
          %454 = sbr.rel (%p452) target = $region28
        $region27: #{tpu_custom_call.1} parent=11 // pred_region
          _
        $region28: #{tpu_custom_call.1} parent=11 // pred_fallthru
          _
        // Predicated region
        $region29: #{tpu_custom_call.1} parent=11 // pred_check
          %p455 = pneg %p169
        $region30: #{tpu_custom_call.1} parent=11 // pred_check_branch
          %457 = sbr.rel (%p455) target = $region32
        $region31: #{tpu_custom_call.1} parent=11 // pred_region
          _
        $region32: #{tpu_custom_call.1} parent=11 // pred_fallthru
          _
        // Predicated region
        $region33: #{tpu_custom_call.1} parent=11 // pred_check
          %p458 = pneg %p190
        $region34: #{tpu_custom_call.1} parent=11 // pred_check_branch
          %460 = sbr.rel (%p458) target = $region36
        $region35: #{tpu_custom_call.1} parent=11 // pred_region
          _
        $region36: #{tpu_custom_call.1} parent=11 // pred_fallthru
          _
        // Predicated region
        $region37: #{tpu_custom_call.1} parent=11 // pred_check
          %p461 = pneg %p211
        $region38: #{tpu_custom_call.1} parent=11 // pred_check_branch
          %463 = sbr.rel (%p461) target = $region40
        $region39: #{tpu_custom_call.1} parent=11 // pred_region
          _
        $region40: #{tpu_custom_call.1} parent=11 // pred_fallthru
          _
        // Predicated region
        $region41: #{tpu_custom_call.1} parent=11 // pred_check
          %p464 = pneg %p232
        $region42: #{tpu_custom_call.1} parent=11 // pred_check_branch
          %466 = sbr.rel (%p464) target = $region44
        $region43: #{tpu_custom_call.1} parent=11 // pred_region
          _
        $region44: #{tpu_custom_call.1} parent=11 // pred_fallthru
          _
        // Predicated region
        $region45: #{tpu_custom_call.1} parent=11 // pred_check
          %p467 = pneg %p253
        $region46: #{tpu_custom_call.1} parent=11 // pred_check_branch
          %469 = sbr.rel (%p467) target = $region48
        $region47: #{tpu_custom_call.1} parent=11 // pred_region
          _
        $region48: #{tpu_custom_call.1} parent=11 // pred_fallthru
          _
        // Predicated region
        $region49: #{tpu_custom_call.1} parent=11 // pred_check
          %p470 = pneg %p274
        $region50: #{tpu_custom_call.1} parent=11 // pred_check_branch
          %472 = sbr.rel (%p470) target = $region52
        $region51: #{tpu_custom_call.1} parent=11 // pred_region
          _
        $region52: #{tpu_custom_call.1} parent=11 // pred_fallthru
          _
        // Predicated region
        $region53: #{tpu_custom_call.1} parent=11 // pred_check
          %p473 = pneg %p295
        $region54: #{tpu_custom_call.1} parent=11 // pred_check_branch
          %475 = sbr.rel (%p473) target = $region56
        $region55: #{tpu_custom_call.1} parent=11 // pred_region
          _
        $region56: #{tpu_custom_call.1} parent=11 // pred_fallthru
          _
        // Predicated region
        $region57: #{tpu_custom_call.1} parent=11 // pred_check
          %p476 = pneg %p316
        $region58: #{tpu_custom_call.1} parent=11 // pred_check_branch
          %478 = sbr.rel (%p476) target = $region60
        $region59: #{tpu_custom_call.1} parent=11 // pred_region
          _
        $region60: #{tpu_custom_call.1} parent=11 // pred_fallthru
          _
        // Predicated region
        $region61: #{tpu_custom_call.1} parent=11 // pred_check
          %p479 = pneg %p337
        $region62: #{tpu_custom_call.1} parent=11 // pred_check_branch
          %481 = sbr.rel (%p479) target = $region64
        $region63: #{tpu_custom_call.1} parent=11 // pred_region
          _
        $region64: #{tpu_custom_call.1} parent=11 // pred_fallthru
          _
        // Predicated region
        $region65: #{tpu_custom_call.1} parent=11 // pred_check
          %p482 = pneg %p358
        $region66: #{tpu_custom_call.1} parent=11 // pred_check_branch
          %484 = sbr.rel (%p482) target = $region68
        $region67: #{tpu_custom_call.1} parent=11 // pred_region
          _
        $region68: #{tpu_custom_call.1} parent=11 // pred_fallthru
          _
        // Predicated region
        $region69: #{tpu_custom_call.1} parent=11 // pred_check
          %p485 = pneg %p379
        $region70: #{tpu_custom_call.1} parent=11 // pred_check_branch
          %487 = sbr.rel (%p485) target = $region72
        $region71: #{tpu_custom_call.1} parent=11 // pred_region
          _
        $region72: #{tpu_custom_call.1} parent=11 // pred_fallthru
          _
        // Predicated region
        $region73: #{tpu_custom_call.1} parent=11 // pred_check
          %p488 = pneg %p400
        $region74: #{tpu_custom_call.1} parent=11 // pred_check_branch
          %490 = sbr.rel (%p488) target = $region76
        $region75: #{tpu_custom_call.1} parent=11 // pred_region
          _
        $region76: #{tpu_custom_call.1} parent=11 // pred_fallthru
          _
      $region12: #{tpu_custom_call.1} parent=5 // pred_fallthru
        _
      %p491 = scmp.lt.s32.totalorder %s26, 2
      // Predicated region
      $region77: #{tpu_custom_call.1} parent=5 // pred_check
        %p492 = pneg %p491
      $region78: #{tpu_custom_call.1} parent=5 // pred_check_branch
        %494 = sbr.rel (%p492) target = $region80
      $region79: #{tpu_custom_call.1} parent=5 // pred_region
        // Predicated region
        $region81: #{tpu_custom_call.1} parent=79 // pred_check
          %p495 = pneg %p58
        $region82: #{tpu_custom_call.1} parent=79 // pred_check_branch
          %497 = sbr.rel (%p495) target = $region84
        $region83: #{tpu_custom_call.1} parent=79 // pred_region
          %p498 = scmp.lt.s32.totalorder %s33, 1
          %s499 = scalar_select %p498, %s33, 1
          %s500 = smul.addr %s499, 4
          %s501 = scalar_lea.vmem %s0, %s500
        $region84: #{tpu_custom_call.1} parent=79 // pred_fallthru
          _
      $region80: #{tpu_custom_call.1} parent=5 // pred_fallthru
        _
      %p502 = scmp.le.s32.totalorder 1, %s26
      %p503 = scmp.lt.s32.totalorder %s26, 3
      %p504 = pnand %p502, %p503
      %p505 = pneg %p504
      // Predicated region
      $region85: #{tpu_custom_call.1} parent=5 // pred_check
        _
      $region86: #{tpu_custom_call.1} parent=5 // pred_check_branch
        %507 = sbr.rel (%p504) target = $region88
      $region87: #{tpu_custom_call.1} parent=5 // pred_region
        %s508 = ssub.s32 %s26, 1
        %p509 = scmp.lt.s32.totalorder %s35, 1
        %s510 = scalar_select %p509, %s35, 1
        %s511 = smul.addr %s510, 4
        %s512 = scalar_lea.vmem %s0, %s511
        %p513 = pneg %p64
        %p514 = pneg %p61
        %p515 = pneg %p85
        %p516 = pneg %p82
        %p517 = pneg %p106
        %p518 = pneg %p103
        %p519 = pneg %p127
        %p520 = pneg %p124
        %p521 = pneg %p148
        %p522 = pneg %p145
        %p523 = pneg %p169
        %p524 = pneg %p166
        %p525 = pneg %p190
        %p526 = pneg %p187
        %p527 = pneg %p211
        %p528 = pneg %p208
        %p529 = pneg %p232
        %p530 = pneg %p229
        %p531 = pneg %p253
        %p532 = pneg %p250
        %p533 = pneg %p274
        %p534 = pneg %p271
        %p535 = pneg %p295
        %p536 = pneg %p292
        %p537 = pneg %p316
        %p538 = pneg %p313
        %p539 = pneg %p337
        %p540 = pneg %p334
        %p541 = pneg %p358
        %p542 = pneg %p355
        %p543 = pneg %p379
        %p544 = pneg %p376
        %p545 = pneg %p400
        %p546 = pneg %p397
        %p547 = pneg %p428
        %p548 = pneg %p425
        %s549 = sand.u32 %s415, 1
        %s550 = scalar_lea.sflag [#allocation5], %s549
        %s551 = sand.u32 %s415, 1
        %s552 = smul.addr %s551, 8
        %s553 = scalar_lea.vmem [#allocation4], %s552
        %p554 = scmp.lt.s32.totalorder %s35, 1
        %s555 = scalar_select %p554, %s35, 1
        %s556 = smul.addr %s555, 4
        %s557 = scalar_lea.vmem %s0, %s556
        %p559 = scmp.eq.s32.totalorder %s36, 0
        // Predicated region
        $region89: #{tpu_custom_call.1} parent=87 // pred_check
          %p560 = pneg %p559
        $region90: #{tpu_custom_call.1} parent=87 // pred_check_branch
          %562 = sbr.rel (%p560) target = $region92
        $region91: #{tpu_custom_call.1} parent=87 // pred_region
          %v563 = vld [vmem:[%s557] sm:$0xf]
          %v564 = vld [vmem:[%s3] sm:$0xf]
          %v565 = vld [vmem:[%s3 + $0x4] sm:$0xf]
          %v566 = vld [vmem:[%s3 + $0x8] sm:$0xf]
          %v567 = vld [vmem:[%s3 + $0xc] sm:$0xf]
          %v568 = vld [vmem:[%s4] sm:$0x1]
          %v570 = vlaneseq
          %v571 = vshrl.u32 %v570, 7
          %v572 = vsub.s32 0, %v571
          %v573 = vrot.slane %v568, %v572
          %v579 = vunpack.c.l.b16 %v564
          %v580 = vunpack.c.l.b16 %v565
          %v581 = vunpack.c.l.b16 %v566
          %v582 = vunpack.c.l.b16 %v567
          %v583 = vpack.c.b16 %v580, %v579
          %v584 = vpack.c.b16 %v582, %v581
          %vm587 = vcmask 261120
          %v589 = vsel %vm587, %v563, 0
          %591 = vmatprep.subr.bf16.mxu0 0
          %592 = vmatpush1.bf16.msra.mxu0 0
          %593 = vmatprep.subr.bf16.mxu0 0
          %594 = vmatpush1.bf16.msra.mxu0 0
          %595 = vmatprep.subr.bf16.mxu0 0
          %596 = vmatpush1.bf16.msra.mxu0 0
          %597 = vmatprep.subr.bf16.mxu0 0
          %598 = vmatpush1.bf16.msra.mxu0 0
          %599 = vmatprep.subr.bf16.mxu0 0
          %600 = vmatpush1.bf16.msra.mxu0 0
          %601 = vmatprep.subr.bf16.mxu0 0
          %602 = vmatpush1.bf16.msra.mxu0 0
          %603 = vmatprep.subr.bf16.mxu0 0
          %604 = vmatpush1.bf16.msra.mxu0 %v584
          %605 = vmatprep.subr.bf16.mxu0 0
          %606 = vmatpush1.bf16.msra.mxu0 %v583
          %607 = vmatprep.subr.bf16.mxu0 0
          %608 = vmatpush2.bf16.msra.mxu0 0
          %609 = vmatprep.subr.bf16.mxu0 0
          %610 = vmatpush2.bf16.msra.mxu0 0
          %611 = vmatprep.subr.bf16.mxu0 0
          %612 = vmatpush2.bf16.msra.mxu0 0
          %613 = vmatprep.subr.bf16.mxu0 0
          %614 = vmatpush2.bf16.msra.mxu0 0
          %615 = vmatprep.subr.bf16.mxu0 0
          %616 = vmatpush2.bf16.msra.mxu0 0
          %617 = vmatprep.subr.bf16.mxu0 0
          %618 = vmatpush2.bf16.msra.mxu0 0
          %619 = vmatprep.subr.bf16.mxu0 0
          %620 = vmatpush2.bf16.msra.mxu0 0
          %621 = vmatprep.subr.bf16.mxu0 0
          %622 = vmatpush2.bf16.msra.mxu0 0
          %623 = vmatprep.mubr.bf16.mxu0 0
          %624 = vmatmul.mubr.bf16.gmra.mxu0 %v589
          %v625 = vpop.f32.mrf.mxu0
          %v626 = vadd.f32 %v573, %v625
          %v627 = vpop.f32.mrf.mxu0
          %v628 = vpop.f32.mrf.mxu0
          %v629 = vpop.f32.mrf.mxu0
          %630 = vdwg.mxu0
          %v631 = vld [vmem:[%s5] sm:$0xf]
          %v632 = vld [vmem:[%s5 + $0x4] sm:$0xf]
          %v633 = vld [vmem:[%s5 + $0x8] sm:$0xf]
          %v634 = vld [vmem:[%s5 + $0xc] sm:$0xf]
          %v635 = vld [vmem:[%s6] sm:$0x1]
          %v637 = vlaneseq
          %v638 = vshrl.u32 %v637, 7
          %v639 = vsub.s32 0, %v638
          %v640 = vrot.slane %v635, %v639
          %v646 = vunpack.c.l.b16 %v631
          %v647 = vunpack.c.l.b16 %v632
          %v648 = vunpack.c.l.b16 %v633
          %v649 = vunpack.c.l.b16 %v634
          %v650 = vpack.c.b16 %v647, %v646
          %v651 = vpack.c.b16 %v649, %v648
          %654 = vmatprep.subr.bf16.mxu0 0
          %655 = vmatpush1.bf16.msra.mxu0 0
          %656 = vmatprep.subr.bf16.mxu0 0
          %657 = vmatpush1.bf16.msra.mxu0 0
          %658 = vmatprep.subr.bf16.mxu0 0
          %659 = vmatpush1.bf16.msra.mxu0 0
          %660 = vmatprep.subr.bf16.mxu0 0
          %661 = vmatpush1.bf16.msra.mxu0 0
          %662 = vmatprep.subr.bf16.mxu0 0
          %663 = vmatpush1.bf16.msra.mxu0 0
          %664 = vmatprep.subr.bf16.mxu0 0
          %665 = vmatpush1.bf16.msra.mxu0 0
          %666 = vmatprep.subr.bf16.mxu0 0
          %667 = vmatpush1.bf16.msra.mxu0 %v651
          %668 = vmatprep.subr.bf16.mxu0 0
          %669 = vmatpush1.bf16.msra.mxu0 %v650
          %670 = vmatprep.subr.bf16.mxu0 0
          %671 = vmatpush2.bf16.msra.mxu0 0
          %672 = vmatprep.subr.bf16.mxu0 0
          %673 = vmatpush2.bf16.msra.mxu0 0
          %674 = vmatprep.subr.bf16.mxu0 0
          %675 = vmatpush2.bf16.msra.mxu0 0
          %676 = vmatprep.subr.bf16.mxu0 0
          %677 = vmatpush2.bf16.msra.mxu0 0
          %678 = vmatprep.subr.bf16.mxu0 0
          %679 = vmatpush2.bf16.msra.mxu0 0
          %680 = vmatprep.subr.bf16.mxu0 0
          %681 = vmatpush2.bf16.msra.mxu0 0
          %682 = vmatprep.subr.bf16.mxu0 0
          %683 = vmatpush2.bf16.msra.mxu0 0
          %684 = vmatprep.subr.bf16.mxu0 0
          %685 = vmatpush2.bf16.msra.mxu0 0
          %686 = vmatprep.mubr.bf16.mxu0 0
          %687 = vmatmul.mubr.bf16.gmra.mxu0 %v589
          %v688 = vpop.f32.mrf.mxu0
          %v689 = vadd.f32 %v640, %v688
          %v690 = vpop.f32.mrf.mxu0
          %v691 = vpop.f32.mrf.mxu0
          %v692 = vpop.f32.mrf.mxu0
          %693 = vdwg.mxu0
          %v694 = vpack.c.bf16 %v626, %v626
          %vm695 = vcmask 60416
          %696 = vst.msk [vmem:[#allocation2] sm:$0xf] %vm695, %v694
          %v697 = vpack.c.bf16 %v689, %v689
          %698 = vst.msk [vmem:[#allocation3] sm:$0xf] %vm695, %v697
          %s699 = scalar_lea.vmem %s3, 16
          %v700 = vld [vmem:[%s699] sm:$0xf]
          %v701 = vld [vmem:[%s699 + $0x4] sm:$0xf]
          %v702 = vld [vmem:[%s699 + $0x8] sm:$0xf]
          %v703 = vld [vmem:[%s699 + $0xc] sm:$0xf]
          %s704 = scalar_lea.vmem %s4, 1
          %v705 = vld [vmem:[%s704] sm:$0x1]
          %v707 = vlaneseq
          %v708 = vshrl.u32 %v707, 7
          %v709 = vsub.s32 0, %v708
          %v710 = vrot.slane %v705, %v709
          %v716 = vunpack.c.l.b16 %v700
          %v717 = vunpack.c.l.b16 %v701
          %v718 = vunpack.c.l.b16 %v702
          %v719 = vunpack.c.l.b16 %v703
          %v720 = vpack.c.b16 %v717, %v716
          %v721 = vpack.c.b16 %v719, %v718
          %724 = vmatprep.subr.bf16.mxu0 0
          %725 = vmatpush1.bf16.msra.mxu0 0
          %726 = vmatprep.subr.bf16.mxu0 0
          %727 = vmatpush1.bf16.msra.mxu0 0
          %728 = vmatprep.subr.bf16.mxu0 0
          %729 = vmatpush1.bf16.msra.mxu0 0
          %730 = vmatprep.subr.bf16.mxu0 0
          %731 = vmatpush1.bf16.msra.mxu0 0
          %732 = vmatprep.subr.bf16.mxu0 0
          %733 = vmatpush1.bf16.msra.mxu0 0
          %734 = vmatprep.subr.bf16.mxu0 0
          %735 = vmatpush1.bf16.msra.mxu0 0
          %736 = vmatprep.subr.bf16.mxu0 0
          %737 = vmatpush1.bf16.msra.mxu0 %v721
          %738 = vmatprep.subr.bf16.mxu0 0
          %739 = vmatpush1.bf16.msra.mxu0 %v720
          %740 = vmatprep.subr.bf16.mxu0 0
          %741 = vmatpush2.bf16.msra.mxu0 0
          %742 = vmatprep.subr.bf16.mxu0 0
          %743 = vmatpush2.bf16.msra.mxu0 0
          %744 = vmatprep.subr.bf16.mxu0 0
          %745 = vmatpush2.bf16.msra.mxu0 0
          %746 = vmatprep.subr.bf16.mxu0 0
          %747 = vmatpush2.bf16.msra.mxu0 0
          %748 = vmatprep.subr.bf16.mxu0 0
          %749 = vmatpush2.bf16.msra.mxu0 0
          %750 = vmatprep.subr.bf16.mxu0 0
          %751 = vmatpush2.bf16.msra.mxu0 0
          %752 = vmatprep.subr.bf16.mxu0 0
          %753 = vmatpush2.bf16.msra.mxu0 0
          %754 = vmatprep.subr.bf16.mxu0 0
          %755 = vmatpush2.bf16.msra.mxu0 0
          %756 = vmatprep.mubr.bf16.mxu0 0
          %757 = vmatmul.mubr.bf16.gmra.mxu0 %v589
          %v758 = vpop.f32.mrf.mxu0
          %v759 = vadd.f32 %v710, %v758
          %v760 = vpop.f32.mrf.mxu0
          %v761 = vpop.f32.mrf.mxu0
          %v762 = vpop.f32.mrf.mxu0
          %763 = vdwg.mxu0
          %s764 = scalar_lea.vmem %s5, 16
          %v765 = vld [vmem:[%s764] sm:$0xf]
          %v766 = vld [vmem:[%s764 + $0x4] sm:$0xf]
          %v767 = vld [vmem:[%s764 + $0x8] sm:$0xf]
          %v768 = vld [vmem:[%s764 + $0xc] sm:$0xf]
          %s769 = scalar_lea.vmem %s6, 1
          %v770 = vld [vmem:[%s769] sm:$0x1]
          %v772 = vlaneseq
          %v773 = vshrl.u32 %v772, 7
          %v774 = vsub.s32 0, %v773
          %v775 = vrot.slane %v770, %v774
          %v781 = vunpack.c.l.b16 %v765
          %v782 = vunpack.c.l.b16 %v766
          %v783 = vunpack.c.l.b16 %v767
          %v784 = vunpack.c.l.b16 %v768
          %v785 = vpack.c.b16 %v782, %v781
          %v786 = vpack.c.b16 %v784, %v783
          %789 = vmatprep.subr.bf16.mxu0 0
          %790 = vmatpush1.bf16.msra.mxu0 0
          %791 = vmatprep.subr.bf16.mxu0 0
          %792 = vmatpush1.bf16.msra.mxu0 0
          %793 = vmatprep.subr.bf16.mxu0 0
          %794 = vmatpush1.bf16.msra.mxu0 0
          %795 = vmatprep.subr.bf16.mxu0 0
          %796 = vmatpush1.bf16.msra.mxu0 0
          %797 = vmatprep.subr.bf16.mxu0 0
          %798 = vmatpush1.bf16.msra.mxu0 0
          %799 = vmatprep.subr.bf16.mxu0 0
          %800 = vmatpush1.bf16.msra.mxu0 0
          %801 = vmatprep.subr.bf16.mxu0 0
          %802 = vmatpush1.bf16.msra.mxu0 %v786
          %803 = vmatprep.subr.bf16.mxu0 0
          %804 = vmatpush1.bf16.msra.mxu0 %v785
          %805 = vmatprep.subr.bf16.mxu0 0
          %806 = vmatpush2.bf16.msra.mxu0 0
          %807 = vmatprep.subr.bf16.mxu0 0
          %808 = vmatpush2.bf16.msra.mxu0 0
          %809 = vmatprep.subr.bf16.mxu0 0
          %810 = vmatpush2.bf16.msra.mxu0 0
          %811 = vmatprep.subr.bf16.mxu0 0
          %812 = vmatpush2.bf16.msra.mxu0 0
          %813 = vmatprep.subr.bf16.mxu0 0
          %814 = vmatpush2.bf16.msra.mxu0 0
          %815 = vmatprep.subr.bf16.mxu0 0
          %816 = vmatpush2.bf16.msra.mxu0 0
          %817 = vmatprep.subr.bf16.mxu0 0
          %818 = vmatpush2.bf16.msra.mxu0 0
          %819 = vmatprep.subr.bf16.mxu0 0
          %820 = vmatpush2.bf16.msra.mxu0 0
          %821 = vmatprep.mubr.bf16.mxu0 0
          %822 = vmatmul.mubr.bf16.gmra.mxu0 %v589
          %v823 = vpop.f32.mrf.mxu0
          %v824 = vadd.f32 %v775, %v823
          %v825 = vpop.f32.mrf.mxu0
          %v826 = vpop.f32.mrf.mxu0
          %v827 = vpop.f32.mrf.mxu0
          %828 = vdwg.mxu0
          %v829 = vpack.c.bf16 %v759, %v759
          %s830 = scalar_lea.vmem [#allocation2], 4
          %831 = vst.msk [vmem:[%s830] sm:$0xf] %vm695, %v829
          %v832 = vpack.c.bf16 %v824, %v824
          %s833 = scalar_lea.vmem [#allocation3], 4
          %834 = vst.msk [vmem:[%s833] sm:$0xf] %vm695, %v832
          %s835 = scalar_lea.vmem %s3, 32
          %v836 = vld [vmem:[%s835] sm:$0xf]
          %v837 = vld [vmem:[%s835 + $0x4] sm:$0xf]
          %v838 = vld [vmem:[%s835 + $0x8] sm:$0xf]
          %v839 = vld [vmem:[%s835 + $0xc] sm:$0xf]
          %s840 = scalar_lea.vmem %s4, 2
          %v841 = vld [vmem:[%s840] sm:$0x1]
          %v843 = vlaneseq
          %v844 = vshrl.u32 %v843, 7
          %v845 = vsub.s32 0, %v844
          %v846 = vrot.slane %v841, %v845
          %v852 = vunpack.c.l.b16 %v836
          %v853 = vunpack.c.l.b16 %v837
          %v854 = vunpack.c.l.b16 %v838
          %v855 = vunpack.c.l.b16 %v839
          %v856 = vpack.c.b16 %v853, %v852
          %v857 = vpack.c.b16 %v855, %v854
          %860 = vmatprep.subr.bf16.mxu0 0
          %861 = vmatpush1.bf16.msra.mxu0 0
          %862 = vmatprep.subr.bf16.mxu0 0
          %863 = vmatpush1.bf16.msra.mxu0 0
          %864 = vmatprep.subr.bf16.mxu0 0
          %865 = vmatpush1.bf16.msra.mxu0 0
          %866 = vmatprep.subr.bf16.mxu0 0
          %867 = vmatpush1.bf16.msra.mxu0 0
          %868 = vmatprep.subr.bf16.mxu0 0
          %869 = vmatpush1.bf16.msra.mxu0 0
          %870 = vmatprep.subr.bf16.mxu0 0
          %871 = vmatpush1.bf16.msra.mxu0 0
          %872 = vmatprep.subr.bf16.mxu0 0
          %873 = vmatpush1.bf16.msra.mxu0 %v857
          %874 = vmatprep.subr.bf16.mxu0 0
          %875 = vmatpush1.bf16.msra.mxu0 %v856
          %876 = vmatprep.subr.bf16.mxu0 0
          %877 = vmatpush2.bf16.msra.mxu0 0
          %878 = vmatprep.subr.bf16.mxu0 0
          %879 = vmatpush2.bf16.msra.mxu0 0
          %880 = vmatprep.subr.bf16.mxu0 0
          %881 = vmatpush2.bf16.msra.mxu0 0
          %882 = vmatprep.subr.bf16.mxu0 0
          %883 = vmatpush2.bf16.msra.mxu0 0
          %884 = vmatprep.subr.bf16.mxu0 0
          %885 = vmatpush2.bf16.msra.mxu0 0
          %886 = vmatprep.subr.bf16.mxu0 0
          %887 = vmatpush2.bf16.msra.mxu0 0
          %888 = vmatprep.subr.bf16.mxu0 0
          %889 = vmatpush2.bf16.msra.mxu0 0
          %890 = vmatprep.subr.bf16.mxu0 0
          %891 = vmatpush2.bf16.msra.mxu0 0
          %892 = vmatprep.mubr.bf16.mxu0 0
          %893 = vmatmul.mubr.bf16.gmra.mxu0 %v589
          %v894 = vpop.f32.mrf.mxu0
          %v895 = vadd.f32 %v846, %v894
          %v896 = vpop.f32.mrf.mxu0
          %v897 = vpop.f32.mrf.mxu0
          %v898 = vpop.f32.mrf.mxu0
          %899 = vdwg.mxu0
          %s900 = scalar_lea.vmem %s5, 32
          %v901 = vld [vmem:[%s900] sm:$0xf]
          %v902 = vld [vmem:[%s900 + $0x4] sm:$0xf]
          %v903 = vld [vmem:[%s900 + $0x8] sm:$0xf]
          %v904 = vld [vmem:[%s900 + $0xc] sm:$0xf]
          %s905 = scalar_lea.vmem %s6, 2
          %v906 = vld [vmem:[%s905] sm:$0x1]
          %v908 = vlaneseq
          %v909 = vshrl.u32 %v908, 7
          %v910 = vsub.s32 0, %v909
          %v911 = vrot.slane %v906, %v910
          %v917 = vunpack.c.l.b16 %v901
          %v918 = vunpack.c.l.b16 %v902
          %v919 = vunpack.c.l.b16 %v903
          %v920 = vunpack.c.l.b16 %v904
          %v921 = vpack.c.b16 %v918, %v917
          %v922 = vpack.c.b16 %v920, %v919
          %925 = vmatprep.subr.bf16.mxu0 0
          %926 = vmatpush1.bf16.msra.mxu0 0
          %927 = vmatprep.subr.bf16.mxu0 0
          %928 = vmatpush1.bf16.msra.mxu0 0
          %929 = vmatprep.subr.bf16.mxu0 0
          %930 = vmatpush1.bf16.msra.mxu0 0
          %931 = vmatprep.subr.bf16.mxu0 0
          %932 = vmatpush1.bf16.msra.mxu0 0
          %933 = vmatprep.subr.bf16.mxu0 0
          %934 = vmatpush1.bf16.msra.mxu0 0
          %935 = vmatprep.subr.bf16.mxu0 0
          %936 = vmatpush1.bf16.msra.mxu0 0
          %937 = vmatprep.subr.bf16.mxu0 0
          %938 = vmatpush1.bf16.msra.mxu0 %v922
          %939 = vmatprep.subr.bf16.mxu0 0
          %940 = vmatpush1.bf16.msra.mxu0 %v921
          %941 = vmatprep.subr.bf16.mxu0 0
          %942 = vmatpush2.bf16.msra.mxu0 0
          %943 = vmatprep.subr.bf16.mxu0 0
          %944 = vmatpush2.bf16.msra.mxu0 0
          %945 = vmatprep.subr.bf16.mxu0 0
          %946 = vmatpush2.bf16.msra.mxu0 0
          %947 = vmatprep.subr.bf16.mxu0 0
          %948 = vmatpush2.bf16.msra.mxu0 0
          %949 = vmatprep.subr.bf16.mxu0 0
          %950 = vmatpush2.bf16.msra.mxu0 0
          %951 = vmatprep.subr.bf16.mxu0 0
          %952 = vmatpush2.bf16.msra.mxu0 0
          %953 = vmatprep.subr.bf16.mxu0 0
          %954 = vmatpush2.bf16.msra.mxu0 0
          %955 = vmatprep.subr.bf16.mxu0 0
          %956 = vmatpush2.bf16.msra.mxu0 0
          %957 = vmatprep.mubr.bf16.mxu0 0
          %958 = vmatmul.mubr.bf16.gmra.mxu0 %v589
          %v959 = vpop.f32.mrf.mxu0
          %v960 = vadd.f32 %v911, %v959
          %v961 = vpop.f32.mrf.mxu0
          %v962 = vpop.f32.mrf.mxu0
          %v963 = vpop.f32.mrf.mxu0
          %964 = vdwg.mxu0
          %v965 = vpack.c.bf16 %v895, %v895
          %s966 = scalar_lea.vmem [#allocation2], 8
          %967 = vst.msk [vmem:[%s966] sm:$0xf] %vm695, %v965
          %v968 = vpack.c.bf16 %v960, %v960
          %s969 = scalar_lea.vmem [#allocation3], 8
          %970 = vst.msk [vmem:[%s969] sm:$0xf] %vm695, %v968
          %s971 = scalar_lea.vmem %s3, 48
          %v972 = vld [vmem:[%s971] sm:$0xf]
          %v973 = vld [vmem:[%s971 + $0x4] sm:$0xf]
          %v974 = vld [vmem:[%s971 + $0x8] sm:$0xf]
          %v975 = vld [vmem:[%s971 + $0xc] sm:$0xf]
          %s976 = scalar_lea.vmem %s4, 3
          %v977 = vld [vmem:[%s976] sm:$0x1]
          %v979 = vlaneseq
          %v980 = vshrl.u32 %v979, 7
          %v981 = vsub.s32 0, %v980
          %v982 = vrot.slane %v977, %v981
          %v988 = vunpack.c.l.b16 %v972
          %v989 = vunpack.c.l.b16 %v973
          %v990 = vunpack.c.l.b16 %v974
          %v991 = vunpack.c.l.b16 %v975
          %v992 = vpack.c.b16 %v989, %v988
          %v993 = vpack.c.b16 %v991, %v990
          %996 = vmatprep.subr.bf16.mxu0 0
          %997 = vmatpush1.bf16.msra.mxu0 0
          %998 = vmatprep.subr.bf16.mxu0 0
          %999 = vmatpush1.bf16.msra.mxu0 0
          %1000 = vmatprep.subr.bf16.mxu0 0
          %1001 = vmatpush1.bf16.msra.mxu0 0
          %1002 = vmatprep.subr.bf16.mxu0 0
          %1003 = vmatpush1.bf16.msra.mxu0 0
          %1004 = vmatprep.subr.bf16.mxu0 0
          %1005 = vmatpush1.bf16.msra.mxu0 0
          %1006 = vmatprep.subr.bf16.mxu0 0
          %1007 = vmatpush1.bf16.msra.mxu0 0
          %1008 = vmatprep.subr.bf16.mxu0 0
          %1009 = vmatpush1.bf16.msra.mxu0 %v993
          %1010 = vmatprep.subr.bf16.mxu0 0
          %1011 = vmatpush1.bf16.msra.mxu0 %v992
          %1012 = vmatprep.subr.bf16.mxu0 0
          %1013 = vmatpush2.bf16.msra.mxu0 0
          %1014 = vmatprep.subr.bf16.mxu0 0
          %1015 = vmatpush2.bf16.msra.mxu0 0
          %1016 = vmatprep.subr.bf16.mxu0 0
          %1017 = vmatpush2.bf16.msra.mxu0 0
          %1018 = vmatprep.subr.bf16.mxu0 0
          %1019 = vmatpush2.bf16.msra.mxu0 0
          %1020 = vmatprep.subr.bf16.mxu0 0
          %1021 = vmatpush2.bf16.msra.mxu0 0
          %1022 = vmatprep.subr.bf16.mxu0 0
          %1023 = vmatpush2.bf16.msra.mxu0 0
          %1024 = vmatprep.subr.bf16.mxu0 0
          %1025 = vmatpush2.bf16.msra.mxu0 0
          %1026 = vmatprep.subr.bf16.mxu0 0
          %1027 = vmatpush2.bf16.msra.mxu0 0
          %1028 = vmatprep.mubr.bf16.mxu0 0
          %1029 = vmatmul.mubr.bf16.gmra.mxu0 %v589
          %v1030 = vpop.f32.mrf.mxu0
          %v1031 = vadd.f32 %v982, %v1030
          %v1032 = vpop.f32.mrf.mxu0
          %v1033 = vpop.f32.mrf.mxu0
          %v1034 = vpop.f32.mrf.mxu0
          %1035 = vdwg.mxu0
          %s1036 = scalar_lea.vmem %s5, 48
          %v1037 = vld [vmem:[%s1036] sm:$0xf]
          %v1038 = vld [vmem:[%s1036 + $0x4] sm:$0xf]
          %v1039 = vld [vmem:[%s1036 + $0x8] sm:$0xf]
          %v1040 = vld [vmem:[%s1036 + $0xc] sm:$0xf]
          %s1041 = scalar_lea.vmem %s6, 3
          %v1042 = vld [vmem:[%s1041] sm:$0x1]
          %v1044 = vlaneseq
          %v1045 = vshrl.u32 %v1044, 7
          %v1046 = vsub.s32 0, %v1045
          %v1047 = vrot.slane %v1042, %v1046
          %v1053 = vunpack.c.l.b16 %v1037
          %v1054 = vunpack.c.l.b16 %v1038
          %v1055 = vunpack.c.l.b16 %v1039
          %v1056 = vunpack.c.l.b16 %v1040
          %v1057 = vpack.c.b16 %v1054, %v1053
          %v1058 = vpack.c.b16 %v1056, %v1055
          %1061 = vmatprep.subr.bf16.mxu0 0
          %1062 = vmatpush1.bf16.msra.mxu0 0
          %1063 = vmatprep.subr.bf16.mxu0 0
          %1064 = vmatpush1.bf16.msra.mxu0 0
          %1065 = vmatprep.subr.bf16.mxu0 0
          %1066 = vmatpush1.bf16.msra.mxu0 0
          %1067 = vmatprep.subr.bf16.mxu0 0
          %1068 = vmatpush1.bf16.msra.mxu0 0
          %1069 = vmatprep.subr.bf16.mxu0 0
          %1070 = vmatpush1.bf16.msra.mxu0 0
          %1071 = vmatprep.subr.bf16.mxu0 0
          %1072 = vmatpush1.bf16.msra.mxu0 0
          %1073 = vmatprep.subr.bf16.mxu0 0
          %1074 = vmatpush1.bf16.msra.mxu0 %v1058
          %1075 = vmatprep.subr.bf16.mxu0 0
          %1076 = vmatpush1.bf16.msra.mxu0 %v1057
          %1077 = vmatprep.subr.bf16.mxu0 0
          %1078 = vmatpush2.bf16.msra.mxu0 0
          %1079 = vmatprep.subr.bf16.mxu0 0
          %1080 = vmatpush2.bf16.msra.mxu0 0
          %1081 = vmatprep.subr.bf16.mxu0 0
          %1082 = vmatpush2.bf16.msra.mxu0 0
          %1083 = vmatprep.subr.bf16.mxu0 0
          %1084 = vmatpush2.bf16.msra.mxu0 0
          %1085 = vmatprep.subr.bf16.mxu0 0
          %1086 = vmatpush2.bf16.msra.mxu0 0
          %1087 = vmatprep.subr.bf16.mxu0 0
          %1088 = vmatpush2.bf16.msra.mxu0 0
          %1089 = vmatprep.subr.bf16.mxu0 0
          %1090 = vmatpush2.bf16.msra.mxu0 0
          %1091 = vmatprep.subr.bf16.mxu0 0
          %1092 = vmatpush2.bf16.msra.mxu0 0
          %1093 = vmatprep.mubr.bf16.mxu0 0
          %1094 = vmatmul.mubr.bf16.gmra.mxu0 %v589
          %v1095 = vpop.f32.mrf.mxu0
          %v1096 = vadd.f32 %v1047, %v1095
          %v1097 = vpop.f32.mrf.mxu0
          %v1098 = vpop.f32.mrf.mxu0
          %v1099 = vpop.f32.mrf.mxu0
          %1100 = vdwg.mxu0
          %v1101 = vpack.c.bf16 %v1031, %v1031
          %s1102 = scalar_lea.vmem [#allocation2], 12
          %1103 = vst.msk [vmem:[%s1102] sm:$0xf] %vm695, %v1101
          %v1104 = vpack.c.bf16 %v1096, %v1096
          %s1105 = scalar_lea.vmem [#allocation3], 12
          %1106 = vst.msk [vmem:[%s1105] sm:$0xf] %vm695, %v1104
        $region92: #{tpu_custom_call.1} parent=87 // pred_fallthru
          _
        %s1107 = smul.u32 %s36, 8
        %s1108 = sshra.s32 %s1107, 3
        %s1109 = sand.u32 %s1107, 7
        %s1110 = smul.addr %s1108, 4
        %s1111 = scalar_lea.vmem %s557, %s1110
        %v1112 = vld [vmem:[%s1111] sm:$0xf]
        %v1113 = vunpack.c.l.bf16 %v1112
        %v1114 = vld [vmem:[%s8] sm:$0x1]
        %v1116 = vlaneseq
        %v1117 = vshrl.u32 %v1116, 7
        %v1118 = vsub.s32 0, %v1117
        %v1119 = vrot.slane %v1114, %v1118
        %v1121 = vld [vmem:[%s1] sm:$0xf]
        %v1122 = vld [vmem:[%s1 + $0x4] sm:$0xf]
        %v1123 = vld [vmem:[%s1 + $0x8] sm:$0xf]
        %v1124 = vld [vmem:[%s1 + $0xc] sm:$0xf]
        %v1125 = vld [vmem:[%s2] sm:$0x1]
        %v1127 = vlaneseq
        %v1128 = vshrl.u32 %v1127, 7
        %v1129 = vsub.s32 0, %v1128
        %v1130 = vrot.slane %v1125, %v1129
        %v1136 = vunpack.c.l.b16 %v1121
        %v1137 = vunpack.c.l.b16 %v1122
        %v1138 = vunpack.c.l.b16 %v1123
        %v1139 = vunpack.c.l.b16 %v1124
        %v1140 = vpack.c.b16 %v1137, %v1136
        %v1141 = vpack.c.b16 %v1139, %v1138
        %vm1144 = vcmask 261120
        %v1146 = vsel %vm1144, %v1112, 0
        %1148 = vmatprep.subr.bf16.mxu0 0
        %1149 = vmatpush1.bf16.msra.mxu0 0
        %1150 = vmatprep.subr.bf16.mxu0 0
        %1151 = vmatpush1.bf16.msra.mxu0 0
        %1152 = vmatprep.subr.bf16.mxu0 0
        %1153 = vmatpush1.bf16.msra.mxu0 0
        %1154 = vmatprep.subr.bf16.mxu0 0
        %1155 = vmatpush1.bf16.msra.mxu0 0
        %1156 = vmatprep.subr.bf16.mxu0 0
        %1157 = vmatpush1.bf16.msra.mxu0 0
        %1158 = vmatprep.subr.bf16.mxu0 0
        %1159 = vmatpush1.bf16.msra.mxu0 0
        %1160 = vmatprep.subr.bf16.mxu0 0
        %1161 = vmatpush1.bf16.msra.mxu0 %v1141
        %1162 = vmatprep.subr.bf16.mxu0 0
        %1163 = vmatpush1.bf16.msra.mxu0 %v1140
        %1164 = vmatprep.subr.bf16.mxu0 0
        %1165 = vmatpush2.bf16.msra.mxu0 0
        %1166 = vmatprep.subr.bf16.mxu0 0
        %1167 = vmatpush2.bf16.msra.mxu0 0
        %1168 = vmatprep.subr.bf16.mxu0 0
        %1169 = vmatpush2.bf16.msra.mxu0 0
        %1170 = vmatprep.subr.bf16.mxu0 0
        %1171 = vmatpush2.bf16.msra.mxu0 0
        %1172 = vmatprep.subr.bf16.mxu0 0
        %1173 = vmatpush2.bf16.msra.mxu0 0
        %1174 = vmatprep.subr.bf16.mxu0 0
        %1175 = vmatpush2.bf16.msra.mxu0 0
        %1176 = vmatprep.subr.bf16.mxu0 0
        %1177 = vmatpush2.bf16.msra.mxu0 0
        %1178 = vmatprep.subr.bf16.mxu0 0
        %1179 = vmatpush2.bf16.msra.mxu0 0
        %1180 = vmatprep.mubr.bf16.mxu0 0
        %1181 = vmatmul.mubr.bf16.gmra.mxu0 %v1146
        %v1182 = vpop.f32.mrf.mxu0
        %v1183 = vadd.f32 %v1130, %v1182
        %v1184 = vpop.f32.mrf.mxu0
        %v1185 = vpop.f32.mrf.mxu0
        %v1186 = vpop.f32.mrf.mxu0
        %1187 = vdwg.mxu0
        %v1188 = vpack.c.bf16 %v1183, %v1183
        %v1189 = vld [vmem:[#allocation2] sm:$0xf]
        %vm1190 = vcmask 64512
        %v1192 = vsel %vm1190, %v1188, 0
        %v1195 = vsel %vm1190, %v1189, 0
        %1197 = vmatprep.subr.bf16.mxu0 0
        %1198 = vmatpush1.bf16.xpose.msra.mxu0 0
        %1199 = vmatprep.subr.bf16.mxu0 0
        %1200 = vmatpush1.bf16.xpose.msra.mxu0 0
        %1201 = vmatprep.subr.bf16.mxu0 0
        %1202 = vmatpush1.bf16.xpose.msra.mxu0 0
        %1203 = vmatprep.subr.bf16.mxu0 0
        %1204 = vmatpush1.bf16.xpose.msra.mxu0 0
        %1205 = vmatprep.subr.bf16.mxu0 0
        %1206 = vmatpush1.bf16.xpose.msra.mxu0 0
        %1207 = vmatprep.subr.bf16.mxu0 0
        %1208 = vmatpush1.bf16.xpose.msra.mxu0 0
        %1209 = vmatprep.subr.bf16.mxu0 0
        %1210 = vmatpush1.bf16.xpose.msra.mxu0 0
        %1211 = vmatprep.subr.bf16.mxu0 0
        %1212 = vmatpush1.bf16.xpose.msra.mxu0 %v1195
        %1213 = vmatprep.subr.bf16.mxu0 0
        %1214 = vmatpush2.bf16.xpose.msra.mxu0 0
        %1215 = vmatprep.subr.bf16.mxu0 0
        %1216 = vmatpush2.bf16.xpose.msra.mxu0 0
        %1217 = vmatprep.subr.bf16.mxu0 0
        %1218 = vmatpush2.bf16.xpose.msra.mxu0 0
        %1219 = vmatprep.subr.bf16.mxu0 0
        %1220 = vmatpush2.bf16.xpose.msra.mxu0 0
        %1221 = vmatprep.subr.bf16.mxu0 0
        %1222 = vmatpush2.bf16.xpose.msra.mxu0 0
        %1223 = vmatprep.subr.bf16.mxu0 0
        %1224 = vmatpush2.bf16.xpose.msra.mxu0 0
        %1225 = vmatprep.subr.bf16.mxu0 0
        %1226 = vmatpush2.bf16.xpose.msra.mxu0 0
        %1227 = vmatprep.subr.bf16.mxu0 0
        %1228 = vmatpush2.bf16.xpose.msra.mxu0 0
        %1229 = vmatprep.mubr.bf16.mxu0 0
        %1230 = vmatmul.mubr.bf16.gmra.mxu0 %v1192
        %v1231 = vpop.f32.mrf.mxu0
        %v1232 = vadd.f32 0.0, %v1231
        %v1233 = vpop.f32.mrf.mxu0
        %v1234 = vpop.f32.mrf.mxu0
        %v1235 = vpop.f32.mrf.mxu0
        %1236 = vdwg.mxu0
        %v1237 = vsel %vm1190, %v1232, -inf
        %1238 = vmax.xlane.f32.xlu0 %v1237
        %v1239 = vpop.xlane.xlu0 %1238
        %v1240 = vsub.f32 %v1232, %v1239
        %v1241 = vmul.f32 %v1240, 1.442695
        %v1242 = vpow.pop %v1241
        %v1243 = vsel %vm1190, %v1242, 0.0
        %1244 = vadd.xlane.f32.xlu0 %v1243
        %v1245 = vpop.xlane.xlu0 %1244
        %v1246 = vrcp.pop %v1245
        %v1247 = vmul.f32 %v1242, %v1246
        %v1248 = vpack.c.bf16 %v1247, %v1247
        %v1249 = vld [vmem:[#allocation3] sm:$0xf]
        %v1251 = vsel %vm1190, %v1248, 0
        %vm1253 = vcmask 1043456
        %v1255 = vsel %vm1253, %v1249, 0
        %1257 = vmatprep.subr.bf16.mxu0 0
        %1258 = vmatpush1.bf16.msra.mxu0 0
        %1259 = vmatprep.subr.bf16.mxu0 0
        %1260 = vmatpush1.bf16.msra.mxu0 0
        %1261 = vmatprep.subr.bf16.mxu0 0
        %1262 = vmatpush1.bf16.msra.mxu0 0
        %1263 = vmatprep.subr.bf16.mxu0 0
        %1264 = vmatpush1.bf16.msra.mxu0 0
        %1265 = vmatprep.subr.bf16.mxu0 0
        %1266 = vmatpush1.bf16.msra.mxu0 0
        %1267 = vmatprep.subr.bf16.mxu0 0
        %1268 = vmatpush1.bf16.msra.mxu0 0
        %1269 = vmatprep.subr.bf16.mxu0 0
        %1270 = vmatpush1.bf16.msra.mxu0 0
        %1271 = vmatprep.subr.bf16.mxu0 0
        %1272 = vmatpush1.bf16.msra.mxu0 %v1255
        %1273 = vmatprep.subr.bf16.mxu0 0
        %1274 = vmatpush2.bf16.msra.mxu0 0
        %1275 = vmatprep.subr.bf16.mxu0 0
        %1276 = vmatpush2.bf16.msra.mxu0 0
        %1277 = vmatprep.subr.bf16.mxu0 0
        %1278 = vmatpush2.bf16.msra.mxu0 0
        %1279 = vmatprep.subr.bf16.mxu0 0
        %1280 = vmatpush2.bf16.msra.mxu0 0
        %1281 = vmatprep.subr.bf16.mxu0 0
        %1282 = vmatpush2.bf16.msra.mxu0 0
        %1283 = vmatprep.subr.bf16.mxu0 0
        %1284 = vmatpush2.bf16.msra.mxu0 0
        %1285 = vmatprep.subr.bf16.mxu0 0
        %1286 = vmatpush2.bf16.msra.mxu0 0
        %1287 = vmatprep.subr.bf16.mxu0 0
        %1288 = vmatpush2.bf16.msra.mxu0 0
        %1289 = vmatprep.mubr.bf16.mxu0 0
        %1290 = vmatmul.mubr.bf16.gmra.mxu0 %v1251
        %v1291 = vpop.f32.mrf.mxu0
        %v1292 = vadd.f32 0.0, %v1291
        %v1293 = vpop.f32.mrf.mxu0
        %v1294 = vpop.f32.mrf.mxu0
        %v1295 = vpop.f32.mrf.mxu0
        %1296 = vdwg.mxu0
        %v1297 = vpack.c.bf16 %v1292, %v1292
        %v1298 = vld [vmem:[%s7] sm:$0xf]
        %v1300 = vsel %vm1190, %v1297, 0
        %v1303 = vsel %vm1253, %v1298, 0
        %1305 = vmatprep.subr.bf16.mxu0 0
        %1306 = vmatpush1.bf16.msra.mxu0 0
        %1307 = vmatprep.subr.bf16.mxu0 0
        %1308 = vmatpush1.bf16.msra.mxu0 0
        %1309 = vmatprep.subr.bf16.mxu0 0
        %1310 = vmatpush1.bf16.msra.mxu0 0
        %1311 = vmatprep.subr.bf16.mxu0 0
        %1312 = vmatpush1.bf16.msra.mxu0 0
        %1313 = vmatprep.subr.bf16.mxu0 0
        %1314 = vmatpush1.bf16.msra.mxu0 0
        %1315 = vmatprep.subr.bf16.mxu0 0
        %1316 = vmatpush1.bf16.msra.mxu0 0
        %1317 = vmatprep.subr.bf16.mxu0 0
        %1318 = vmatpush1.bf16.msra.mxu0 0
        %1319 = vmatprep.subr.bf16.mxu0 0
        %1320 = vmatpush1.bf16.msra.mxu0 %v1303
        %1321 = vmatprep.subr.bf16.mxu0 0
        %1322 = vmatpush2.bf16.msra.mxu0 0
        %1323 = vmatprep.subr.bf16.mxu0 0
        %1324 = vmatpush2.bf16.msra.mxu0 0
        %1325 = vmatprep.subr.bf16.mxu0 0
        %1326 = vmatpush2.bf16.msra.mxu0 0
        %1327 = vmatprep.subr.bf16.mxu0 0
        %1328 = vmatpush2.bf16.msra.mxu0 0
        %1329 = vmatprep.subr.bf16.mxu0 0
        %1330 = vmatpush2.bf16.msra.mxu0 0
        %1331 = vmatprep.subr.bf16.mxu0 0
        %1332 = vmatpush2.bf16.msra.mxu0 0
        %1333 = vmatprep.subr.bf16.mxu0 0
        %1334 = vmatpush2.bf16.msra.mxu0 0
        %1335 = vmatprep.subr.bf16.mxu0 0
        %1336 = vmatpush2.bf16.msra.mxu0 0
        %1337 = vmatprep.mubr.bf16.mxu0 0
        %1338 = vmatmul.mubr.bf16.gmra.mxu0 %v1300
        %v1339 = vpop.f32.mrf.mxu0
        %v1340 = vadd.f32 0.0, %v1339
        %v1341 = vpop.f32.mrf.mxu0
        %v1342 = vpop.f32.mrf.mxu0
        %v1343 = vpop.f32.mrf.mxu0
        %1344 = vdwg.mxu0
        %v1345 = vadd.f32 %v1119, %v1340
        %s1346 = scalar_lea.vmem %s1, 16
        %v1347 = vld [vmem:[%s1346] sm:$0xf]
        %v1348 = vld [vmem:[%s1346 + $0x4] sm:$0xf]
        %v1349 = vld [vmem:[%s1346 + $0x8] sm:$0xf]
        %v1350 = vld [vmem:[%s1346 + $0xc] sm:$0xf]
        %s1351 = scalar_lea.vmem %s2, 1
        %v1352 = vld [vmem:[%s1351] sm:$0x1]
        %v1354 = vlaneseq
        %v1355 = vshrl.u32 %v1354, 7
        %v1356 = vsub.s32 0, %v1355
        %v1357 = vrot.slane %v1352, %v1356
        %v1363 = vunpack.c.l.b16 %v1347
        %v1364 = vunpack.c.l.b16 %v1348
        %v1365 = vunpack.c.l.b16 %v1349
        %v1366 = vunpack.c.l.b16 %v1350
        %v1367 = vpack.c.b16 %v1364, %v1363
        %v1368 = vpack.c.b16 %v1366, %v1365
        %1371 = vmatprep.subr.bf16.mxu0 0
        %1372 = vmatpush1.bf16.msra.mxu0 0
        %1373 = vmatprep.subr.bf16.mxu0 0
        %1374 = vmatpush1.bf16.msra.mxu0 0
        %1375 = vmatprep.subr.bf16.mxu0 0
        %1376 = vmatpush1.bf16.msra.mxu0 0
        %1377 = vmatprep.subr.bf16.mxu0 0
        %1378 = vmatpush1.bf16.msra.mxu0 0
        %1379 = vmatprep.subr.bf16.mxu0 0
        %1380 = vmatpush1.bf16.msra.mxu0 0
        %1381 = vmatprep.subr.bf16.mxu0 0
        %1382 = vmatpush1.bf16.msra.mxu0 0
        %1383 = vmatprep.subr.bf16.mxu0 0
        %1384 = vmatpush1.bf16.msra.mxu0 %v1368
        %1385 = vmatprep.subr.bf16.mxu0 0
        %1386 = vmatpush1.bf16.msra.mxu0 %v1367
        %1387 = vmatprep.subr.bf16.mxu0 0
        %1388 = vmatpush2.bf16.msra.mxu0 0
        %1389 = vmatprep.subr.bf16.mxu0 0
        %1390 = vmatpush2.bf16.msra.mxu0 0
        %1391 = vmatprep.subr.bf16.mxu0 0
        %1392 = vmatpush2.bf16.msra.mxu0 0
        %1393 = vmatprep.subr.bf16.mxu0 0
        %1394 = vmatpush2.bf16.msra.mxu0 0
        %1395 = vmatprep.subr.bf16.mxu0 0
        %1396 = vmatpush2.bf16.msra.mxu0 0
        %1397 = vmatprep.subr.bf16.mxu0 0
        %1398 = vmatpush2.bf16.msra.mxu0 0
        %1399 = vmatprep.subr.bf16.mxu0 0
        %1400 = vmatpush2.bf16.msra.mxu0 0
        %1401 = vmatprep.subr.bf16.mxu0 0
        %1402 = vmatpush2.bf16.msra.mxu0 0
        %1403 = vmatprep.mubr.bf16.mxu0 0
        %1404 = vmatmul.mubr.bf16.gmra.mxu0 %v1146
        %v1405 = vpop.f32.mrf.mxu0
        %v1406 = vadd.f32 %v1357, %v1405
        %v1407 = vpop.f32.mrf.mxu0
        %v1408 = vpop.f32.mrf.mxu0
        %v1409 = vpop.f32.mrf.mxu0
        %1410 = vdwg.mxu0
        %v1411 = vpack.c.bf16 %v1406, %v1406
        %s1412 = scalar_lea.vmem [#allocation2], 4
        %v1413 = vld [vmem:[%s1412] sm:$0xf]
        %v1415 = vsel %vm1190, %v1411, 0
        %v1418 = vsel %vm1190, %v1413, 0
        %1420 = vmatprep.subr.bf16.mxu0 0
        %1421 = vmatpush1.bf16.xpose.msra.mxu0 0
        %1422 = vmatprep.subr.bf16.mxu0 0
        %1423 = vmatpush1.bf16.xpose.msra.mxu0 0
        %1424 = vmatprep.subr.bf16.mxu0 0
        %1425 = vmatpush1.bf16.xpose.msra.mxu0 0
        %1426 = vmatprep.subr.bf16.mxu0 0
        %1427 = vmatpush1.bf16.xpose.msra.mxu0 0
        %1428 = vmatprep.subr.bf16.mxu0 0
        %1429 = vmatpush1.bf16.xpose.msra.mxu0 0
        %1430 = vmatprep.subr.bf16.mxu0 0
        %1431 = vmatpush1.bf16.xpose.msra.mxu0 0
        %1432 = vmatprep.subr.bf16.mxu0 0
        %1433 = vmatpush1.bf16.xpose.msra.mxu0 0
        %1434 = vmatprep.subr.bf16.mxu0 0
        %1435 = vmatpush1.bf16.xpose.msra.mxu0 %v1418
        %1436 = vmatprep.subr.bf16.mxu0 0
        %1437 = vmatpush2.bf16.xpose.msra.mxu0 0
        %1438 = vmatprep.subr.bf16.mxu0 0
        %1439 = vmatpush2.bf16.xpose.msra.mxu0 0
        %1440 = vmatprep.subr.bf16.mxu0 0
        %1441 = vmatpush2.bf16.xpose.msra.mxu0 0
        %1442 = vmatprep.subr.bf16.mxu0 0
        %1443 = vmatpush2.bf16.xpose.msra.mxu0 0
        %1444 = vmatprep.subr.bf16.mxu0 0
        %1445 = vmatpush2.bf16.xpose.msra.mxu0 0
        %1446 = vmatprep.subr.bf16.mxu0 0
        %1447 = vmatpush2.bf16.xpose.msra.mxu0 0
        %1448 = vmatprep.subr.bf16.mxu0 0
        %1449 = vmatpush2.bf16.xpose.msra.mxu0 0
        %1450 = vmatprep.subr.bf16.mxu0 0
        %1451 = vmatpush2.bf16.xpose.msra.mxu0 0
        %1452 = vmatprep.mubr.bf16.mxu0 0
        %1453 = vmatmul.mubr.bf16.gmra.mxu0 %v1415
        %v1454 = vpop.f32.mrf.mxu0
        %v1455 = vadd.f32 0.0, %v1454
        %v1456 = vpop.f32.mrf.mxu0
        %v1457 = vpop.f32.mrf.mxu0
        %v1458 = vpop.f32.mrf.mxu0
        %1459 = vdwg.mxu0
        %v1460 = vsel %vm1190, %v1455, -inf
        %1461 = vmax.xlane.f32.xlu0 %v1460
        %v1462 = vpop.xlane.xlu0 %1461
        %v1463 = vsub.f32 %v1455, %v1462
        %v1464 = vmul.f32 %v1463, 1.442695
        %v1465 = vpow.pop %v1464
        %v1466 = vsel %vm1190, %v1465, 0.0
        %1467 = vadd.xlane.f32.xlu0 %v1466
        %v1468 = vpop.xlane.xlu0 %1467
        %v1469 = vrcp.pop %v1468
        %v1470 = vmul.f32 %v1465, %v1469
        %v1471 = vpack.c.bf16 %v1470, %v1470
        %s1472 = scalar_lea.vmem [#allocation3], 4
        %v1473 = vld [vmem:[%s1472] sm:$0xf]
        %v1475 = vsel %vm1190, %v1471, 0
        %v1478 = vsel %vm1253, %v1473, 0
        %1480 = vmatprep.subr.bf16.mxu0 0
        %1481 = vmatpush1.bf16.msra.mxu0 0
        %1482 = vmatprep.subr.bf16.mxu0 0
        %1483 = vmatpush1.bf16.msra.mxu0 0
        %1484 = vmatprep.subr.bf16.mxu0 0
        %1485 = vmatpush1.bf16.msra.mxu0 0
        %1486 = vmatprep.subr.bf16.mxu0 0
        %1487 = vmatpush1.bf16.msra.mxu0 0
        %1488 = vmatprep.subr.bf16.mxu0 0
        %1489 = vmatpush1.bf16.msra.mxu0 0
        %1490 = vmatprep.subr.bf16.mxu0 0
        %1491 = vmatpush1.bf16.msra.mxu0 0
        %1492 = vmatprep.subr.bf16.mxu0 0
        %1493 = vmatpush1.bf16.msra.mxu0 0
        %1494 = vmatprep.subr.bf16.mxu0 0
        %1495 = vmatpush1.bf16.msra.mxu0 %v1478
        %1496 = vmatprep.subr.bf16.mxu0 0
        %1497 = vmatpush2.bf16.msra.mxu0 0
        %1498 = vmatprep.subr.bf16.mxu0 0
        %1499 = vmatpush2.bf16.msra.mxu0 0
        %1500 = vmatprep.subr.bf16.mxu0 0
        %1501 = vmatpush2.bf16.msra.mxu0 0
        %1502 = vmatprep.subr.bf16.mxu0 0
        %1503 = vmatpush2.bf16.msra.mxu0 0
        %1504 = vmatprep.subr.bf16.mxu0 0
        %1505 = vmatpush2.bf16.msra.mxu0 0
        %1506 = vmatprep.subr.bf16.mxu0 0
        %1507 = vmatpush2.bf16.msra.mxu0 0
        %1508 = vmatprep.subr.bf16.mxu0 0
        %1509 = vmatpush2.bf16.msra.mxu0 0
        %1510 = vmatprep.subr.bf16.mxu0 0
        %1511 = vmatpush2.bf16.msra.mxu0 0
        %1512 = vmatprep.mubr.bf16.mxu0 0
        %1513 = vmatmul.mubr.bf16.gmra.mxu0 %v1475
        %v1514 = vpop.f32.mrf.mxu0
        %v1515 = vadd.f32 0.0, %v1514
        %v1516 = vpop.f32.mrf.mxu0
        %v1517 = vpop.f32.mrf.mxu0
        %v1518 = vpop.f32.mrf.mxu0
        %1519 = vdwg.mxu0
        %v1520 = vpack.c.bf16 %v1515, %v1515
        %s1521 = scalar_lea.vmem %s7, 4
        %v1522 = vld [vmem:[%s1521] sm:$0xf]
        %v1524 = vsel %vm1190, %v1520, 0
        %v1527 = vsel %vm1253, %v1522, 0
        %1529 = vmatprep.subr.bf16.mxu0 0
        %1530 = vmatpush1.bf16.msra.mxu0 0
        %1531 = vmatprep.subr.bf16.mxu0 0
        %1532 = vmatpush1.bf16.msra.mxu0 0
        %1533 = vmatprep.subr.bf16.mxu0 0
        %1534 = vmatpush1.bf16.msra.mxu0 0
        %1535 = vmatprep.subr.bf16.mxu0 0
        %1536 = vmatpush1.bf16.msra.mxu0 0
        %1537 = vmatprep.subr.bf16.mxu0 0
        %1538 = vmatpush1.bf16.msra.mxu0 0
        %1539 = vmatprep.subr.bf16.mxu0 0
        %1540 = vmatpush1.bf16.msra.mxu0 0
        %1541 = vmatprep.subr.bf16.mxu0 0
        %1542 = vmatpush1.bf16.msra.mxu0 0
        %1543 = vmatprep.subr.bf16.mxu0 0
        %1544 = vmatpush1.bf16.msra.mxu0 %v1527
        %1545 = vmatprep.subr.bf16.mxu0 0
        %1546 = vmatpush2.bf16.msra.mxu0 0
        %1547 = vmatprep.subr.bf16.mxu0 0
        %1548 = vmatpush2.bf16.msra.mxu0 0
        %1549 = vmatprep.subr.bf16.mxu0 0
        %1550 = vmatpush2.bf16.msra.mxu0 0
        %1551 = vmatprep.subr.bf16.mxu0 0
        %1552 = vmatpush2.bf16.msra.mxu0 0
        %1553 = vmatprep.subr.bf16.mxu0 0
        %1554 = vmatpush2.bf16.msra.mxu0 0
        %1555 = vmatprep.subr.bf16.mxu0 0
        %1556 = vmatpush2.bf16.msra.mxu0 0
        %1557 = vmatprep.subr.bf16.mxu0 0
        %1558 = vmatpush2.bf16.msra.mxu0 0
        %1559 = vmatprep.subr.bf16.mxu0 0
        %1560 = vmatpush2.bf16.msra.mxu0 0
        %1561 = vmatprep.mubr.bf16.mxu0 0
        %1562 = vmatmul.mubr.bf16.gmra.mxu0 %v1524
        %v1563 = vpop.f32.mrf.mxu0
        %v1564 = vadd.f32 0.0, %v1563
        %v1565 = vpop.f32.mrf.mxu0
        %v1566 = vpop.f32.mrf.mxu0
        %v1567 = vpop.f32.mrf.mxu0
        %1568 = vdwg.mxu0
        %v1569 = vadd.f32 %v1345, %v1564
        %s1570 = scalar_lea.vmem %s1, 32
        %v1571 = vld [vmem:[%s1570] sm:$0xf]
        %v1572 = vld [vmem:[%s1570 + $0x4] sm:$0xf]
        %v1573 = vld [vmem:[%s1570 + $0x8] sm:$0xf]
        %v1574 = vld [vmem:[%s1570 + $0xc] sm:$0xf]
        %s1575 = scalar_lea.vmem %s2, 2
        %v1576 = vld [vmem:[%s1575] sm:$0x1]
        %v1578 = vlaneseq
        %v1579 = vshrl.u32 %v1578, 7
        %v1580 = vsub.s32 0, %v1579
        %v1581 = vrot.slane %v1576, %v1580
        %v1587 = vunpack.c.l.b16 %v1571
        %v1588 = vunpack.c.l.b16 %v1572
        %v1589 = vunpack.c.l.b16 %v1573
        %v1590 = vunpack.c.l.b16 %v1574
        %v1591 = vpack.c.b16 %v1588, %v1587
        %v1592 = vpack.c.b16 %v1590, %v1589
        %1595 = vmatprep.subr.bf16.mxu0 0
        %1596 = vmatpush1.bf16.msra.mxu0 0
        %1597 = vmatprep.subr.bf16.mxu0 0
        %1598 = vmatpush1.bf16.msra.mxu0 0
        %1599 = vmatprep.subr.bf16.mxu0 0
        %1600 = vmatpush1.bf16.msra.mxu0 0
        %1601 = vmatprep.subr.bf16.mxu0 0
        %1602 = vmatpush1.bf16.msra.mxu0 0
        %1603 = vmatprep.subr.bf16.mxu0 0
        %1604 = vmatpush1.bf16.msra.mxu0 0
        %1605 = vmatprep.subr.bf16.mxu0 0
        %1606 = vmatpush1.bf16.msra.mxu0 0
        %1607 = vmatprep.subr.bf16.mxu0 0
        %1608 = vmatpush1.bf16.msra.mxu0 %v1592
        %1609 = vmatprep.subr.bf16.mxu0 0
        %1610 = vmatpush1.bf16.msra.mxu0 %v1591
        %1611 = vmatprep.subr.bf16.mxu0 0
        %1612 = vmatpush2.bf16.msra.mxu0 0
        %1613 = vmatprep.subr.bf16.mxu0 0
        %1614 = vmatpush2.bf16.msra.mxu0 0
        %1615 = vmatprep.subr.bf16.mxu0 0
        %1616 = vmatpush2.bf16.msra.mxu0 0
        %1617 = vmatprep.subr.bf16.mxu0 0
        %1618 = vmatpush2.bf16.msra.mxu0 0
        %1619 = vmatprep.subr.bf16.mxu0 0
        %1620 = vmatpush2.bf16.msra.mxu0 0
        %1621 = vmatprep.subr.bf16.mxu0 0
        %1622 = vmatpush2.bf16.msra.mxu0 0
        %1623 = vmatprep.subr.bf16.mxu0 0
        %1624 = vmatpush2.bf16.msra.mxu0 0
        %1625 = vmatprep.subr.bf16.mxu0 0
        %1626 = vmatpush2.bf16.msra.mxu0 0
        %1627 = vmatprep.mubr.bf16.mxu0 0
        %1628 = vmatmul.mubr.bf16.gmra.mxu0 %v1146
        %v1629 = vpop.f32.mrf.mxu0
        %v1630 = vadd.f32 %v1581, %v1629
        %v1631 = vpop.f32.mrf.mxu0
        %v1632 = vpop.f32.mrf.mxu0
        %v1633 = vpop.f32.mrf.mxu0
        %1634 = vdwg.mxu0
        %v1635 = vpack.c.bf16 %v1630, %v1630
        %s1636 = scalar_lea.vmem [#allocation2], 8
        %v1637 = vld [vmem:[%s1636] sm:$0xf]
        %v1639 = vsel %vm1190, %v1635, 0
        %v1642 = vsel %vm1190, %v1637, 0
        %1644 = vmatprep.subr.bf16.mxu0 0
        %1645 = vmatpush1.bf16.xpose.msra.mxu0 0
        %1646 = vmatprep.subr.bf16.mxu0 0
        %1647 = vmatpush1.bf16.xpose.msra.mxu0 0
        %1648 = vmatprep.subr.bf16.mxu0 0
        %1649 = vmatpush1.bf16.xpose.msra.mxu0 0
        %1650 = vmatprep.subr.bf16.mxu0 0
        %1651 = vmatpush1.bf16.xpose.msra.mxu0 0
        %1652 = vmatprep.subr.bf16.mxu0 0
        %1653 = vmatpush1.bf16.xpose.msra.mxu0 0
        %1654 = vmatprep.subr.bf16.mxu0 0
        %1655 = vmatpush1.bf16.xpose.msra.mxu0 0
        %1656 = vmatprep.subr.bf16.mxu0 0
        %1657 = vmatpush1.bf16.xpose.msra.mxu0 0
        %1658 = vmatprep.subr.bf16.mxu0 0
        %1659 = vmatpush1.bf16.xpose.msra.mxu0 %v1642
        %1660 = vmatprep.subr.bf16.mxu0 0
        %1661 = vmatpush2.bf16.xpose.msra.mxu0 0
        %1662 = vmatprep.subr.bf16.mxu0 0
        %1663 = vmatpush2.bf16.xpose.msra.mxu0 0
        %1664 = vmatprep.subr.bf16.mxu0 0
        %1665 = vmatpush2.bf16.xpose.msra.mxu0 0
        %1666 = vmatprep.subr.bf16.mxu0 0
        %1667 = vmatpush2.bf16.xpose.msra.mxu0 0
        %1668 = vmatprep.subr.bf16.mxu0 0
        %1669 = vmatpush2.bf16.xpose.msra.mxu0 0
        %1670 = vmatprep.subr.bf16.mxu0 0
        %1671 = vmatpush2.bf16.xpose.msra.mxu0 0
        %1672 = vmatprep.subr.bf16.mxu0 0
        %1673 = vmatpush2.bf16.xpose.msra.mxu0 0
        %1674 = vmatprep.subr.bf16.mxu0 0
        %1675 = vmatpush2.bf16.xpose.msra.mxu0 0
        %1676 = vmatprep.mubr.bf16.mxu0 0
        %1677 = vmatmul.mubr.bf16.gmra.mxu0 %v1639
        %v1678 = vpop.f32.mrf.mxu0
        %v1679 = vadd.f32 0.0, %v1678
        %v1680 = vpop.f32.mrf.mxu0
        %v1681 = vpop.f32.mrf.mxu0
        %v1682 = vpop.f32.mrf.mxu0
        %1683 = vdwg.mxu0
        %v1684 = vsel %vm1190, %v1679, -inf
        %1685 = vmax.xlane.f32.xlu0 %v1684
        %v1686 = vpop.xlane.xlu0 %1685
        %v1687 = vsub.f32 %v1679, %v1686
        %v1688 = vmul.f32 %v1687, 1.442695
        %v1689 = vpow.pop %v1688
        %v1690 = vsel %vm1190, %v1689, 0.0
        %1691 = vadd.xlane.f32.xlu0 %v1690
        %v1692 = vpop.xlane.xlu0 %1691
        %v1693 = vrcp.pop %v1692
        %v1694 = vmul.f32 %v1689, %v1693
        %v1695 = vpack.c.bf16 %v1694, %v1694
        %s1696 = scalar_lea.vmem [#allocation3], 8
        %v1697 = vld [vmem:[%s1696] sm:$0xf]
        %v1699 = vsel %vm1190, %v1695, 0
        %v1702 = vsel %vm1253, %v1697, 0
        %1704 = vmatprep.subr.bf16.mxu0 0
        %1705 = vmatpush1.bf16.msra.mxu0 0
        %1706 = vmatprep.subr.bf16.mxu0 0
        %1707 = vmatpush1.bf16.msra.mxu0 0
        %1708 = vmatprep.subr.bf16.mxu0 0
        %1709 = vmatpush1.bf16.msra.mxu0 0
        %1710 = vmatprep.subr.bf16.mxu0 0
        %1711 = vmatpush1.bf16.msra.mxu0 0
        %1712 = vmatprep.subr.bf16.mxu0 0
        %1713 = vmatpush1.bf16.msra.mxu0 0
        %1714 = vmatprep.subr.bf16.mxu0 0
        %1715 = vmatpush1.bf16.msra.mxu0 0
        %1716 = vmatprep.subr.bf16.mxu0 0
        %1717 = vmatpush1.bf16.msra.mxu0 0
        %1718 = vmatprep.subr.bf16.mxu0 0
        %1719 = vmatpush1.bf16.msra.mxu0 %v1702
        %1720 = vmatprep.subr.bf16.mxu0 0
        %1721 = vmatpush2.bf16.msra.mxu0 0
        %1722 = vmatprep.subr.bf16.mxu0 0
        %1723 = vmatpush2.bf16.msra.mxu0 0
        %1724 = vmatprep.subr.bf16.mxu0 0
        %1725 = vmatpush2.bf16.msra.mxu0 0
        %1726 = vmatprep.subr.bf16.mxu0 0
        %1727 = vmatpush2.bf16.msra.mxu0 0
        %1728 = vmatprep.subr.bf16.mxu0 0
        %1729 = vmatpush2.bf16.msra.mxu0 0
        %1730 = vmatprep.subr.bf16.mxu0 0
        %1731 = vmatpush2.bf16.msra.mxu0 0
        %1732 = vmatprep.subr.bf16.mxu0 0
        %1733 = vmatpush2.bf16.msra.mxu0 0
        %1734 = vmatprep.subr.bf16.mxu0 0
        %1735 = vmatpush2.bf16.msra.mxu0 0
        %1736 = vmatprep.mubr.bf16.mxu0 0
        %1737 = vmatmul.mubr.bf16.gmra.mxu0 %v1699
        %v1738 = vpop.f32.mrf.mxu0
        %v1739 = vadd.f32 0.0, %v1738
        %v1740 = vpop.f32.mrf.mxu0
        %v1741 = vpop.f32.mrf.mxu0
        %v1742 = vpop.f32.mrf.mxu0
        %1743 = vdwg.mxu0
        %v1744 = vpack.c.bf16 %v1739, %v1739
        %s1745 = scalar_lea.vmem %s7, 8
        %v1746 = vld [vmem:[%s1745] sm:$0xf]
        %v1748 = vsel %vm1190, %v1744, 0
        %v1751 = vsel %vm1253, %v1746, 0
        %1753 = vmatprep.subr.bf16.mxu0 0
        %1754 = vmatpush1.bf16.msra.mxu0 0
        %1755 = vmatprep.subr.bf16.mxu0 0
        %1756 = vmatpush1.bf16.msra.mxu0 0
        %1757 = vmatprep.subr.bf16.mxu0 0
        %1758 = vmatpush1.bf16.msra.mxu0 0
        %1759 = vmatprep.subr.bf16.mxu0 0
        %1760 = vmatpush1.bf16.msra.mxu0 0
        %1761 = vmatprep.subr.bf16.mxu0 0
        %1762 = vmatpush1.bf16.msra.mxu0 0
        %1763 = vmatprep.subr.bf16.mxu0 0
        %1764 = vmatpush1.bf16.msra.mxu0 0
        %1765 = vmatprep.subr.bf16.mxu0 0
        %1766 = vmatpush1.bf16.msra.mxu0 0
        %1767 = vmatprep.subr.bf16.mxu0 0
        %1768 = vmatpush1.bf16.msra.mxu0 %v1751
        %1769 = vmatprep.subr.bf16.mxu0 0
        %1770 = vmatpush2.bf16.msra.mxu0 0
        %1771 = vmatprep.subr.bf16.mxu0 0
        %1772 = vmatpush2.bf16.msra.mxu0 0
        %1773 = vmatprep.subr.bf16.mxu0 0
        %1774 = vmatpush2.bf16.msra.mxu0 0
        %1775 = vmatprep.subr.bf16.mxu0 0
        %1776 = vmatpush2.bf16.msra.mxu0 0
        %1777 = vmatprep.subr.bf16.mxu0 0
        %1778 = vmatpush2.bf16.msra.mxu0 0
        %1779 = vmatprep.subr.bf16.mxu0 0
        %1780 = vmatpush2.bf16.msra.mxu0 0
        %1781 = vmatprep.subr.bf16.mxu0 0
        %1782 = vmatpush2.bf16.msra.mxu0 0
        %1783 = vmatprep.subr.bf16.mxu0 0
        %1784 = vmatpush2.bf16.msra.mxu0 0
        %1785 = vmatprep.mubr.bf16.mxu0 0
        %1786 = vmatmul.mubr.bf16.gmra.mxu0 %v1748
        %v1787 = vpop.f32.mrf.mxu0
        %v1788 = vadd.f32 0.0, %v1787
        %v1789 = vpop.f32.mrf.mxu0
        %v1790 = vpop.f32.mrf.mxu0
        %v1791 = vpop.f32.mrf.mxu0
        %1792 = vdwg.mxu0
        %v1793 = vadd.f32 %v1569, %v1788
        %s1794 = scalar_lea.vmem %s1, 48
        %v1795 = vld [vmem:[%s1794] sm:$0xf]
        %v1796 = vld [vmem:[%s1794 + $0x4] sm:$0xf]
        %v1797 = vld [vmem:[%s1794 + $0x8] sm:$0xf]
        %v1798 = vld [vmem:[%s1794 + $0xc] sm:$0xf]
        %s1799 = scalar_lea.vmem %s2, 3
        %v1800 = vld [vmem:[%s1799] sm:$0x1]
        %v1802 = vlaneseq
        %v1803 = vshrl.u32 %v1802, 7
        %v1804 = vsub.s32 0, %v1803
        %v1805 = vrot.slane %v1800, %v1804
        %v1811 = vunpack.c.l.b16 %v1795
        %v1812 = vunpack.c.l.b16 %v1796
        %v1813 = vunpack.c.l.b16 %v1797
        %v1814 = vunpack.c.l.b16 %v1798
        %v1815 = vpack.c.b16 %v1812, %v1811
        %v1816 = vpack.c.b16 %v1814, %v1813
        %1819 = vmatprep.subr.bf16.mxu0 0
        %1820 = vmatpush1.bf16.msra.mxu0 0
        %1821 = vmatprep.subr.bf16.mxu0 0
        %1822 = vmatpush1.bf16.msra.mxu0 0
        %1823 = vmatprep.subr.bf16.mxu0 0
        %1824 = vmatpush1.bf16.msra.mxu0 0
        %1825 = vmatprep.subr.bf16.mxu0 0
        %1826 = vmatpush1.bf16.msra.mxu0 0
        %1827 = vmatprep.subr.bf16.mxu0 0
        %1828 = vmatpush1.bf16.msra.mxu0 0
        %1829 = vmatprep.subr.bf16.mxu0 0
        %1830 = vmatpush1.bf16.msra.mxu0 0
        %1831 = vmatprep.subr.bf16.mxu0 0
        %1832 = vmatpush1.bf16.msra.mxu0 %v1816
        %1833 = vmatprep.subr.bf16.mxu0 0
        %1834 = vmatpush1.bf16.msra.mxu0 %v1815
        %1835 = vmatprep.subr.bf16.mxu0 0
        %1836 = vmatpush2.bf16.msra.mxu0 0
        %1837 = vmatprep.subr.bf16.mxu0 0
        %1838 = vmatpush2.bf16.msra.mxu0 0
        %1839 = vmatprep.subr.bf16.mxu0 0
        %1840 = vmatpush2.bf16.msra.mxu0 0
        %1841 = vmatprep.subr.bf16.mxu0 0
        %1842 = vmatpush2.bf16.msra.mxu0 0
        %1843 = vmatprep.subr.bf16.mxu0 0
        %1844 = vmatpush2.bf16.msra.mxu0 0
        %1845 = vmatprep.subr.bf16.mxu0 0
        %1846 = vmatpush2.bf16.msra.mxu0 0
        %1847 = vmatprep.subr.bf16.mxu0 0
        %1848 = vmatpush2.bf16.msra.mxu0 0
        %1849 = vmatprep.subr.bf16.mxu0 0
        %1850 = vmatpush2.bf16.msra.mxu0 0
        %1851 = vmatprep.mubr.bf16.mxu0 0
        %1852 = vmatmul.mubr.bf16.gmra.mxu0 %v1146
        %v1853 = vpop.f32.mrf.mxu0
        %v1854 = vadd.f32 %v1805, %v1853
        %v1855 = vpop.f32.mrf.mxu0
        %v1856 = vpop.f32.mrf.mxu0
        %v1857 = vpop.f32.mrf.mxu0
        %1858 = vdwg.mxu0
        %v1859 = vpack.c.bf16 %v1854, %v1854
        %s1860 = scalar_lea.vmem [#allocation2], 12
        %v1861 = vld [vmem:[%s1860] sm:$0xf]
        %v1863 = vsel %vm1190, %v1859, 0
        %v1866 = vsel %vm1190, %v1861, 0
        %1868 = vmatprep.subr.bf16.mxu0 0
        %1869 = vmatpush1.bf16.xpose.msra.mxu0 0
        %1870 = vmatprep.subr.bf16.mxu0 0
        %1871 = vmatpush1.bf16.xpose.msra.mxu0 0
        %1872 = vmatprep.subr.bf16.mxu0 0
        %1873 = vmatpush1.bf16.xpose.msra.mxu0 0
        %1874 = vmatprep.subr.bf16.mxu0 0
        %1875 = vmatpush1.bf16.xpose.msra.mxu0 0
        %1876 = vmatprep.subr.bf16.mxu0 0
        %1877 = vmatpush1.bf16.xpose.msra.mxu0 0
        %1878 = vmatprep.subr.bf16.mxu0 0
        %1879 = vmatpush1.bf16.xpose.msra.mxu0 0
        %1880 = vmatprep.subr.bf16.mxu0 0
        %1881 = vmatpush1.bf16.xpose.msra.mxu0 0
        %1882 = vmatprep.subr.bf16.mxu0 0
        %1883 = vmatpush1.bf16.xpose.msra.mxu0 %v1866
        %1884 = vmatprep.subr.bf16.mxu0 0
        %1885 = vmatpush2.bf16.xpose.msra.mxu0 0
        %1886 = vmatprep.subr.bf16.mxu0 0
        %1887 = vmatpush2.bf16.xpose.msra.mxu0 0
        %1888 = vmatprep.subr.bf16.mxu0 0
        %1889 = vmatpush2.bf16.xpose.msra.mxu0 0
        %1890 = vmatprep.subr.bf16.mxu0 0
        %1891 = vmatpush2.bf16.xpose.msra.mxu0 0
        %1892 = vmatprep.subr.bf16.mxu0 0
        %1893 = vmatpush2.bf16.xpose.msra.mxu0 0
        %1894 = vmatprep.subr.bf16.mxu0 0
        %1895 = vmatpush2.bf16.xpose.msra.mxu0 0
        %1896 = vmatprep.subr.bf16.mxu0 0
        %1897 = vmatpush2.bf16.xpose.msra.mxu0 0
        %1898 = vmatprep.subr.bf16.mxu0 0
        %1899 = vmatpush2.bf16.xpose.msra.mxu0 0
        %1900 = vmatprep.mubr.bf16.mxu0 0
        %1901 = vmatmul.mubr.bf16.gmra.mxu0 %v1863
        %v1902 = vpop.f32.mrf.mxu0
        %v1903 = vadd.f32 0.0, %v1902
        %v1904 = vpop.f32.mrf.mxu0
        %v1905 = vpop.f32.mrf.mxu0
        %v1906 = vpop.f32.mrf.mxu0
        %1907 = vdwg.mxu0
        %v1908 = vsel %vm1190, %v1903, -inf
        %1909 = vmax.xlane.f32.xlu0 %v1908
        %v1910 = vpop.xlane.xlu0 %1909
        %v1911 = vsub.f32 %v1903, %v1910
        %v1912 = vmul.f32 %v1911, 1.442695
        %v1913 = vpow.pop %v1912
        %v1914 = vsel %vm1190, %v1913, 0.0
        %1915 = vadd.xlane.f32.xlu0 %v1914
        %v1916 = vpop.xlane.xlu0 %1915
        %v1917 = vrcp.pop %v1916
        %v1918 = vmul.f32 %v1913, %v1917
        %v1919 = vpack.c.bf16 %v1918, %v1918
        %s1920 = scalar_lea.vmem [#allocation3], 12
        %v1921 = vld [vmem:[%s1920] sm:$0xf]
        %v1923 = vsel %vm1190, %v1919, 0
        %v1926 = vsel %vm1253, %v1921, 0
        %1928 = vmatprep.subr.bf16.mxu0 0
        %1929 = vmatpush1.bf16.msra.mxu0 0
        %1930 = vmatprep.subr.bf16.mxu0 0
        %1931 = vmatpush1.bf16.msra.mxu0 0
        %1932 = vmatprep.subr.bf16.mxu0 0
        %1933 = vmatpush1.bf16.msra.mxu0 0
        %1934 = vmatprep.subr.bf16.mxu0 0
        %1935 = vmatpush1.bf16.msra.mxu0 0
        %1936 = vmatprep.subr.bf16.mxu0 0
        %1937 = vmatpush1.bf16.msra.mxu0 0
        %1938 = vmatprep.subr.bf16.mxu0 0
        %1939 = vmatpush1.bf16.msra.mxu0 0
        %1940 = vmatprep.subr.bf16.mxu0 0
        %1941 = vmatpush1.bf16.msra.mxu0 0
        %1942 = vmatprep.subr.bf16.mxu0 0
        %1943 = vmatpush1.bf16.msra.mxu0 %v1926
        %1944 = vmatprep.subr.bf16.mxu0 0
        %1945 = vmatpush2.bf16.msra.mxu0 0
        %1946 = vmatprep.subr.bf16.mxu0 0
        %1947 = vmatpush2.bf16.msra.mxu0 0
        %1948 = vmatprep.subr.bf16.mxu0 0
        %1949 = vmatpush2.bf16.msra.mxu0 0
        %1950 = vmatprep.subr.bf16.mxu0 0
        %1951 = vmatpush2.bf16.msra.mxu0 0
        %1952 = vmatprep.subr.bf16.mxu0 0
        %1953 = vmatpush2.bf16.msra.mxu0 0
        %1954 = vmatprep.subr.bf16.mxu0 0
        %1955 = vmatpush2.bf16.msra.mxu0 0
        %1956 = vmatprep.subr.bf16.mxu0 0
        %1957 = vmatpush2.bf16.msra.mxu0 0
        %1958 = vmatprep.subr.bf16.mxu0 0
        %1959 = vmatpush2.bf16.msra.mxu0 0
        %1960 = vmatprep.mubr.bf16.mxu0 0
        %1961 = vmatmul.mubr.bf16.gmra.mxu0 %v1923
        %v1962 = vpop.f32.mrf.mxu0
        %v1963 = vadd.f32 0.0, %v1962
        %v1964 = vpop.f32.mrf.mxu0
        %v1965 = vpop.f32.mrf.mxu0
        %v1966 = vpop.f32.mrf.mxu0
        %1967 = vdwg.mxu0
        %v1968 = vpack.c.bf16 %v1963, %v1963
        %s1969 = scalar_lea.vmem %s7, 12
        %v1970 = vld [vmem:[%s1969] sm:$0xf]
        %v1972 = vsel %vm1190, %v1968, 0
        %v1975 = vsel %vm1253, %v1970, 0
        %1977 = vmatprep.subr.bf16.mxu0 0
        %1978 = vmatpush1.bf16.msra.mxu0 0
        %1979 = vmatprep.subr.bf16.mxu0 0
        %1980 = vmatpush1.bf16.msra.mxu0 0
        %1981 = vmatprep.subr.bf16.mxu0 0
        %1982 = vmatpush1.bf16.msra.mxu0 0
        %1983 = vmatprep.subr.bf16.mxu0 0
        %1984 = vmatpush1.bf16.msra.mxu0 0
        %1985 = vmatprep.subr.bf16.mxu0 0
        %1986 = vmatpush1.bf16.msra.mxu0 0
        %1987 = vmatprep.subr.bf16.mxu0 0
        %1988 = vmatpush1.bf16.msra.mxu0 0
        %1989 = vmatprep.subr.bf16.mxu0 0
        %1990 = vmatpush1.bf16.msra.mxu0 0
        %1991 = vmatprep.subr.bf16.mxu0 0
        %1992 = vmatpush1.bf16.msra.mxu0 %v1975
        %1993 = vmatprep.subr.bf16.mxu0 0
        %1994 = vmatpush2.bf16.msra.mxu0 0
        %1995 = vmatprep.subr.bf16.mxu0 0
        %1996 = vmatpush2.bf16.msra.mxu0 0
        %1997 = vmatprep.subr.bf16.mxu0 0
        %1998 = vmatpush2.bf16.msra.mxu0 0
        %1999 = vmatprep.subr.bf16.mxu0 0
        %2000 = vmatpush2.bf16.msra.mxu0 0
        %2001 = vmatprep.subr.bf16.mxu0 0
        %2002 = vmatpush2.bf16.msra.mxu0 0
        %2003 = vmatprep.subr.bf16.mxu0 0
        %2004 = vmatpush2.bf16.msra.mxu0 0
        %2005 = vmatprep.subr.bf16.mxu0 0
        %2006 = vmatpush2.bf16.msra.mxu0 0
        %2007 = vmatprep.subr.bf16.mxu0 0
        %2008 = vmatpush2.bf16.msra.mxu0 0
        %2009 = vmatprep.mubr.bf16.mxu0 0
        %2010 = vmatmul.mubr.bf16.gmra.mxu0 %v1972
        %v2011 = vpop.f32.mrf.mxu0
        %v2012 = vadd.f32 0.0, %v2011
        %v2013 = vpop.f32.mrf.mxu0
        %v2014 = vpop.f32.mrf.mxu0
        %v2015 = vpop.f32.mrf.mxu0
        %2016 = vdwg.mxu0
        %v2017 = vadd.f32 %v1793, %v2012
        %v2018 = vadd.f32 %v2017, %v1113
        %v2019 = vsel %vm1144, %v2018, 0.0
        %2020 = vadd.xlane.f32.xlu0 %v2019
        %v2021 = vpop.xlane.xlu0 %2020
        %v2022 = vrcp.pop 32.0
        %v2023 = vmul.f32 %v2021, %v2022
        %v2024 = vsub.f32 %v2018, %v2023
        %v2025 = vmul.f32 %v2024, %v2024
        %v2026 = vsel %vm1144, %v2025, 0.0
        %2027 = vadd.xlane.f32.xlu0 %v2026
        %v2028 = vpop.xlane.xlu0 %2027
        %v2029 = vmul.f32 %v2028, %v2022
        %v2030 = vadd.f32 %v2029, 1e-12
        %v2031 = vrsqrt.pop %v2030
        %v2032 = vmul.f32 %v2024, %v2031
        %v2033 = vld [vmem:[%s9] sm:$0x1]
        %v2035 = vlaneseq
        %v2036 = vshrl.u32 %v2035, 7
        %v2037 = vsub.s32 0, %v2036
        %v2038 = vrot.slane %v2033, %v2037
        %v2040 = vmul.f32 %v2032, %v2038
        %v2041 = vld [vmem:[%s10] sm:$0x1]
        %v2043 = vlaneseq
        %v2044 = vshrl.u32 %v2043, 7
        %v2045 = vsub.s32 0, %v2044
        %v2046 = vrot.slane %v2041, %v2045
        %v2048 = vadd.f32 %v2040, %v2046
        %v2049 = vpack.c.bf16 %v2048, %v2048
        %v2050 = vld [vmem:[%s14] sm:$0x1]
        %v2052 = vlaneseq
        %v2053 = vshrl.u32 %v2052, 7
        %v2054 = vsub.s32 0, %v2053
        %v2055 = vrot.slane %v2050, %v2054
        %v2057 = vld [vmem:[%s11] sm:$0xf]
        %v2058 = vld [vmem:[%s11 + $0x4] sm:$0xf]
        %v2059 = vld [vmem:[%s11 + $0x8] sm:$0xf]
        %v2060 = vld [vmem:[%s11 + $0xc] sm:$0xf]
        %v2061 = vld [vmem:[%s12] sm:$0x1]
        %v2063 = vlaneseq
        %v2064 = vshrl.u32 %v2063, 7
        %v2065 = vsub.s32 0, %v2064
        %v2066 = vrot.slane %v2061, %v2065
        %v2072 = vunpack.c.l.b16 %v2057
        %v2073 = vunpack.c.l.b16 %v2058
        %v2074 = vunpack.c.l.b16 %v2059
        %v2075 = vunpack.c.l.b16 %v2060
        %v2076 = vpack.c.b16 %v2073, %v2072
        %v2077 = vpack.c.b16 %v2075, %v2074
        %v2081 = vsel %vm1144, %v2049, 0
        %2083 = vmatprep.subr.bf16.mxu0 0
        %2084 = vmatpush1.bf16.msra.mxu0 0
        %2085 = vmatprep.subr.bf16.mxu0 0
        %2086 = vmatpush1.bf16.msra.mxu0 0
        %2087 = vmatprep.subr.bf16.mxu0 0
        %2088 = vmatpush1.bf16.msra.mxu0 0
        %2089 = vmatprep.subr.bf16.mxu0 0
        %2090 = vmatpush1.bf16.msra.mxu0 0
        %2091 = vmatprep.subr.bf16.mxu0 0
        %2092 = vmatpush1.bf16.msra.mxu0 0
        %2093 = vmatprep.subr.bf16.mxu0 0
        %2094 = vmatpush1.bf16.msra.mxu0 0
        %2095 = vmatprep.subr.bf16.mxu0 0
        %2096 = vmatpush1.bf16.msra.mxu0 %v2077
        %2097 = vmatprep.subr.bf16.mxu0 0
        %2098 = vmatpush1.bf16.msra.mxu0 %v2076
        %2099 = vmatprep.subr.bf16.mxu0 0
        %2100 = vmatpush2.bf16.msra.mxu0 0
        %2101 = vmatprep.subr.bf16.mxu0 0
        %2102 = vmatpush2.bf16.msra.mxu0 0
        %2103 = vmatprep.subr.bf16.mxu0 0
        %2104 = vmatpush2.bf16.msra.mxu0 0
        %2105 = vmatprep.subr.bf16.mxu0 0
        %2106 = vmatpush2.bf16.msra.mxu0 0
        %2107 = vmatprep.subr.bf16.mxu0 0
        %2108 = vmatpush2.bf16.msra.mxu0 0
        %2109 = vmatprep.subr.bf16.mxu0 0
        %2110 = vmatpush2.bf16.msra.mxu0 0
        %2111 = vmatprep.subr.bf16.mxu0 0
        %2112 = vmatpush2.bf16.msra.mxu0 0
        %2113 = vmatprep.subr.bf16.mxu0 0
        %2114 = vmatpush2.bf16.msra.mxu0 0
        %2115 = vmatprep.mubr.bf16.mxu0 0
        %2116 = vmatmul.mubr.bf16.gmra.mxu0 %v2081
        %v2117 = vpop.f32.mrf.mxu0
        %v2118 = vadd.f32 %v2066, %v2117
        %v2119 = vpop.f32.mrf.mxu0
        %v2120 = vpop.f32.mrf.mxu0
        %v2121 = vpop.f32.mrf.mxu0
        %2122 = vdwg.mxu0
        %v2123 = vmax.f32 %v2118, 0.0
        %v2124 = vpack.c.bf16 %v2123, %v2123
        %v2125 = vld [vmem:[%s13] sm:$0xf]
        %v2126 = vld [vmem:[%s13 + $0x4] sm:$0xf]
        %v2127 = vld [vmem:[%s13 + $0x8] sm:$0xf]
        %v2128 = vld [vmem:[%s13 + $0xc] sm:$0xf]
        %v2129 = vld [vmem:[%s13 + $0x10] sm:$0xf]
        %v2130 = vld [vmem:[%s13 + $0x14] sm:$0xf]
        %v2131 = vld [vmem:[%s13 + $0x18] sm:$0xf]
        %v2132 = vld [vmem:[%s13 + $0x1c] sm:$0xf]
        %v2141 = vunpack.c.l.b16 %v2125
        %v2142 = vunpack.c.l.b16 %v2126
        %v2143 = vunpack.c.l.b16 %v2127
        %v2144 = vunpack.c.l.b16 %v2128
        %v2145 = vunpack.c.l.b16 %v2129
        %v2146 = vunpack.c.l.b16 %v2130
        %v2147 = vunpack.c.l.b16 %v2131
        %v2148 = vunpack.c.l.b16 %v2132
        %v2149 = vpack.c.b16 %v2142, %v2141
        %v2150 = vpack.c.b16 %v2144, %v2143
        %v2151 = vpack.c.b16 %v2146, %v2145
        %v2152 = vpack.c.b16 %v2148, %v2147
        %vm2157 = vcmask 523264
        %v2159 = vsel %vm2157, %v2124, 0
        %2161 = vmatprep.subr.bf16.mxu0 0
        %2162 = vmatpush1.bf16.msra.mxu0 0
        %2163 = vmatprep.subr.bf16.mxu0 0
        %2164 = vmatpush1.bf16.msra.mxu0 0
        %2165 = vmatprep.subr.bf16.mxu0 0
        %2166 = vmatpush1.bf16.msra.mxu0 0
        %2167 = vmatprep.subr.bf16.mxu0 0
        %2168 = vmatpush1.bf16.msra.mxu0 0
        %2169 = vmatprep.subr.bf16.mxu0 0
        %2170 = vmatpush1.bf16.msra.mxu0 %v2152
        %2171 = vmatprep.subr.bf16.mxu0 0
        %2172 = vmatpush1.bf16.msra.mxu0 %v2151
        %2173 = vmatprep.subr.bf16.mxu0 0
        %2174 = vmatpush1.bf16.msra.mxu0 %v2150
        %2175 = vmatprep.subr.bf16.mxu0 0
        %2176 = vmatpush1.bf16.msra.mxu0 %v2149
        %2177 = vmatprep.subr.bf16.mxu0 0
        %2178 = vmatpush2.bf16.msra.mxu0 0
        %2179 = vmatprep.subr.bf16.mxu0 0
        %2180 = vmatpush2.bf16.msra.mxu0 0
        %2181 = vmatprep.subr.bf16.mxu0 0
        %2182 = vmatpush2.bf16.msra.mxu0 0
        %2183 = vmatprep.subr.bf16.mxu0 0
        %2184 = vmatpush2.bf16.msra.mxu0 0
        %2185 = vmatprep.subr.bf16.mxu0 0
        %2186 = vmatpush2.bf16.msra.mxu0 0
        %2187 = vmatprep.subr.bf16.mxu0 0
        %2188 = vmatpush2.bf16.msra.mxu0 0
        %2189 = vmatprep.subr.bf16.mxu0 0
        %2190 = vmatpush2.bf16.msra.mxu0 0
        %2191 = vmatprep.subr.bf16.mxu0 0
        %2192 = vmatpush2.bf16.msra.mxu0 0
        %2193 = vmatprep.mubr.bf16.mxu0 0
        %2194 = vmatmul.mubr.bf16.gmra.mxu0 %v2159
        %v2195 = vpop.f32.mrf.mxu0
        %v2196 = vadd.f32 0.0, %v2195
        %v2197 = vpop.f32.mrf.mxu0
        %v2198 = vpop.f32.mrf.mxu0
        %v2199 = vpop.f32.mrf.mxu0
        %2200 = vdwg.mxu0
        %v2201 = vadd.f32 %v2055, %v2196
        %v2202 = vadd.f32 %v2201, %v2048
        %v2203 = vsel %vm1144, %v2202, 0.0
        %2204 = vadd.xlane.f32.xlu0 %v2203
        %v2205 = vpop.xlane.xlu0 %2204
        %v2206 = vmul.f32 %v2205, %v2022
        %v2207 = vsub.f32 %v2202, %v2206
        %v2208 = vmul.f32 %v2207, %v2207
        %v2209 = vsel %vm1144, %v2208, 0.0
        %2210 = vadd.xlane.f32.xlu0 %v2209
        %v2211 = vpop.xlane.xlu0 %2210
        %v2212 = vmul.f32 %v2211, %v2022
        %v2213 = vadd.f32 %v2212, 1e-12
        %v2214 = vrsqrt.pop %v2213
        %v2215 = vmul.f32 %v2207, %v2214
        %v2216 = vld [vmem:[%s15] sm:$0x1]
        %v2218 = vlaneseq
        %v2219 = vshrl.u32 %v2218, 7
        %v2220 = vsub.s32 0, %v2219
        %v2221 = vrot.slane %v2216, %v2220
        %v2223 = vmul.f32 %v2215, %v2221
        %v2224 = vld [vmem:[%s16] sm:$0x1]
        %v2226 = vlaneseq
        %v2227 = vshrl.u32 %v2226, 7
        %v2228 = vsub.s32 0, %v2227
        %v2229 = vrot.slane %v2224, %v2228
        %v2231 = vadd.f32 %v2223, %v2229
        %2232 = vst.msk [vmem:[%s553] sm:$0xff] %vm1144, %v2231
        %s2233 = sand.u32 %s415, 1
        %s2234 = scalar_lea.sflag [#allocation5], %s2233
        %s2235 = sand.u32 %s415, 1
        %s2236 = smul.addr %s2235, 8
        %s2237 = scalar_lea.vmem [#allocation4], %s2236
        // Predicated region
        $region93: #{tpu_custom_call.1} parent=87 // pred_check
          %p2238 = pneg %p425
        $region94: #{tpu_custom_call.1} parent=87 // pred_check_branch
          %2240 = sbr.rel (%p2238) target = $region96
        $region95: #{tpu_custom_call.1} parent=87 // pred_region
          %s2242 = ssub.s32 128, 128
          %2243 = vsyncadd %s2234, %s2242
          %s2244 = sadd.s32 %s36, %s35
          %s2245 = smul.addr %s2244, 128
          %s2246 = scalar_lea.hbm %s17, %s2245
          %s2248 = sshll.u32 %s2237, 4
          %s2249 = int_to_ptr.vmem [resolvable:$true] %s2248
          %2251 = dma.vmem_to_hbm [thread:$0]  %s2249, 128, %s2246, %s2234
        $region96: #{tpu_custom_call.1} parent=87 // pred_fallthru
          _
      $region88: #{tpu_custom_call.1} parent=5 // pred_fallthru
        _
      %p2252 = scmp.le.s32.totalorder 2, %s26
      // Predicated region
      $region97: #{tpu_custom_call.1} parent=5 // pred_check
        %p2253 = pneg %p2252
      $region98: #{tpu_custom_call.1} parent=5 // pred_check_branch
        %2255 = sbr.rel (%p2253) target = $region100
      $region99: #{tpu_custom_call.1} parent=5 // pred_region
        %s2256 = ssub.s32 %s26, 2
        // Predicated region
        $region101: #{tpu_custom_call.1} parent=99 // pred_check
          %p2257 = pneg %p431
        $region102: #{tpu_custom_call.1} parent=99 // pred_check_branch
          %2259 = sbr.rel (%p2257) target = $region104
        $region103: #{tpu_custom_call.1} parent=99 // pred_region
          %s2260 = sand.u32 %s416, 1
          %s2261 = scalar_lea.sflag [#allocation5], %s2260
          %s2262 = sand.u32 %s416, 1
          %s2263 = smul.addr %s2262, 8
          %s2264 = scalar_lea.vmem [#allocation4], %s2263
          %2265 = dma.done %s2261, 128
        $region104: #{tpu_custom_call.1} parent=99 // pred_fallthru
          _
      $region100: #{tpu_custom_call.1} parent=5 // pred_fallthru
        _
    $region6: #{tpu_custom_call.1} parent=1 // loop_footer
      %s30 = sadd.s32 1, %s26
    $region7: #{tpu_custom_call.1} parent=1 // loop_footer_branch
      %25 = sbr.rel target = $region3
    $region8: #{tpu_custom_call.1} parent=1 // loop_exit
      _
    %2266 = vsyncpa [#allocation5], 1
    %s2267 = scalar_lea.sflag [#allocation5], 1
    %2268 = vsyncpa %s2267, 1

</llo_original>
